<compile_context>
chip_gen: v5e
topology: v5e:2x2
jax: 0.10.0
libtpu: 0.0.40
codegen_flags: <defaults>
</compile_context>

<pallas_src>
import functools

import jax
import jax.numpy as jnp
from jax.experimental import pallas as pl
from jax.experimental.pallas import tpu as pltpu
from jax.scipy.special import erf as _erf_exact


_PARALLEL = pltpu.CompilerParams(dimension_semantics=("parallel",))
_INV_SQRT2 = 0.7071067811865476


# ----------------------------------------------------------------------------
# In-kernel math helpers
# ----------------------------------------------------------------------------

def _ln(x, g, b):
    # nn.LayerNorm: biased variance, eps=1e-5.
    mu = jnp.mean(x, axis=-1, keepdims=True)
    var = jnp.mean(jnp.square(x - mu), axis=-1, keepdims=True)
    return (x - mu) * jax.lax.rsqrt(var + 1e-5) * g + b


def _gelu(x, erf):
    # exact GELU (nn.GELU default): 0.5 * x * (1 + erf(x / sqrt(2)))
    return 0.5 * x * (1.0 + erf(x * _INV_SQRT2))


def _erf_poly(x):
    # Abramowitz & Stegun 7.1.26, |err| <= 1.5e-7; uses only exp/mul/add so it
    # always lowers on Mosaic (EUP + VPU).
    a1, a2, a3, a4, a5 = 0.254829592, -0.284496736, 1.421413741, -1.453152027, 1.061405429
    p = 0.3275911
    s = jnp.where(x >= 0.0, 1.0, -1.0)
    z = jnp.abs(x)
    t = 1.0 / (1.0 + p * z)
    poly = ((((a5 * t + a4) * t + a3) * t + a2) * t + a1) * t
    return s * (1.0 - poly * jnp.exp(-z * z))


def _select_kernel_erf():
    """Use exact lax erf inside kernels if Mosaic lowers it, else the poly."""
    def k(x_ref, o_ref):
        o_ref[...] = _erf_exact(x_ref[...])
    try:
        probe = pl.pallas_call(
            k, out_shape=jax.ShapeDtypeStruct((8, 128), jnp.float32))
        jax.block_until_ready(jax.jit(probe)(jnp.zeros((8, 128), jnp.float32)))
        return _erf_exact
    except Exception:  # noqa: BLE001 - any lowering/compile failure -> fallback
        return _erf_poly


# ----------------------------------------------------------------------------
# Pallas kernels
# ----------------------------------------------------------------------------

def _encoder_kernel(grp_ref, xyzt_ref, wdf_ref, wpos_ref, bpos_ref, o_ref,
                    *, groups, chunks, relu):
    """Fused tube-embedding conv + spatial/temporal max + pos-embed + ReLU.

    grp_ref : (J*G, 4+Cin)  rows ordered (frame, sample) slow, (t_out, anchor) fast
    xyzt_ref: (G, 4)        anchor xyz + time
    wdf_ref : (4+Cin, D)    [conv_d ; conv_f] weights (bias-free)
    wpos_ref: (4, D), bpos_ref: (1, D)   pos_embedding Conv1d(4, D, 1)
    o_ref   : (G, D)
    """
    G, J = groups, chunks
    wdf = wdf_ref[...]
    feat = None
    # Per-chunk matmul + running max keeps the working set tiny (no (J*G, D)
    # intermediate, no HBM round-trip of the pre-pooled features).
    for j in range(J):
        xj = grp_ref[j * G:(j + 1) * G, :]                       # (G, 4+Cin)
        cj = jnp.dot(xj, wdf, preferred_element_type=jnp.float32)
        feat = cj if feat is None else jnp.maximum(feat, cj)
    pos = jnp.dot(xyzt_ref[...], wpos_ref[...],
                  preferred_element_type=jnp.float32)            # (G, D)
    emb = pos + bpos_ref[...] + feat
    if relu:
        emb = jnp.maximum(emb, 0.0)
    o_ref[...] = emb


def encoder_embed(grouped, xyzt, wdf, wpos, bpos, relu):
    B, M, C = grouped.shape
    G = xyzt.shape[1]
    J = M // G
    D = wdf.shape[1]
    kernel = functools.partial(_encoder_kernel, groups=G, chunks=J, relu=relu)
    return pl.pallas_call(
        kernel,
        out_shape=jax.ShapeDtypeStruct((B, G, D), jnp.float32),
        grid=(B,),
        in_specs=[
            pl.BlockSpec((None, M, C), lambda b: (b, 0, 0)),
            pl.BlockSpec((None, G, 4), lambda b: (b, 0, 0)),
            pl.BlockSpec((C, D), lambda b: (0, 0)),
            pl.BlockSpec((4, D), lambda b: (0, 0)),
            pl.BlockSpec((1, D), lambda b: (0, 0)),
        ],
        out_specs=pl.BlockSpec((None, G, D), lambda b: (b, 0, 0)),
        compiler_params=_PARALLEL,
    )(grouped, xyzt, wdf, wpos, bpos.reshape(1, D))


def _layer_kernel(x_ref, g1_ref, b1_ref, wqkv_ref, wo_ref, bo_ref,
                  g2_ref, b2_ref, w1_ref, bm1_ref, w2_ref, bm2_ref, o_ref,
                  *, heads, scale, erf):
    """One full transformer layer, x resident in VMEM.

    wqkv_ref: (3*heads, D, dh)  order [q_h0..q_hH, k_h0.., v_h0..]
    wo_ref  : (heads, dh, D)
    """
    x = x_ref[...]                                               # (L, D)
    y = _ln(x, g1_ref[...], b1_ref[...])

    attn = None
    for h in range(heads):
        q = jnp.dot(y, wqkv_ref[h], preferred_element_type=jnp.float32)
        k = jnp.dot(y, wqkv_ref[heads + h], preferred_element_type=jnp.float32)
        v = jnp.dot(y, wqkv_ref[2 * heads + h], preferred_element_type=jnp.float32)
        # q @ k^T without an explicit transpose
        s = jax.lax.dot_general(
            q, k, (((1,), (1,)), ((), ())),
            preferred_element_type=jnp.float32) * scale
        m = jnp.max(s, axis=-1, keepdims=True)
        p = jnp.exp(s - m)
        denom = jnp.sum(p, axis=-1, keepdims=True)
        p = p * pl.reciprocal(denom, approx=True)                # EUP slot
        oh = jnp.dot(p, v, preferred_element_type=jnp.float32)   # (L, dh)
        contrib = jnp.dot(oh, wo_ref[h], preferred_element_type=jnp.float32)
        attn = contrib if attn is None else attn + contrib

    x = x + attn + bo_ref[...]

    y2 = _ln(x, g2_ref[...], b2_ref[...])
    hmid = jnp.dot(y2, w1_ref[...], preferred_element_type=jnp.float32) + bm1_ref[...]
    hmid = _gelu(hmid, erf)                                      # exact GELU, in-kernel
    x = x + jnp.dot(hmid, w2_ref[...], preferred_element_type=jnp.float32) + bm2_ref[...]
    o_ref[...] = x


def transformer_layer(x, lp, cfg, erf_fn):
    B, L, D = x.shape
    heads, dh = cfg["heads"], cfg["dim_head"]
    mlp_dim = lp["w1"].shape[1]
    # Rearrange weights so the kernel indexes per-head blocks on a leading ref
    # axis -- removes all in-kernel lane slicing / split_heads transposes.
    w_qkv_h = (lp["wqkv"].reshape(D, 3, heads, dh)
               .transpose(1, 2, 0, 3).reshape(3 * heads, D, dh))
    w_o_h = lp["wo"].reshape(heads, dh, D)
    b2 = lambda v: v.reshape(1, -1)
    kernel = functools.partial(_layer_kernel, heads=heads,
                               scale=dh ** -0.5, erf=erf_fn)
    return pl.pallas_call(
        kernel,
        out_shape=jax.ShapeDtypeStruct((B, L, D), jnp.float32),
        grid=(B,),
        in_specs=[
            pl.BlockSpec((None, L, D), lambda b: (b, 0, 0)),
            pl.BlockSpec((1, D), lambda b: (0, 0)),              # g1
            pl.BlockSpec((1, D), lambda b: (0, 0)),              # be1
            pl.BlockSpec((3 * heads, D, dh), lambda b: (0, 0, 0)),
            pl.BlockSpec((heads, dh, D), lambda b: (0, 0, 0)),
            pl.BlockSpec((1, D), lambda b: (0, 0)),              # bo
            pl.BlockSpec((1, D), lambda b: (0, 0)),              # g2
            pl.BlockSpec((1, D), lambda b: (0, 0)),              # be2
            pl.BlockSpec((D, mlp_dim), lambda b: (0, 0)),
            pl.BlockSpec((1, mlp_dim), lambda b: (0, 0)),
            pl.BlockSpec((mlp_dim, D), lambda b: (0, 0)),
            pl.BlockSpec((1, D), lambda b: (0, 0)),
        ],
        out_specs=pl.BlockSpec((None, L, D), lambda b: (b, 0, 0)),
        compiler_params=_PARALLEL,
    )(x, b2(lp["g1"]), b2(lp["be1"]), w_qkv_h, w_o_h, b2(lp["bo"]),
      b2(lp["g2"]), b2(lp["be2"]), lp["w1"], b2(lp["b1"]), lp["w2"], b2(lp["b2"]))


def _head_kernel(x_ref, g_ref, b_ref, w1_ref, b1_ref, w2_ref, b2_ref, o_ref, *, erf):
    """Fused: max over sequence -> LayerNorm -> Linear -> GELU -> Linear."""
    m = jnp.max(x_ref[...], axis=0, keepdims=True)               # (1, D)
    y = _ln(m, g_ref[...], b_ref[...])
    h = jnp.dot(y, w1_ref[...], preferred_element_type=jnp.float32) + b1_ref[...]
    h = _gelu(h, erf)
    o_ref[...] = jnp.dot(h, w2_ref[...], preferred_element_type=jnp.float32) + b2_ref[...]


def mlp_head_fused(x, hp, out_dim, erf_fn):
    B, L, D = x.shape
    mlp_dim = hp["wh1"].shape[1]
    kernel = functools.partial(_head_kernel, erf=erf_fn)
    return pl.pallas_call(
        kernel,
        out_shape=jax.ShapeDtypeStruct((B, 1, out_dim), jnp.float32),
        grid=(B,),
        in_specs=[
            pl.BlockSpec((None, L, D), lambda b: (b, 0, 0)),
            pl.BlockSpec((1, D), lambda b: (0, 0)),
            pl.BlockSpec((1, D), lambda b: (0, 0)),
            pl.BlockSpec((D, mlp_dim), lambda b: (0, 0)),
            pl.BlockSpec((1, mlp_dim), lambda b: (0, 0)),
            pl.BlockSpec((mlp_dim, out_dim), lambda b: (0, 0)),
            pl.BlockSpec((1, out_dim), lambda b: (0, 0)),
        ],
        out_specs=pl.BlockSpec((None, 1, out_dim), lambda b: (b, 0, 0)),
        compiler_params=_PARALLEL,
    )(x, hp["g"].reshape(1, D), hp["be"].reshape(1, D), hp["wh1"],
      hp["bh1"].reshape(1, -1), hp["wh2"], hp["bh2"].reshape(1, -1))


# ----------------------------------------------------------------------------
# P4DConv glue (pointnet2-style FPS / ball query) -- plain JAX
# ----------------------------------------------------------------------------

def fps(xyz, npoint):
    """Furthest point sampling; first index is 0 (pointnet2 semantics)."""
    N = xyz.shape[0]

    def body(i, carry):
        dists, last, idxs = carry
        d = jnp.sum(jnp.square(xyz - xyz[last]), axis=-1)
        dists = jnp.minimum(dists, d)
        nxt = jnp.argmax(dists).astype(jnp.int32)
        idxs = idxs.at[i].set(nxt)
        return dists, nxt, idxs

    idxs = jnp.zeros((npoint,), jnp.int32)
    dists = jnp.full((N,), 1e10, jnp.float32)
    _, _, idxs = jax.lax.fori_loop(1, npoint, body, (dists, jnp.int32(0), idxs))
    return idxs


def ball_query(radius, k, neighbor_xyz, anchor_xyz):
    """pointnet2 ball_query: first k indices with d^2 < r^2 (in index order),
    remaining slots filled with the first found index (0 if none)."""
    N = neighbor_xyz.shape[0]
    d2 = jnp.sum(
        jnp.square(anchor_xyz[:, None, :] - neighbor_xyz[None, :, :]), axis=-1)
    within = d2 < radius * radius
    order = jnp.where(within, jnp.arange(N)[None, :], N)
    cand = jnp.sort(order, axis=-1)[:, :k]
    first = cand[:, :1]
    first = jnp.where(first == N, 0, first)
    idx = jnp.where(cand == N, first, cand)
    return idx.astype(jnp.int32)


def build_tube_groups(xyzs, feats, cfg):
    """P4DConv grouping (mlp=[dim], op='+', temporal_padding=[1,1] replicate).

    Returns:
      grouped: (B, tks*k*Tout*Np, 4+Cin) rows ordered (frame, sample) slow,
               (t_out, anchor) fast so the kernel can max-reduce over
               contiguous, sublane-aligned chunks of Tout*Np rows.
      xyzt:    (B, Tout*Np, 4) anchor xyz + (t_out + 1) time coordinate.
    """
    B, T, N, _ = xyzs.shape
    r, k = cfg["radius"], cfg["nsamples"]
    ss = cfg["spatial_stride"]
    tks, tstr = cfg["temporal_kernel_size"], cfg["temporal_stride"]

    xyz_p = jnp.concatenate([xyzs[:, :1], xyzs, xyzs[:, -1:]], axis=1)
    feat_p = jnp.concatenate([feats[:, :1], feats, feats[:, -1:]], axis=1)
    Tp = T + 2
    Np = N // ss
    centers = list(range(tks // 2, Tp - tks // 2, tstr))

    anchors, groups = [], []
    for t in centers:
        frame = xyz_p[:, t]                                      # (B, N, 3)
        a_idx = jax.vmap(lambda x: fps(x, Np))(frame)            # (B, Np)
        anchor = jax.vmap(lambda f, ix: f[ix])(frame, a_idx)     # (B, Np, 3)
        per_frame = []
        for i in range(t - tks // 2, t + tks // 2 + 1):
            neigh = xyz_p[:, i]
            idx = jax.vmap(functools.partial(ball_query, r, k))(neigh, anchor)
            gxyz = jax.vmap(lambda n, ix: n[ix])(neigh, idx)     # (B, Np, k, 3)
            disp = jnp.concatenate(
                [gxyz - anchor[:, :, None, :],
                 jnp.full((B, Np, k, 1), float(i - t), jnp.float32)], axis=-1)
            gfeat = jax.vmap(lambda f, ix: f[ix])(feat_p[:, i], idx)  # (B, Np, k, Cin)
            per_frame.append(jnp.concatenate([disp, gfeat], axis=-1))
        groups.append(jnp.stack(per_frame, axis=1))              # (B, tks, Np, k, C)
        anchors.append(anchor)

    Tout = len(centers)
    g_all = jnp.stack(groups, axis=1)                            # (B, Tout, tks, Np, k, C)
    C = g_all.shape[-1]
    g_all = jnp.transpose(g_all, (0, 2, 4, 1, 3, 5))             # (B, tks, k, Tout, Np, C)
    grouped = g_all.reshape(B, tks * k * Tout * Np, C)

    new_xyz = jnp.stack(anchors, axis=1)                         # (B, Tout, Np, 3)
    tcoord = jnp.broadcast_to(
        (jnp.arange(Tout, dtype=jnp.float32) + 1.0)[None, :, None, None],
        (B, Tout, Np, 1))
    xyzt = jnp.concatenate([new_xyz, tcoord], axis=-1).reshape(B, Tout * Np, 4)
    return grouped, xyzt


# ----------------------------------------------------------------------------
# Full model forward
# ----------------------------------------------------------------------------

def encoder_forward(inp, p, cfg):
    xyzs = inp[..., :3]            # (B, T, N, 3)
    feats = inp[..., 2:3]          # z coordinate as the point feature
    grouped, xyzt = build_tube_groups(xyzs, feats, cfg)
    # conv_d + conv_f (both 1x1, bias-free) == single matmul over [disp, feat].
    wdf = jnp.concatenate([p["wd"], p["wf"]], axis=0)            # (4+Cin, dim)
    return encoder_embed(grouped, xyzt, wdf, p["wpos"], p["bpos"], cfg["emb_relu"])


def model_forward(params, input0, input1, cfg, erf_fn):
    e0 = encoder_forward(input0, params["enc0"], cfg)
    e1 = encoder_forward(input1, params["enc1"], cfg)
    x = jnp.concatenate([e0, e1], axis=1)                        # (B, L, dim)

    for lp in params["layers"]:
        x = transformer_layer(x, lp, cfg, erf_fn)

    out = mlp_head_fused(x, params["head"], cfg["output_dim"], erf_fn)  # (B, 1, out_dim)
    B = out.shape[0]
    return out.reshape(B, 1, cfg["output_dim"] // 3, 3)


# ----------------------------------------------------------------------------
# Deterministic parameter init (shapes follow the nn.Module __init__)
# ----------------------------------------------------------------------------

def init_params(key, cfg):
    dim, depth = cfg["dim"], cfg["depth"]
    heads, dh = cfg["heads"], cfg["dim_head"]
    mlp_dim, out_dim = cfg["mlp_dim"], cfg["output_dim"]
    feat_in = cfg["features"]
    inner = heads * dh

    keys = list(jax.random.split(key, 64))
    it = iter(keys)

    def nrm(shape, scale=0.2):
        return scale * jax.random.normal(next(it), shape, jnp.float32)

    def make_encoder():
        return dict(
            wd=nrm((4, dim), 0.3),          # P4DConv conv_d (Conv2d 4->dim, 1x1, no bias)
            wf=nrm((feat_in, dim), 0.3),    # P4DConv conv_f (Conv2d feat->dim, 1x1, no bias)
            wpos=nrm((4, dim), 0.3),        # pos_embedding Conv1d(4, dim, 1)
            bpos=nrm((dim,), 0.05),
        )

    layers = []
    for _ in range(depth):
        layers.append(dict(
            g1=jnp.ones((dim,), jnp.float32), be1=jnp.zeros((dim,), jnp.float32),
            wqkv=nrm((dim, 3 * inner)),                          # to_qkv (no bias)
            wo=nrm((inner, dim)), bo=nrm((dim,), 0.05),
            g2=jnp.ones((dim,), jnp.float32), be2=jnp.zeros((dim,), jnp.float32),
            w1=nrm((dim, mlp_dim)), b1=nrm((mlp_dim,), 0.05),
            w2=nrm((mlp_dim, dim)), b2=nrm((dim,), 0.05),
        ))

    head = dict(
        g=jnp.ones((dim,), jnp.float32), be=jnp.zeros((dim,), jnp.float32),
        wh1=nrm((dim, mlp_dim)), bh1=nrm((mlp_dim,), 0.05),
        wh2=nrm((mlp_dim, out_dim)), bh2=nrm((out_dim,), 0.05),
    )
    return dict(enc0=make_encoder(), enc1=make_encoder(), layers=layers, head=head)


# ----------------------------------------------------------------------------
# Main
# ----------------------------------------------------------------------------

if __name__ == "__main__":
    cfg = dict(
        radius=0.5, nsamples=8, spatial_stride=2,
        temporal_kernel_size=3, temporal_stride=2, emb_relu=True,
        dim=32, depth=2, heads=2, dim_head=16, mlp_dim=64,
        output_dim=12, features=1,
    )

    erf_fn = _select_kernel_erf()

    key = jax.random.PRNGKey(0)
    kp, k0, k1 = jax.random.split(key, 3)
    params = init_params(kp, cfg)

    B, T, N = 2, 3, 32  # (T + pad(2) - tks) % t_stride == 0
    input0 = jax.random.uniform(k0, (B, T, N, 3), jnp.float32)
    input1 = jax.random.uniform(k1, (B, T, N, 3), jnp.float32)

    fwd = jax.jit(functools.partial(model_forward, cfg=cfg, erf_fn=erf_fn))
    out = fwd(params, input0, input1)
    jax.block_until_ready(out)

    assert out.shape == (B, 1, cfg["output_dim"] // 3, 3), out.shape
    assert bool(jnp.all(jnp.isfinite(out)))
    print("KERNEL_OK")
</pallas_src>

<mosaic_0001>
module attributes {stable_mosaic.version = 11 : i64} {
  func.func @k(%arg0: memref<8x128xf32, #tpu.memory_space<vmem>>, %arg1: memref<8x128xf32, #tpu.memory_space<vmem>>) attributes {dimension_semantics = [], scalar_prefetch = 0 : i64, scratch_operands = 0 : i64, tpu.core_type = #tpu.core_type<tc>} {
    %c0 = arith.constant 0 : index
    %c0_0 = arith.constant 0 : index
    %0 = vector.load %arg0[%c0, %c0_0] : memref<8x128xf32, #tpu.memory_space<vmem>>, vector<8x128xf32>
    %1 = math.erf %0 : vector<8x128xf32>
    %c0_1 = arith.constant 0 : index
    %c0_2 = arith.constant 0 : index
    %2 = vector.load %arg1[%c0_1, %c0_2] : memref<8x128xf32, #tpu.memory_space<vmem>>, vector<8x128xf32>
    tpu.vector_store %arg1[%c0_1, %c0_2], %1 {strides = array<i32>} : memref<8x128xf32, #tpu.memory_space<vmem>>, vector<8x128xf32>,
    return
  }
}

module attributes {stable_mosaic.version = 11 : i64} {
  func.func @_encoder_kernel(%arg0: i32, %arg1: memref<1x768x5xf32, #tpu.memory_space<vmem>>, %arg2: memref<1x32x4xf32, #tpu.memory_space<vmem>>, %arg3: memref<5x32xf32, #tpu.memory_space<vmem>>, %arg4: memref<4x32xf32, #tpu.memory_space<vmem>>, %arg5: memref<1x32xf32, #tpu.memory_space<vmem>>, %arg6: memref<1x32x32xf32, #tpu.memory_space<vmem>>) attributes {dimension_semantics = [#tpu.dimension_semantics<parallel>], iteration_bounds = array<i64: 2>, scalar_prefetch = 0 : i64, scratch_operands = 0 : i64, tpu.core_type = #tpu.core_type<tc>, window_params = [{transform_indices = @transform_0, window_bounds = array<i64: 1, 768, 5>}, {transform_indices = @transform_1, window_bounds = array<i64: 1, 32, 4>}, {pipeline_mode = #tpu.pipeline_mode<synchronous>, transform_indices = @transform_2, window_bounds = array<i64: 5, 32>}, {pipeline_mode = #tpu.pipeline_mode<synchronous>, transform_indices = @transform_3, window_bounds = array<i64: 4, 32>}, {pipeline_mode = #tpu.pipeline_mode<synchronous>, transform_indices = @transform_4, window_bounds = array<i64: 1, 32>}, {transform_indices = @transform_5, window_bounds = array<i64: 1, 32, 32>}]} {
    %c0 = arith.constant 0 : index
    %c0_0 = arith.constant 0 : index
    %0 = vector.load %arg3[%c0, %c0_0] : memref<5x32xf32, #tpu.memory_space<vmem>>, vector<5x32xf32>
    %c0_1 = arith.constant 0 : index
    %c0_2 = arith.constant 0 : index
    %c0_3 = arith.constant 0 : index
    %1 = vector.load %arg1[%c0_1, %c0_2, %c0_3] : memref<1x768x5xf32, #tpu.memory_space<vmem>>, vector<1x32x5xf32>
    %2 = vector.shape_cast %1 : vector<1x32x5xf32> to vector<32x5xf32>
    %cst = arith.constant dense<0.000000e+00> : vector<32x32xf32>
    %3 = tpu.matmul %2, %0, %cst {dimension_numbers = #tpu.dot_dimension_numbers<[1], [0], [0], [1], [0, 0, 1, 1], [], []>} : vector<32x5xf32>, vector<5x32xf32>, vector<32x32xf32> -> vector<32x32xf32>
    %c0_4 = arith.constant 0 : index
    %c32 = arith.constant 32 : index
    %c0_5 = arith.constant 0 : index
    %4 = vector.load %arg1[%c0_4, %c32, %c0_5] : memref<1x768x5xf32, #tpu.memory_space<vmem>>, vector<1x32x5xf32>
    %5 = vector.shape_cast %4 : vector<1x32x5xf32> to vector<32x5xf32>
    %cst_6 = arith.constant dense<0.000000e+00> : vector<32x32xf32>
    %6 = tpu.matmul %5, %0, %cst_6 {dimension_numbers = #tpu.dot_dimension_numbers<[1], [0], [0], [1], [0, 0, 1, 1], [], []>} : vector<32x5xf32>, vector<5x32xf32>, vector<32x32xf32> -> vector<32x32xf32>
    %7 = arith.maximumf %3, %6 : vector<32x32xf32>
    %c0_7 = arith.constant 0 : index
    %c64 = arith.constant 64 : index
    %c0_8 = arith.constant 0 : index
    %8 = vector.load %arg1[%c0_7, %c64, %c0_8] : memref<1x768x5xf32, #tpu.memory_space<vmem>>, vector<1x32x5xf32>
    %9 = vector.shape_cast %8 : vector<1x32x5xf32> to vector<32x5xf32>
    %cst_9 = arith.constant dense<0.000000e+00> : vector<32x32xf32>
    %10 = tpu.matmul %9, %0, %cst_9 {dimension_numbers = #tpu.dot_dimension_numbers<[1], [0], [0], [1], [0, 0, 1, 1], [], []>} : vector<32x5xf32>, vector<5x32xf32>, vector<32x32xf32> -> vector<32x32xf32>
    %11 = arith.maximumf %7, %10 : vector<32x32xf32>
    %c0_10 = arith.constant 0 : index
    %c96 = arith.constant 96 : index
    %c0_11 = arith.constant 0 : index
    %12 = vector.load %arg1[%c0_10, %c96, %c0_11] : memref<1x768x5xf32, #tpu.memory_space<vmem>>, vector<1x32x5xf32>
    %13 = vector.shape_cast %12 : vector<1x32x5xf32> to vector<32x5xf32>
    %cst_12 = arith.constant dense<0.000000e+00> : vector<32x32xf32>
    %14 = tpu.matmul %13, %0, %cst_12 {dimension_numbers = #tpu.dot_dimension_numbers<[1], [0], [0], [1], [0, 0, 1, 1], [], []>} : vector<32x5xf32>, vector<5x32xf32>, vector<32x32xf32> -> vector<32x32xf32>
    %15 = arith.maximumf %11, %14 : vector<32x32xf32>
    %c0_13 = arith.constant 0 : index
    %c128 = arith.constant 128 : index
    %c0_14 = arith.constant 0 : index
    %16 = vector.load %arg1[%c0_13, %c128, %c0_14] : memref<1x768x5xf32, #tpu.memory_space<vmem>>, vector<1x32x5xf32>
    %17 = vector.shape_cast %16 : vector<1x32x5xf32> to vector<32x5xf32>
    %cst_15 = arith.constant dense<0.000000e+00> : vector<32x32xf32>
    %18 = tpu.matmul %17, %0, %cst_15 {dimension_numbers = #tpu.dot_dimension_numbers<[1], [0], [0], [1], [0, 0, 1, 1], [], []>} : vector<32x5xf32>, vector<5x32xf32>, vector<32x32xf32> -> vector<32x32xf32>
    %19 = arith.maximumf %15, %18 : vector<32x32xf32>
    %c0_16 = arith.constant 0 : index
    %c160 = arith.constant 160 : index
    %c0_17 = arith.constant 0 : index
    %20 = vector.load %arg1[%c0_16, %c160, %c0_17] : memref<1x768x5xf32, #tpu.memory_space<vmem>>, vector<1x32x5xf32>
    %21 = vector.shape_cast %20 : vector<1x32x5xf32> to vector<32x5xf32>
    %cst_18 = arith.constant dense<0.000000e+00> : vector<32x32xf32>
    %22 = tpu.matmul %21, %0, %cst_18 {dimension_numbers = #tpu.dot_dimension_numbers<[1], [0], [0], [1], [0, 0, 1, 1], [], []>} : vector<32x5xf32>, vector<5x32xf32>, vector<32x32xf32> -> vector<32x32xf32>
    %23 = arith.maximumf %19, %22 : vector<32x32xf32>
    %c0_19 = arith.constant 0 : index
    %c192 = arith.constant 192 : index
    %c0_20 = arith.constant 0 : index
    %24 = vector.load %arg1[%c0_19, %c192, %c0_20] : memref<1x768x5xf32, #tpu.memory_space<vmem>>, vector<1x32x5xf32>
    %25 = vector.shape_cast %24 : vector<1x32x5xf32> to vector<32x5xf32>
    %cst_21 = arith.constant dense<0.000000e+00> : vector<32x32xf32>
    %26 = tpu.matmul %25, %0, %cst_21 {dimension_numbers = #tpu.dot_dimension_numbers<[1], [0], [0], [1], [0, 0, 1, 1], [], []>} : vector<32x5xf32>, vector<5x32xf32>, vector<32x32xf32> -> vector<32x32xf32>
    %27 = arith.maximumf %23, %26 : vector<32x32xf32>
    %c0_22 = arith.constant 0 : index
    %c224 = arith.constant 224 : index
    %c0_23 = arith.constant 0 : index
    %28 = vector.load %arg1[%c0_22, %c224, %c0_23] : memref<1x768x5xf32, #tpu.memory_space<vmem>>, vector<1x32x5xf32>
    %29 = vector.shape_cast %28 : vector<1x32x5xf32> to vector<32x5xf32>
    %cst_24 = arith.constant dense<0.000000e+00> : vector<32x32xf32>
    %30 = tpu.matmul %29, %0, %cst_24 {dimension_numbers = #tpu.dot_dimension_numbers<[1], [0], [0], [1], [0, 0, 1, 1], [], []>} : vector<32x5xf32>, vector<5x32xf32>, vector<32x32xf32> -> vector<32x32xf32>
    %31 = arith.maximumf %27, %30 : vector<32x32xf32>
    %c0_25 = arith.constant 0 : index
    %c256 = arith.constant 256 : index
    %c0_26 = arith.constant 0 : index
    %32 = vector.load %arg1[%c0_25, %c256, %c0_26] : memref<1x768x5xf32, #tpu.memory_space<vmem>>, vector<1x32x5xf32>
    %33 = vector.shape_cast %32 : vector<1x32x5xf32> to vector<32x5xf32>
    %cst_27 = arith.constant dense<0.000000e+00> : vector<32x32xf32>
    %34 = tpu.matmul %33, %0, %cst_27 {dimension_numbers = #tpu.dot_dimension_numbers<[1], [0], [0], [1], [0, 0, 1, 1], [], []>} : vector<32x5xf32>, vector<5x32xf32>, vector<32x32xf32> -> vector<32x32xf32>
    %35 = arith.maximumf %31, %34 : vector<32x32xf32>
    %c0_28 = arith.constant 0 : index
    %c288 = arith.constant 288 : index
    %c0_29 = arith.constant 0 : index
    %36 = vector.load %arg1[%c0_28, %c288, %c0_29] : memref<1x768x5xf32, #tpu.memory_space<vmem>>, vector<1x32x5xf32>
    %37 = vector.shape_cast %36 : vector<1x32x5xf32> to vector<32x5xf32>
    %cst_30 = arith.constant dense<0.000000e+00> : vector<32x32xf32>
    %38 = tpu.matmul %37, %0, %cst_30 {dimension_numbers = #tpu.dot_dimension_numbers<[1], [0], [0], [1], [0, 0, 1, 1], [], []>} : vector<32x5xf32>, vector<5x32xf32>, vector<32x32xf32> -> vector<32x32xf32>
    %39 = arith.maximumf %35, %38 : vector<32x32xf32>
    %c0_31 = arith.constant 0 : index
    %c320 = arith.constant 320 : index
    %c0_32 = arith.constant 0 : index
    %40 = vector.load %arg1[%c0_31, %c320, %c0_32] : memref<1x768x5xf32, #tpu.memory_space<vmem>>, vector<1x32x5xf32>
    %41 = vector.shape_cast %40 : vector<1x32x5xf32> to vector<32x5xf32>
    %cst_33 = arith.constant dense<0.000000e+00> : vector<32x32xf32>
    %42 = tpu.matmul %41, %0, %cst_33 {dimension_numbers = #tpu.dot_dimension_numbers<[1], [0], [0], [1], [0, 0, 1, 1], [], []>} : vector<32x5xf32>, vector<5x32xf32>, vector<32x32xf32> -> vector<32x32xf32>
    %43 = arith.maximumf %39, %42 : vector<32x32xf32>
    %c0_34 = arith.constant 0 : index
    %c352 = arith.constant 352 : index
    %c0_35 = arith.constant 0 : index
    %44 = vector.load %arg1[%c0_34, %c352, %c0_35] : memref<1x768x5xf32, #tpu.memory_space<vmem>>, vector<1x32x5xf32>
    %45 = vector.shape_cast %44 : vector<1x32x5xf32> to vector<32x5xf32>
    %cst_36 = arith.constant dense<0.000000e+00> : vector<32x32xf32>
    %46 = tpu.matmul %45, %0, %cst_36 {dimension_numbers = #tpu.dot_dimension_numbers<[1], [0], [0], [1], [0, 0, 1, 1], [], []>} : vector<32x5xf32>, vector<5x32xf32>, vector<32x32xf32> -> vector<32x32xf32>
    %47 = arith.maximumf %43, %46 : vector<32x32xf32>
    %c0_37 = arith.constant 0 : index
    %c384 = arith.constant 384 : index
    %c0_38 = arith.constant 0 : index
    %48 = vector.load %arg1[%c0_37, %c384, %c0_38] : memref<1x768x5xf32, #tpu.memory_space<vmem>>, vector<1x32x5xf32>
    %49 = vector.shape_cast %48 : vector<1x32x5xf32> to vector<32x5xf32>
    %cst_39 = arith.constant dense<0.000000e+00> : vector<32x32xf32>
    %50 = tpu.matmul %49, %0, %cst_39 {dimension_numbers = #tpu.dot_dimension_numbers<[1], [0], [0], [1], [0, 0, 1, 1], [], []>} : vector<32x5xf32>, vector<5x32xf32>, vector<32x32xf32> -> vector<32x32xf32>
    %51 = arith.maximumf %47, %50 : vector<32x32xf32>
    %c0_40 = arith.constant 0 : index
    %c416 = arith.constant 416 : index
    %c0_41 = arith.constant 0 : index
    %52 = vector.load %arg1[%c0_40, %c416, %c0_41] : memref<1x768x5xf32, #tpu.memory_space<vmem>>, vector<1x32x5xf32>
    %53 = vector.shape_cast %52 : vector<1x32x5xf32> to vector<32x5xf32>
    %cst_42 = arith.constant dense<0.000000e+00> : vector<32x32xf32>
    %54 = tpu.matmul %53, %0, %cst_42 {dimension_numbers = #tpu.dot_dimension_numbers<[1], [0], [0], [1], [0, 0, 1, 1], [], []>} : vector<32x5xf32>, vector<5x32xf32>, vector<32x32xf32> -> vector<32x32xf32>
    %55 = arith.maximumf %51, %54 : vector<32x32xf32>
    %c0_43 = arith.constant 0 : index
    %c448 = arith.constant 448 : index
    %c0_44 = arith.constant 0 : index
    %56 = vector.load %arg1[%c0_43, %c448, %c0_44] : memref<1x768x5xf32, #tpu.memory_space<vmem>>, vector<1x32x5xf32>
    %57 = vector.shape_cast %56 : vector<1x32x5xf32> to vector<32x5xf32>
    %cst_45 = arith.constant dense<0.000000e+00> : vector<32x32xf32>
    %58 = tpu.matmul %57, %0, %cst_45 {dimension_numbers = #tpu.dot_dimension_numbers<[1], [0], [0], [1], [0, 0, 1, 1], [], []>} : vector<32x5xf32>, vector<5x32xf32>, vector<32x32xf32> -> vector<32x32xf32>
    %59 = arith.maximumf %55, %58 : vector<32x32xf32>
    %c0_46 = arith.constant 0 : index
    %c480 = arith.constant 480 : index
    %c0_47 = arith.constant 0 : index
    %60 = vector.load %arg1[%c0_46, %c480, %c0_47] : memref<1x768x5xf32, #tpu.memory_space<vmem>>, vector<1x32x5xf32>
    %61 = vector.shape_cast %60 : vector<1x32x5xf32> to vector<32x5xf32>
    %cst_48 = arith.constant dense<0.000000e+00> : vector<32x32xf32>
    %62 = tpu.matmul %61, %0, %cst_48 {dimension_numbers = #tpu.dot_dimension_numbers<[1], [0], [0], [1], [0, 0, 1, 1], [], []>} : vector<32x5xf32>, vector<5x32xf32>, vector<32x32xf32> -> vector<32x32xf32>
    %63 = arith.maximumf %59, %62 : vector<32x32xf32>
    %c0_49 = arith.constant 0 : index
    %c512 = arith.constant 512 : index
    %c0_50 = arith.constant 0 : index
    %64 = vector.load %arg1[%c0_49, %c512, %c0_50] : memref<1x768x5xf32, #tpu.memory_space<vmem>>, vector<1x32x5xf32>
    %65 = vector.shape_cast %64 : vector<1x32x5xf32> to vector<32x5xf32>
    %cst_51 = arith.constant dense<0.000000e+00> : vector<32x32xf32>
    %66 = tpu.matmul %65, %0, %cst_51 {dimension_numbers = #tpu.dot_dimension_numbers<[1], [0], [0], [1], [0, 0, 1, 1], [], []>} : vector<32x5xf32>, vector<5x32xf32>, vector<32x32xf32> -> vector<32x32xf32>
    %67 = arith.maximumf %63, %66 : vector<32x32xf32>
    %c0_52 = arith.constant 0 : index
    %c544 = arith.constant 544 : index
    %c0_53 = arith.constant 0 : index
    %68 = vector.load %arg1[%c0_52, %c544, %c0_53] : memref<1x768x5xf32, #tpu.memory_space<vmem>>, vector<1x32x5xf32>
    %69 = vector.shape_cast %68 : vector<1x32x5xf32> to vector<32x5xf32>
    %cst_54 = arith.constant dense<0.000000e+00> : vector<32x32xf32>
    %70 = tpu.matmul %69, %0, %cst_54 {dimension_numbers = #tpu.dot_dimension_numbers<[1], [0], [0], [1], [0, 0, 1, 1], [], []>} : vector<32x5xf32>, vector<5x32xf32>, vector<32x32xf32> -> vector<32x32xf32>
    %71 = arith.maximumf %67, %70 : vector<32x32xf32>
    %c0_55 = arith.constant 0 : index
    %c576 = arith.constant 576 : index
    %c0_56 = arith.constant 0 : index
    %72 = vector.load %arg1[%c0_55, %c576, %c0_56] : memref<1x768x5xf32, #tpu.memory_space<vmem>>, vector<1x32x5xf32>
    %73 = vector.shape_cast %72 : vector<1x32x5xf32> to vector<32x5xf32>
    %cst_57 = arith.constant dense<0.000000e+00> : vector<32x32xf32>
    %74 = tpu.matmul %73, %0, %cst_57 {dimension_numbers = #tpu.dot_dimension_numbers<[1], [0], [0], [1], [0, 0, 1, 1], [], []>} : vector<32x5xf32>, vector<5x32xf32>, vector<32x32xf32> -> vector<32x32xf32>
    %75 = arith.maximumf %71, %74 : vector<32x32xf32>
    %c0_58 = arith.constant 0 : index
    %c608 = arith.constant 608 : index
    %c0_59 = arith.constant 0 : index
    %76 = vector.load %arg1[%c0_58, %c608, %c0_59] : memref<1x768x5xf32, #tpu.memory_space<vmem>>, vector<1x32x5xf32>
    %77 = vector.shape_cast %76 : vector<1x32x5xf32> to vector<32x5xf32>
    %cst_60 = arith.constant dense<0.000000e+00> : vector<32x32xf32>
    %78 = tpu.matmul %77, %0, %cst_60 {dimension_numbers = #tpu.dot_dimension_numbers<[1], [0], [0], [1], [0, 0, 1, 1], [], []>} : vector<32x5xf32>, vector<5x32xf32>, vector<32x32xf32> -> vector<32x32xf32>
    %79 = arith.maximumf %75, %78 : vector<32x32xf32>
    %c0_61 = arith.constant 0 : index
    %c640 = arith.constant 640 : index
    %c0_62 = arith.constant 0 : index
    %80 = vector.load %arg1[%c0_61, %c640, %c0_62] : memref<1x768x5xf32, #tpu.memory_space<vmem>>, vector<1x32x5xf32>
    %81 = vector.shape_cast %80 : vector<1x32x5xf32> to vector<32x5xf32>
    %cst_63 = arith.constant dense<0.000000e+00> : vector<32x32xf32>
    %82 = tpu.matmul %81, %0, %cst_63 {dimension_numbers = #tpu.dot_dimension_numbers<[1], [0], [0], [1], [0, 0, 1, 1], [], []>} : vector<32x5xf32>, vector<5x32xf32>, vector<32x32xf32> -> vector<32x32xf32>
    %83 = arith.maximumf %79, %82 : vector<32x32xf32>
    %c0_64 = arith.constant 0 : index
    %c672 = arith.constant 672 : index
    %c0_65 = arith.constant 0 : index
    %84 = vector.load %arg1[%c0_64, %c672, %c0_65] : memref<1x768x5xf32, #tpu.memory_space<vmem>>, vector<1x32x5xf32>
    %85 = vector.shape_cast %84 : vector<1x32x5xf32> to vector<32x5xf32>
    %cst_66 = arith.constant dense<0.000000e+00> : vector<32x32xf32>
    %86 = tpu.matmul %85, %0, %cst_66 {dimension_numbers = #tpu.dot_dimension_numbers<[1], [0], [0], [1], [0, 0, 1, 1], [], []>} : vector<32x5xf32>, vector<5x32xf32>, vector<32x32xf32> -> vector<32x32xf32>
    %87 = arith.maximumf %83, %86 : vector<32x32xf32>
    %c0_67 = arith.constant 0 : index
    %c704 = arith.constant 704 : index
    %c0_68 = arith.constant 0 : index
    %88 = vector.load %arg1[%c0_67, %c704, %c0_68] : memref<1x768x5xf32, #tpu.memory_space<vmem>>, vector<1x32x5xf32>
    %89 = vector.shape_cast %88 : vector<1x32x5xf32> to vector<32x5xf32>
    %cst_69 = arith.constant dense<0.000000e+00> : vector<32x32xf32>
    %90 = tpu.matmul %89, %0, %cst_69 {dimension_numbers = #tpu.dot_dimension_numbers<[1], [0], [0], [1], [0, 0, 1, 1], [], []>} : vector<32x5xf32>, vector<5x32xf32>, vector<32x32xf32> -> vector<32x32xf32>
    %91 = arith.maximumf %87, %90 : vector<32x32xf32>
    %c0_70 = arith.constant 0 : index
    %c736 = arith.constant 736 : index
    %c0_71 = arith.constant 0 : index
    %92 = vector.load %arg1[%c0_70, %c736, %c0_71] : memref<1x768x5xf32, #tpu.memory_space<vmem>>, vector<1x32x5xf32>
    %93 = vector.shape_cast %92 : vector<1x32x5xf32> to vector<32x5xf32>
    %cst_72 = arith.constant dense<0.000000e+00> : vector<32x32xf32>
    %94 = tpu.matmul %93, %0, %cst_72 {dimension_numbers = #tpu.dot_dimension_numbers<[1], [0], [0], [1], [0, 0, 1, 1], [], []>} : vector<32x5xf32>, vector<5x32xf32>, vector<32x32xf32> -> vector<32x32xf32>
    %95 = arith.maximumf %91, %94 : vector<32x32xf32>
    %c0_73 = arith.constant 0 : index
    %c0_74 = arith.constant 0 : index
    %c0_75 = arith.constant 0 : index
    %96 = vector.load %arg2[%c0_73, %c0_74, %c0_75] : memref<1x32x4xf32, #tpu.memory_space<vmem>>, vector<1x32x4xf32>
    %97 = vector.shape_cast %96 : vector<1x32x4xf32> to vector<32x4xf32>
    %c0_76 = arith.constant 0 : index
    %c0_77 = arith.constant 0 : index
    %98 = vector.load %arg4[%c0_76, %c0_77] : memref<4x32xf32, #tpu.memory_space<vmem>>, vector<4x32xf32>
    %cst_78 = arith.constant dense<0.000000e+00> : vector<32x32xf32>
    %99 = tpu.matmul %97, %98, %cst_78 {dimension_numbers = #tpu.dot_dimension_numbers<[1], [0], [0], [1], [0, 0, 1, 1], [], []>} : vector<32x4xf32>, vector<4x32xf32>, vector<32x32xf32> -> vector<32x32xf32>
    %c0_79 = arith.constant 0 : index
    %c0_80 = arith.constant 0 : index
    %100 = vector.load %arg5[%c0_79, %c0_80] : memref<1x32xf32, #tpu.memory_space<vmem>>, vector<1x32xf32>
    %101 = vector.broadcast %100 : vector<1x32xf32> to vector<32x32xf32>
    %102 = arith.addf %99, %101 : vector<32x32xf32>
    %103 = arith.addf %102, %95 : vector<32x32xf32>
    %cst_81 = arith.constant 0.000000e+00 : f32
    %104 = vector.broadcast %cst_81 : f32 to vector<32x32xf32>
    %105 = arith.maximumf %103, %104 : vector<32x32xf32>
    %c0_82 = arith.constant 0 : index
    %c0_83 = arith.constant 0 : index
    %c0_84 = arith.constant 0 : index
    %106 = vector.load %arg6[%c0_82, %c0_83, %c0_84] : memref<1x32x32xf32, #tpu.memory_space<vmem>>, vector<1x32x32xf32>
    %107 = vector.shape_cast %106 : vector<1x32x32xf32> to vector<32x32xf32>
    %108 = vector.shape_cast %105 : vector<32x32xf32> to vector<1x32x32xf32>
    tpu.vector_store %arg6[%c0_82, %c0_83, %c0_84], %108 {strides = array<i32>} : memref<1x32x32xf32, #tpu.memory_space<vmem>>, vector<1x32x32xf32>,
    return
  }
  func.func @transform_0(%arg0: i32) -> (i32, i32, i32) {
    %c0_i32 = arith.constant 0 : i32
    %c0_i32_0 = arith.constant 0 : i32
    %c0_i32_1 = arith.constant 0 : i32
    return %arg0, %c0_i32, %c0_i32_0 : i32, i32, i32
  }
  func.func @transform_1(%arg0: i32) -> (i32, i32, i32) {
    %c0_i32 = arith.constant 0 : i32
    %c0_i32_0 = arith.constant 0 : i32
    %c0_i32_1 = arith.constant 0 : i32
    return %arg0, %c0_i32, %c0_i32_0 : i32, i32, i32
  }
  func.func @transform_2(%arg0: i32) -> (i32, i32) {
    %c0_i32 = arith.constant 0 : i32
    %c0_i32_0 = arith.constant 0 : i32
    %c0_i32_1 = arith.constant 0 : i32
    return %c0_i32, %c0_i32_0 : i32, i32
  }
  func.func @transform_3(%arg0: i32) -> (i32, i32) {
    %c0_i32 = arith.constant 0 : i32
    %c0_i32_0 = arith.constant 0 : i32
    %c0_i32_1 = arith.constant 0 : i32
    return %c0_i32, %c0_i32_0 : i32, i32
  }
  func.func @transform_4(%arg0: i32) -> (i32, i32) {
    %c0_i32 = arith.constant 0 : i32
    %c0_i32_0 = arith.constant 0 : i32
    %c0_i32_1 = arith.constant 0 : i32
    return %c0_i32, %c0_i32_0 : i32, i32
  }
  func.func @transform_5(%arg0: i32) -> (i32, i32, i32) {
    %c0_i32 = arith.constant 0 : i32
    %c0_i32_0 = arith.constant 0 : i32
    %c0_i32_1 = arith.constant 0 : i32
    return %arg0, %c0_i32, %c0_i32_0 : i32, i32, i32
  }
}

module attributes {stable_mosaic.version = 11 : i64} {
  func.func @_head_kernel(%arg0: i32, %arg1: memref<1x64x32xf32, #tpu.memory_space<vmem>>, %arg2: memref<1x32xf32, #tpu.memory_space<vmem>>, %arg3: memref<1x32xf32, #tpu.memory_space<vmem>>, %arg4: memref<32x64xf32, #tpu.memory_space<vmem>>, %arg5: memref<1x64xf32, #tpu.memory_space<vmem>>, %arg6: memref<64x12xf32, #tpu.memory_space<vmem>>, %arg7: memref<1x12xf32, #tpu.memory_space<vmem>>, %arg8: memref<1x1x12xf32, #tpu.memory_space<vmem>>) attributes {dimension_semantics = [#tpu.dimension_semantics<parallel>], iteration_bounds = array<i64: 2>, scalar_prefetch = 0 : i64, scratch_operands = 0 : i64, tpu.core_type = #tpu.core_type<tc>, window_params = [{transform_indices = @transform_0, window_bounds = array<i64: 1, 64, 32>}, {pipeline_mode = #tpu.pipeline_mode<synchronous>, transform_indices = @transform_1, window_bounds = array<i64: 1, 32>}, {pipeline_mode = #tpu.pipeline_mode<synchronous>, transform_indices = @transform_2, window_bounds = array<i64: 1, 32>}, {pipeline_mode = #tpu.pipeline_mode<synchronous>, transform_indices = @transform_3, window_bounds = array<i64: 32, 64>}, {pipeline_mode = #tpu.pipeline_mode<synchronous>, transform_indices = @transform_4, window_bounds = array<i64: 1, 64>}, {pipeline_mode = #tpu.pipeline_mode<synchronous>, transform_indices = @transform_5, window_bounds = array<i64: 64, 12>}, {pipeline_mode = #tpu.pipeline_mode<synchronous>, transform_indices = @transform_6, window_bounds = array<i64: 1, 12>}, {transform_indices = @transform_7, window_bounds = array<i64: 1, 1, 12>}]} {
    %c0 = arith.constant 0 : index
    %c0_0 = arith.constant 0 : index
    %c0_1 = arith.constant 0 : index
    %0 = vector.load %arg1[%c0, %c0_0, %c0_1] : memref<1x64x32xf32, #tpu.memory_space<vmem>>, vector<1x64x32xf32>
    %1 = vector.shape_cast %0 : vector<1x64x32xf32> to vector<64x32xf32>
    %cst = arith.constant dense<0xFF800000> : vector<32xf32>
    %2 = vector.multi_reduction <maximumf>, %1, %cst [0] : vector<64x32xf32> to vector<32xf32>
    %3 = vector.shape_cast %2 : vector<32xf32> to vector<1x32xf32>
    %c0_2 = arith.constant 0 : index
    %c0_3 = arith.constant 0 : index
    %4 = vector.load %arg2[%c0_2, %c0_3] : memref<1x32xf32, #tpu.memory_space<vmem>>, vector<1x32xf32>
    %c0_4 = arith.constant 0 : index
    %c0_5 = arith.constant 0 : index
    %5 = vector.load %arg3[%c0_4, %c0_5] : memref<1x32xf32, #tpu.memory_space<vmem>>, vector<1x32xf32>
    %cst_6 = arith.constant dense<0.000000e+00> : vector<1xf32>
    %6 = vector.multi_reduction <add>, %3, %cst_6 [1] : vector<1x32xf32> to vector<1xf32>
    %7 = vector.shape_cast %6 : vector<1xf32> to vector<1x1xf32>
    %cst_7 = arith.constant 3.200000e+01 : f32
    %8 = vector.broadcast %cst_7 : f32 to vector<1x1xf32>
    %9 = arith.divf %7, %8 : vector<1x1xf32>
    %10 = vector.broadcast %9 : vector<1x1xf32> to vector<1x32xf32>
    %11 = arith.subf %3, %10 : vector<1x32xf32>
    %12 = arith.mulf %11, %11 : vector<1x32xf32>
    %cst_8 = arith.constant dense<0.000000e+00> : vector<1xf32>
    %13 = vector.multi_reduction <add>, %12, %cst_8 [1] : vector<1x32xf32> to vector<1xf32>
    %14 = vector.shape_cast %13 : vector<1xf32> to vector<1x1xf32>
    %cst_9 = arith.constant 3.200000e+01 : f32
    %15 = vector.broadcast %cst_9 : f32 to vector<1x1xf32>
    %16 = arith.divf %14, %15 : vector<1x1xf32>
    %17 = vector.broadcast %9 : vector<1x1xf32> to vector<1x32xf32>
    %18 = arith.subf %3, %17 : vector<1x32xf32>
    %cst_10 = arith.constant 9.99999974E-6 : f32
    %19 = vector.broadcast %cst_10 : f32 to vector<1x1xf32>
    %20 = arith.addf %16, %19 : vector<1x1xf32>
    %21 = math.rsqrt %20 : vector<1x1xf32>
    %22 = vector.broadcast %21 : vector<1x1xf32> to vector<1x32xf32>
    %23 = arith.mulf %18, %22 : vector<1x32xf32>
    %24 = arith.mulf %23, %4 : vector<1x32xf32>
    %25 = arith.addf %24, %5 : vector<1x32xf32>
    %c0_11 = arith.constant 0 : index
    %c0_12 = arith.constant 0 : index
    %26 = vector.load %arg4[%c0_11, %c0_12] : memref<32x64xf32, #tpu.memory_space<vmem>>, vector<32x64xf32>
    %cst_13 = arith.constant dense<0.000000e+00> : vector<1x64xf32>
    %27 = tpu.matmul %25, %26, %cst_13 {dimension_numbers = #tpu.dot_dimension_numbers<[1], [0], [0], [1], [0, 0, 1, 1], [], []>} : vector<1x32xf32>, vector<32x64xf32>, vector<1x64xf32> -> vector<1x64xf32>
    %c0_14 = arith.constant 0 : index
    %c0_15 = arith.constant 0 : index
    %28 = vector.load %arg5[%c0_14, %c0_15] : memref<1x64xf32, #tpu.memory_space<vmem>>, vector<1x64xf32>
    %29 = arith.addf %27, %28 : vector<1x64xf32>
    %cst_16 = arith.constant 5.000000e-01 : f32
    %30 = vector.broadcast %cst_16 : f32 to vector<1x64xf32>
    %31 = arith.mulf %30, %29 : vector<1x64xf32>
    %cst_17 = arith.constant 0.707106769 : f32
    %32 = vector.broadcast %cst_17 : f32 to vector<1x64xf32>
    %33 = arith.mulf %29, %32 : vector<1x64xf32>
    %cst_18 = arith.constant 0.000000e+00 : f32
    %34 = vector.broadcast %cst_18 : f32 to vector<1x64xf32>
    %35 = arith.cmpf oge, %33, %34 : vector<1x64xf32>
    %cst_19 = arith.constant 1.000000e+00 : f32
    %cst_20 = arith.constant -1.000000e+00 : f32
    %36 = vector.broadcast %cst_19 : f32 to vector<1x64xf32>
    %37 = vector.broadcast %cst_20 : f32 to vector<1x64xf32>
    %38 = arith.select %35, %36, %37 : vector<1x64xi1>, vector<1x64xf32>
    %39 = math.absf %33 : vector<1x64xf32>
    %cst_21 = arith.constant 0.327591091 : f32
    %40 = vector.broadcast %cst_21 : f32 to vector<1x64xf32>
    %41 = arith.mulf %40, %39 : vector<1x64xf32>
    %cst_22 = arith.constant 1.000000e+00 : f32
    %42 = vector.broadcast %cst_22 : f32 to vector<1x64xf32>
    %43 = arith.addf %42, %41 : vector<1x64xf32>
    %cst_23 = arith.constant 1.000000e+00 : f32
    %44 = vector.broadcast %cst_23 : f32 to vector<1x64xf32>
    %45 = arith.divf %44, %43 : vector<1x64xf32>
    %cst_24 = arith.constant 1.06140542 : f32
    %46 = vector.broadcast %cst_24 : f32 to vector<1x64xf32>
    %47 = arith.mulf %46, %45 : vector<1x64xf32>
    %cst_25 = arith.constant -1.45315206 : f32
    %48 = vector.broadcast %cst_25 : f32 to vector<1x64xf32>
    %49 = arith.addf %47, %48 : vector<1x64xf32>
    %50 = arith.mulf %49, %45 : vector<1x64xf32>
    %cst_26 = arith.constant 1.42141378 : f32
    %51 = vector.broadcast %cst_26 : f32 to vector<1x64xf32>
    %52 = arith.addf %50, %51 : vector<1x64xf32>
    %53 = arith.mulf %52, %45 : vector<1x64xf32>
    %cst_27 = arith.constant -0.284496725 : f32
    %54 = vector.broadcast %cst_27 : f32 to vector<1x64xf32>
    %55 = arith.addf %53, %54 : vector<1x64xf32>
    %56 = arith.mulf %55, %45 : vector<1x64xf32>
    %cst_28 = arith.constant 0.254829586 : f32
    %57 = vector.broadcast %cst_28 : f32 to vector<1x64xf32>
    %58 = arith.addf %56, %57 : vector<1x64xf32>
    %59 = arith.mulf %58, %45 : vector<1x64xf32>
    %cst_29 = arith.constant 0.000000e+00 : f32
    %60 = vector.broadcast %cst_29 : f32 to vector<1x64xf32>
    %61 = arith.subf %60, %39 : vector<1x64xf32>
    %62 = arith.mulf %61, %39 : vector<1x64xf32>
    %63 = math.exp %62 : vector<1x64xf32>
    %64 = arith.mulf %59, %63 : vector<1x64xf32>
    %cst_30 = arith.constant 1.000000e+00 : f32
    %65 = vector.broadcast %cst_30 : f32 to vector<1x64xf32>
    %66 = arith.subf %65, %64 : vector<1x64xf32>
    %67 = arith.mulf %38, %66 : vector<1x64xf32>
    %cst_31 = arith.constant 1.000000e+00 : f32
    %68 = vector.broadcast %cst_31 : f32 to vector<1x64xf32>
    %69 = arith.addf %68, %67 : vector<1x64xf32>
    %70 = arith.mulf %31, %69 : vector<1x64xf32>
    %c0_32 = arith.constant 0 : index
    %c0_33 = arith.constant 0 : index
    %71 = vector.load %arg6[%c0_32, %c0_33] : memref<64x12xf32, #tpu.memory_space<vmem>>, vector<64x12xf32>
    %cst_34 = arith.constant dense<0.000000e+00> : vector<1x12xf32>
    %72 = tpu.matmul %70, %71, %cst_34 {dimension_numbers = #tpu.dot_dimension_numbers<[1], [0], [0], [1], [0, 0, 1, 1], [], []>} : vector<1x64xf32>, vector<64x12xf32>, vector<1x12xf32> -> vector<1x12xf32>
    %c0_35 = arith.constant 0 : index
    %c0_36 = arith.constant 0 : index
    %73 = vector.load %arg7[%c0_35, %c0_36] : memref<1x12xf32, #tpu.memory_space<vmem>>, vector<1x12xf32>
    %74 = arith.addf %72, %73 : vector<1x12xf32>
    %c0_37 = arith.constant 0 : index
    %c0_38 = arith.constant 0 : index
    %c0_39 = arith.constant 0 : index
    %75 = vector.load %arg8[%c0_37, %c0_38, %c0_39] : memref<1x1x12xf32, #tpu.memory_space<vmem>>, vector<1x1x12xf32>
    %76 = vector.shape_cast %75 : vector<1x1x12xf32> to vector<1x12xf32>
    %77 = vector.shape_cast %74 : vector<1x12xf32> to vector<1x1x12xf32>
    tpu.vector_store %arg8[%c0_37, %c0_38, %c0_39], %77 {strides = array<i32>} : memref<1x1x12xf32, #tpu.memory_space<vmem>>, vector<1x1x12xf32>,
    return
  }
  func.func @transform_0(%arg0: i32) -> (i32, i32, i32) {
    %c0_i32 = arith.constant 0 : i32
    %c0_i32_0 = arith.constant 0 : i32
    %c0_i32_1 = arith.constant 0 : i32
    return %arg0, %c0_i32, %c0_i32_0 : i32, i32, i32
  }
  func.func @transform_1(%arg0: i32) -> (i32, i32) {
    %c0_i32 = arith.constant 0 : i32
    %c0_i32_0 = arith.constant 0 : i32
    %c0_i32_1 = arith.constant 0 : i32
    return %c0_i32, %c0_i32_0 : i32, i32
  }
  func.func @transform_2(%arg0: i32) -> (i32, i32) {
    %c0_i32 = arith.constant 0 : i32
    %c0_i32_0 = arith.constant 0 : i32
    %c0_i32_1 = arith.constant 0 : i32
    return %c0_i32, %c0_i32_0 : i32, i32
  }
  func.func @transform_3(%arg0: i32) -> (i32, i32) {
    %c0_i32 = arith.constant 0 : i32
    %c0_i32_0 = arith.constant 0 : i32
    %c0_i32_1 = arith.constant 0 : i32
    return %c0_i32, %c0_i32_0 : i32, i32
  }
  func.func @transform_4(%arg0: i32) -> (i32, i32) {
    %c0_i32 = arith.constant 0 : i32
    %c0_i32_0 = arith.constant 0 : i32
    %c0_i32_1 = arith.constant 0 : i32
    return %c0_i32, %c0_i32_0 : i32, i32
  }
  func.func @transform_5(%arg0: i32) -> (i32, i32) {
    %c0_i32 = arith.constant 0 : i32
    %c0_i32_0 = arith.constant 0 : i32
    %c0_i32_1 = arith.constant 0 : i32
    return %c0_i32, %c0_i32_0 : i32, i32
  }
  func.func @transform_6(%arg0: i32) -> (i32, i32) {
    %c0_i32 = arith.constant 0 : i32
    %c0_i32_0 = arith.constant 0 : i32
    %c0_i32_1 = arith.constant 0 : i32
    return %c0_i32, %c0_i32_0 : i32, i32
  }
  func.func @transform_7(%arg0: i32) -> (i32, i32, i32) {
    %c0_i32 = arith.constant 0 : i32
    %c0_i32_0 = arith.constant 0 : i32
    %c0_i32_1 = arith.constant 0 : i32
    return %arg0, %c0_i32, %c0_i32_0 : i32, i32, i32
  }
}

module attributes {stable_mosaic.version = 11 : i64} {
  func.func @_layer_kernel(%arg0: i32, %arg1: memref<1x64x32xf32, #tpu.memory_space<vmem>>, %arg2: memref<1x32xf32, #tpu.memory_space<vmem>>, %arg3: memref<1x32xf32, #tpu.memory_space<vmem>>, %arg4: memref<6x32x16xf32, #tpu.memory_space<vmem>>, %arg5: memref<2x16x32xf32, #tpu.memory_space<vmem>>, %arg6: memref<1x32xf32, #tpu.memory_space<vmem>>, %arg7: memref<1x32xf32, #tpu.memory_space<vmem>>, %arg8: memref<1x32xf32, #tpu.memory_space<vmem>>, %arg9: memref<32x64xf32, #tpu.memory_space<vmem>>, %arg10: memref<1x64xf32, #tpu.memory_space<vmem>>, %arg11: memref<64x32xf32, #tpu.memory_space<vmem>>, %arg12: memref<1x32xf32, #tpu.memory_space<vmem>>, %arg13: memref<1x64x32xf32, #tpu.memory_space<vmem>>) attributes {dimension_semantics = [#tpu.dimension_semantics<parallel>], iteration_bounds = array<i64: 2>, scalar_prefetch = 0 : i64, scratch_operands = 0 : i64, tpu.core_type = #tpu.core_type<tc>, window_params = [{transform_indices = @transform_0, window_bounds = array<i64: 1, 64, 32>}, {pipeline_mode = #tpu.pipeline_mode<synchronous>, transform_indices = @transform_1, window_bounds = array<i64: 1, 32>}, {pipeline_mode = #tpu.pipeline_mode<synchronous>, transform_indices = @transform_2, window_bounds = array<i64: 1, 32>}, {pipeline_mode = #tpu.pipeline_mode<synchronous>, transform_indices = @transform_3, window_bounds = array<i64: 6, 32, 16>}, {pipeline_mode = #tpu.pipeline_mode<synchronous>, transform_indices = @transform_4, window_bounds = array<i64: 2, 16, 32>}, {pipeline_mode = #tpu.pipeline_mode<synchronous>, transform_indices = @transform_5, window_bounds = array<i64: 1, 32>}, {pipeline_mode = #tpu.pipeline_mode<synchronous>, transform_indices = @transform_6, window_bounds = array<i64: 1, 32>}, {pipeline_mode = #tpu.pipeline_mode<synchronous>, transform_indices = @transform_7, window_bounds = array<i64: 1, 32>}, {pipeline_mode = #tpu.pipeline_mode<synchronous>, transform_indices = @transform_8, window_bounds = array<i64: 32, 64>}, {pipeline_mode = #tpu.pipeline_mode<synchronous>, transform_indices = @transform_9, window_bounds = array<i64: 1, 64>}, {pipeline_mode = #tpu.pipeline_mode<synchronous>, transform_indices = @transform_10, window_bounds = array<i64: 64, 32>}, {pipeline_mode = #tpu.pipeline_mode<synchronous>, transform_indices = @transform_11, window_bounds = array<i64: 1, 32>}, {transform_indices = @transform_12, window_bounds = array<i64: 1, 64, 32>}]} {
    %c0 = arith.constant 0 : index
    %c0_0 = arith.constant 0 : index
    %c0_1 = arith.constant 0 : index
    %0 = vector.load %arg1[%c0, %c0_0, %c0_1] : memref<1x64x32xf32, #tpu.memory_space<vmem>>, vector<1x64x32xf32>
    %1 = vector.shape_cast %0 : vector<1x64x32xf32> to vector<64x32xf32>
    %c0_2 = arith.constant 0 : index
    %c0_3 = arith.constant 0 : index
    %2 = vector.load %arg2[%c0_2, %c0_3] : memref<1x32xf32, #tpu.memory_space<vmem>>, vector<1x32xf32>
    %c0_4 = arith.constant 0 : index
    %c0_5 = arith.constant 0 : index
    %3 = vector.load %arg3[%c0_4, %c0_5] : memref<1x32xf32, #tpu.memory_space<vmem>>, vector<1x32xf32>
    %cst = arith.constant dense<0.000000e+00> : vector<64xf32>
    %4 = vector.multi_reduction <add>, %1, %cst [1] : vector<64x32xf32> to vector<64xf32>
    %5 = vector.shape_cast %4 : vector<64xf32> to vector<64x1xf32>
    %cst_6 = arith.constant 3.200000e+01 : f32
    %6 = vector.broadcast %cst_6 : f32 to vector<64x1xf32>
    %7 = arith.divf %5, %6 : vector<64x1xf32>
    %8 = vector.broadcast %7 : vector<64x1xf32> to vector<64x32xf32>
    %9 = arith.subf %1, %8 : vector<64x32xf32>
    %10 = arith.mulf %9, %9 : vector<64x32xf32>
    %cst_7 = arith.constant dense<0.000000e+00> : vector<64xf32>
    %11 = vector.multi_reduction <add>, %10, %cst_7 [1] : vector<64x32xf32> to vector<64xf32>
    %12 = vector.shape_cast %11 : vector<64xf32> to vector<64x1xf32>
    %cst_8 = arith.constant 3.200000e+01 : f32
    %13 = vector.broadcast %cst_8 : f32 to vector<64x1xf32>
    %14 = arith.divf %12, %13 : vector<64x1xf32>
    %15 = vector.broadcast %7 : vector<64x1xf32> to vector<64x32xf32>
    %16 = arith.subf %1, %15 : vector<64x32xf32>
    %cst_9 = arith.constant 9.99999974E-6 : f32
    %17 = vector.broadcast %cst_9 : f32 to vector<64x1xf32>
    %18 = arith.addf %14, %17 : vector<64x1xf32>
    %19 = math.rsqrt %18 : vector<64x1xf32>
    %20 = vector.broadcast %19 : vector<64x1xf32> to vector<64x32xf32>
    %21 = arith.mulf %16, %20 : vector<64x32xf32>
    %22 = vector.broadcast %2 : vector<1x32xf32> to vector<64x32xf32>
    %23 = arith.mulf %21, %22 : vector<64x32xf32>
    %24 = vector.broadcast %3 : vector<1x32xf32> to vector<64x32xf32>
    %25 = arith.addf %23, %24 : vector<64x32xf32>
    %c0_10 = arith.constant 0 : index
    %c0_11 = arith.constant 0 : index
    %c0_12 = arith.constant 0 : index
    %26 = vector.load %arg4[%c0_10, %c0_11, %c0_12] : memref<6x32x16xf32, #tpu.memory_space<vmem>>, vector<1x32x16xf32>
    %27 = vector.shape_cast %26 : vector<1x32x16xf32> to vector<32x16xf32>
    %cst_13 = arith.constant dense<0.000000e+00> : vector<64x16xf32>
    %28 = tpu.matmul %25, %27, %cst_13 {dimension_numbers = #tpu.dot_dimension_numbers<[1], [0], [0], [1], [0, 0, 1, 1], [], []>} : vector<64x32xf32>, vector<32x16xf32>, vector<64x16xf32> -> vector<64x16xf32>
    %c2 = arith.constant 2 : index
    %c0_14 = arith.constant 0 : index
    %c0_15 = arith.constant 0 : index
    %29 = vector.load %arg4[%c2, %c0_14, %c0_15] : memref<6x32x16xf32, #tpu.memory_space<vmem>>, vector<1x32x16xf32>
    %30 = vector.shape_cast %29 : vector<1x32x16xf32> to vector<32x16xf32>
    %cst_16 = arith.constant dense<0.000000e+00> : vector<64x16xf32>
    %31 = tpu.matmul %25, %30, %cst_16 {dimension_numbers = #tpu.dot_dimension_numbers<[1], [0], [0], [1], [0, 0, 1, 1], [], []>} : vector<64x32xf32>, vector<32x16xf32>, vector<64x16xf32> -> vector<64x16xf32>
    %c4 = arith.constant 4 : index
    %c0_17 = arith.constant 0 : index
    %c0_18 = arith.constant 0 : index
    %32 = vector.load %arg4[%c4, %c0_17, %c0_18] : memref<6x32x16xf32, #tpu.memory_space<vmem>>, vector<1x32x16xf32>
    %33 = vector.shape_cast %32 : vector<1x32x16xf32> to vector<32x16xf32>
    %cst_19 = arith.constant dense<0.000000e+00> : vector<64x16xf32>
    %34 = tpu.matmul %25, %33, %cst_19 {dimension_numbers = #tpu.dot_dimension_numbers<[1], [0], [0], [1], [0, 0, 1, 1], [], []>} : vector<64x32xf32>, vector<32x16xf32>, vector<64x16xf32> -> vector<64x16xf32>
    %cst_20 = arith.constant dense<0.000000e+00> : vector<64x64xf32>
    %35 = tpu.matmul %28, %31, %cst_20 {dimension_numbers = #tpu.dot_dimension_numbers<[1], [1], [0], [0], [0, 0, 1, 0], [], []>} : vector<64x16xf32>, vector<64x16xf32>, vector<64x64xf32> -> vector<64x64xf32>
    %cst_21 = arith.constant 2.500000e-01 : f32
    %36 = vector.broadcast %cst_21 : f32 to vector<64x64xf32>
    %37 = arith.mulf %35, %36 : vector<64x64xf32>
    %cst_22 = arith.constant dense<0xFF800000> : vector<64xf32>
    %38 = vector.multi_reduction <maximumf>, %37, %cst_22 [1] : vector<64x64xf32> to vector<64xf32>
    %39 = vector.shape_cast %38 : vector<64xf32> to vector<64x1xf32>
    %40 = vector.broadcast %39 : vector<64x1xf32> to vector<64x64xf32>
    %41 = arith.subf %37, %40 : vector<64x64xf32>
    %42 = math.exp %41 : vector<64x64xf32>
    %cst_23 = arith.constant dense<0.000000e+00> : vector<64xf32>
    %43 = vector.multi_reduction <add>, %42, %cst_23 [1] : vector<64x64xf32> to vector<64xf32>
    %44 = vector.shape_cast %43 : vector<64xf32> to vector<64x1xf32>
    %45 = tpu.reciprocal %44 {approx = true} : vector<64x1xf32> -> vector<64x1xf32>
    %46 = vector.broadcast %45 : vector<64x1xf32> to vector<64x64xf32>
    %47 = arith.mulf %42, %46 : vector<64x64xf32>
    %cst_24 = arith.constant dense<0.000000e+00> : vector<64x16xf32>
    %48 = tpu.matmul %47, %34, %cst_24 {dimension_numbers = #tpu.dot_dimension_numbers<[1], [0], [0], [1], [0, 0, 1, 1], [], []>} : vector<64x64xf32>, vector<64x16xf32>, vector<64x16xf32> -> vector<64x16xf32>
    %c0_25 = arith.constant 0 : index
    %c0_26 = arith.constant 0 : index
    %c0_27 = arith.constant 0 : index
    %49 = vector.load %arg5[%c0_25, %c0_26, %c0_27] : memref<2x16x32xf32, #tpu.memory_space<vmem>>, vector<1x16x32xf32>
    %50 = vector.shape_cast %49 : vector<1x16x32xf32> to vector<16x32xf32>
    %cst_28 = arith.constant dense<0.000000e+00> : vector<64x32xf32>
    %51 = tpu.matmul %48, %50, %cst_28 {dimension_numbers = #tpu.dot_dimension_numbers<[1], [0], [0], [1], [0, 0, 1, 1], [], []>} : vector<64x16xf32>, vector<16x32xf32>, vector<64x32xf32> -> vector<64x32xf32>
    %c1 = arith.constant 1 : index
    %c0_29 = arith.constant 0 : index
    %c0_30 = arith.constant 0 : index
    %52 = vector.load %arg4[%c1, %c0_29, %c0_30] : memref<6x32x16xf32, #tpu.memory_space<vmem>>, vector<1x32x16xf32>
    %53 = vector.shape_cast %52 : vector<1x32x16xf32> to vector<32x16xf32>
    %cst_31 = arith.constant dense<0.000000e+00> : vector<64x16xf32>
    %54 = tpu.matmul %25, %53, %cst_31 {dimension_numbers = #tpu.dot_dimension_numbers<[1], [0], [0], [1], [0, 0, 1, 1], [], []>} : vector<64x32xf32>, vector<32x16xf32>, vector<64x16xf32> -> vector<64x16xf32>
    %c3 = arith.constant 3 : index
    %c0_32 = arith.constant 0 : index
    %c0_33 = arith.constant 0 : index
    %55 = vector.load %arg4[%c3, %c0_32, %c0_33] : memref<6x32x16xf32, #tpu.memory_space<vmem>>, vector<1x32x16xf32>
    %56 = vector.shape_cast %55 : vector<1x32x16xf32> to vector<32x16xf32>
    %cst_34 = arith.constant dense<0.000000e+00> : vector<64x16xf32>
    %57 = tpu.matmul %25, %56, %cst_34 {dimension_numbers = #tpu.dot_dimension_numbers<[1], [0], [0], [1], [0, 0, 1, 1], [], []>} : vector<64x32xf32>, vector<32x16xf32>, vector<64x16xf32> -> vector<64x16xf32>
    %c5 = arith.constant 5 : index
    %c0_35 = arith.constant 0 : index
    %c0_36 = arith.constant 0 : index
    %58 = vector.load %arg4[%c5, %c0_35, %c0_36] : memref<6x32x16xf32, #tpu.memory_space<vmem>>, vector<1x32x16xf32>
    %59 = vector.shape_cast %58 : vector<1x32x16xf32> to vector<32x16xf32>
    %cst_37 = arith.constant dense<0.000000e+00> : vector<64x16xf32>
    %60 = tpu.matmul %25, %59, %cst_37 {dimension_numbers = #tpu.dot_dimension_numbers<[1], [0], [0], [1], [0, 0, 1, 1], [], []>} : vector<64x32xf32>, vector<32x16xf32>, vector<64x16xf32> -> vector<64x16xf32>
    %cst_38 = arith.constant dense<0.000000e+00> : vector<64x64xf32>
    %61 = tpu.matmul %54, %57, %cst_38 {dimension_numbers = #tpu.dot_dimension_numbers<[1], [1], [0], [0], [0, 0, 1, 0], [], []>} : vector<64x16xf32>, vector<64x16xf32>, vector<64x64xf32> -> vector<64x64xf32>
    %cst_39 = arith.constant 2.500000e-01 : f32
    %62 = vector.broadcast %cst_39 : f32 to vector<64x64xf32>
    %63 = arith.mulf %61, %62 : vector<64x64xf32>
    %cst_40 = arith.constant dense<0xFF800000> : vector<64xf32>
    %64 = vector.multi_reduction <maximumf>, %63, %cst_40 [1] : vector<64x64xf32> to vector<64xf32>
    %65 = vector.shape_cast %64 : vector<64xf32> to vector<64x1xf32>
    %66 = vector.broadcast %65 : vector<64x1xf32> to vector<64x64xf32>
    %67 = arith.subf %63, %66 : vector<64x64xf32>
    %68 = math.exp %67 : vector<64x64xf32>
    %cst_41 = arith.constant dense<0.000000e+00> : vector<64xf32>
    %69 = vector.multi_reduction <add>, %68, %cst_41 [1] : vector<64x64xf32> to vector<64xf32>
    %70 = vector.shape_cast %69 : vector<64xf32> to vector<64x1xf32>
    %71 = tpu.reciprocal %70 {approx = true} : vector<64x1xf32> -> vector<64x1xf32>
    %72 = vector.broadcast %71 : vector<64x1xf32> to vector<64x64xf32>
    %73 = arith.mulf %68, %72 : vector<64x64xf32>
    %cst_42 = arith.constant dense<0.000000e+00> : vector<64x16xf32>
    %74 = tpu.matmul %73, %60, %cst_42 {dimension_numbers = #tpu.dot_dimension_numbers<[1], [0], [0], [1], [0, 0, 1, 1], [], []>} : vector<64x64xf32>, vector<64x16xf32>, vector<64x16xf32> -> vector<64x16xf32>
    %c1_43 = arith.constant 1 : index
    %c0_44 = arith.constant 0 : index
    %c0_45 = arith.constant 0 : index
    %75 = vector.load %arg5[%c1_43, %c0_44, %c0_45] : memref<2x16x32xf32, #tpu.memory_space<vmem>>, vector<1x16x32xf32>
    %76 = vector.shape_cast %75 : vector<1x16x32xf32> to vector<16x32xf32>
    %cst_46 = arith.constant dense<0.000000e+00> : vector<64x32xf32>
    %77 = tpu.matmul %74, %76, %cst_46 {dimension_numbers = #tpu.dot_dimension_numbers<[1], [0], [0], [1], [0, 0, 1, 1], [], []>} : vector<64x16xf32>, vector<16x32xf32>, vector<64x32xf32> -> vector<64x32xf32>
    %78 = arith.addf %51, %77 : vector<64x32xf32>
    %79 = arith.addf %1, %78 : vector<64x32xf32>
    %c0_47 = arith.constant 0 : index
    %c0_48 = arith.constant 0 : index
    %80 = vector.load %arg6[%c0_47, %c0_48] : memref<1x32xf32, #tpu.memory_space<vmem>>, vector<1x32xf32>
    %81 = vector.broadcast %80 : vector<1x32xf32> to vector<64x32xf32>
    %82 = arith.addf %79, %81 : vector<64x32xf32>
    %c0_49 = arith.constant 0 : index
    %c0_50 = arith.constant 0 : index
    %83 = vector.load %arg7[%c0_49, %c0_50] : memref<1x32xf32, #tpu.memory_space<vmem>>, vector<1x32xf32>
    %c0_51 = arith.constant 0 : index
    %c0_52 = arith.constant 0 : index
    %84 = vector.load %arg8[%c0_51, %c0_52] : memref<1x32xf32, #tpu.memory_space<vmem>>, vector<1x32xf32>
    %cst_53 = arith.constant dense<0.000000e+00> : vector<64xf32>
    %85 = vector.multi_reduction <add>, %82, %cst_53 [1] : vector<64x32xf32> to vector<64xf32>
    %86 = vector.shape_cast %85 : vector<64xf32> to vector<64x1xf32>
    %cst_54 = arith.constant 3.200000e+01 : f32
    %87 = vector.broadcast %cst_54 : f32 to vector<64x1xf32>
    %88 = arith.divf %86, %87 : vector<64x1xf32>
    %89 = vector.broadcast %88 : vector<64x1xf32> to vector<64x32xf32>
    %90 = arith.subf %82, %89 : vector<64x32xf32>
    %91 = arith.mulf %90, %90 : vector<64x32xf32>
    %cst_55 = arith.constant dense<0.000000e+00> : vector<64xf32>
    %92 = vector.multi_reduction <add>, %91, %cst_55 [1] : vector<64x32xf32> to vector<64xf32>
    %93 = vector.shape_cast %92 : vector<64xf32> to vector<64x1xf32>
    %cst_56 = arith.constant 3.200000e+01 : f32
    %94 = vector.broadcast %cst_56 : f32 to vector<64x1xf32>
    %95 = arith.divf %93, %94 : vector<64x1xf32>
    %96 = vector.broadcast %88 : vector<64x1xf32> to vector<64x32xf32>
    %97 = arith.subf %82, %96 : vector<64x32xf32>
    %cst_57 = arith.constant 9.99999974E-6 : f32
    %98 = vector.broadcast %cst_57 : f32 to vector<64x1xf32>
    %99 = arith.addf %95, %98 : vector<64x1xf32>
    %100 = math.rsqrt %99 : vector<64x1xf32>
    %101 = vector.broadcast %100 : vector<64x1xf32> to vector<64x32xf32>
    %102 = arith.mulf %97, %101 : vector<64x32xf32>
    %103 = vector.broadcast %83 : vector<1x32xf32> to vector<64x32xf32>
    %104 = arith.mulf %102, %103 : vector<64x32xf32>
    %105 = vector.broadcast %84 : vector<1x32xf32> to vector<64x32xf32>
    %106 = arith.addf %104, %105 : vector<64x32xf32>
    %c0_58 = arith.constant 0 : index
    %c0_59 = arith.constant 0 : index
    %107 = vector.load %arg9[%c0_58, %c0_59] : memref<32x64xf32, #tpu.memory_space<vmem>>, vector<32x64xf32>
    %cst_60 = arith.constant dense<0.000000e+00> : vector<64x64xf32>
    %108 = tpu.matmul %106, %107, %cst_60 {dimension_numbers = #tpu.dot_dimension_numbers<[1], [0], [0], [1], [0, 0, 1, 1], [], []>} : vector<64x32xf32>, vector<32x64xf32>, vector<64x64xf32> -> vector<64x64xf32>
    %c0_61 = arith.constant 0 : index
    %c0_62 = arith.constant 0 : index
    %109 = vector.load %arg10[%c0_61, %c0_62] : memref<1x64xf32, #tpu.memory_space<vmem>>, vector<1x64xf32>
    %110 = vector.broadcast %109 : vector<1x64xf32> to vector<64x64xf32>
    %111 = arith.addf %108, %110 : vector<64x64xf32>
    %cst_63 = arith.constant 5.000000e-01 : f32
    %112 = vector.broadcast %cst_63 : f32 to vector<64x64xf32>
    %113 = arith.mulf %112, %111 : vector<64x64xf32>
    %cst_64 = arith.constant 0.707106769 : f32
    %114 = vector.broadcast %cst_64 : f32 to vector<64x64xf32>
    %115 = arith.mulf %111, %114 : vector<64x64xf32>
    %cst_65 = arith.constant 0.000000e+00 : f32
    %116 = vector.broadcast %cst_65 : f32 to vector<64x64xf32>
    %117 = arith.cmpf oge, %115, %116 : vector<64x64xf32>
    %cst_66 = arith.constant 1.000000e+00 : f32
    %cst_67 = arith.constant -1.000000e+00 : f32
    %118 = vector.broadcast %cst_66 : f32 to vector<64x64xf32>
    %119 = vector.broadcast %cst_67 : f32 to vector<64x64xf32>
    %120 = arith.select %117, %118, %119 : vector<64x64xi1>, vector<64x64xf32>
    %121 = math.absf %115 : vector<64x64xf32>
    %cst_68 = arith.constant 0.327591091 : f32
    %122 = vector.broadcast %cst_68 : f32 to vector<64x64xf32>
    %123 = arith.mulf %122, %121 : vector<64x64xf32>
    %cst_69 = arith.constant 1.000000e+00 : f32
    %124 = vector.broadcast %cst_69 : f32 to vector<64x64xf32>
    %125 = arith.addf %124, %123 : vector<64x64xf32>
    %cst_70 = arith.constant 1.000000e+00 : f32
    %126 = vector.broadcast %cst_70 : f32 to vector<64x64xf32>
    %127 = arith.divf %126, %125 : vector<64x64xf32>
    %cst_71 = arith.constant 1.06140542 : f32
    %128 = vector.broadcast %cst_71 : f32 to vector<64x64xf32>
    %129 = arith.mulf %128, %127 : vector<64x64xf32>
    %cst_72 = arith.constant -1.45315206 : f32
    %130 = vector.broadcast %cst_72 : f32 to vector<64x64xf32>
    %131 = arith.addf %129, %130 : vector<64x64xf32>
    %132 = arith.mulf %131, %127 : vector<64x64xf32>
    %cst_73 = arith.constant 1.42141378 : f32
    %133 = vector.broadcast %cst_73 : f32 to vector<64x64xf32>
    %134 = arith.addf %132, %133 : vector<64x64xf32>
    %135 = arith.mulf %134, %127 : vector<64x64xf32>
    %cst_74 = arith.constant -0.284496725 : f32
    %136 = vector.broadcast %cst_74 : f32 to vector<64x64xf32>
    %137 = arith.addf %135, %136 : vector<64x64xf32>
    %138 = arith.mulf %137, %127 : vector<64x64xf32>
    %cst_75 = arith.constant 0.254829586 : f32
    %139 = vector.broadcast %cst_75 : f32 to vector<64x64xf32>
    %140 = arith.addf %138, %139 : vector<64x64xf32>
    %141 = arith.mulf %140, %127 : vector<64x64xf32>
    %cst_76 = arith.constant 0.000000e+00 : f32
    %142 = vector.broadcast %cst_76 : f32 to vector<64x64xf32>
    %143 = arith.subf %142, %121 : vector<64x64xf32>
    %144 = arith.mulf %143, %121 : vector<64x64xf32>
    %145 = math.exp %144 : vector<64x64xf32>
    %146 = arith.mulf %141, %145 : vector<64x64xf32>
    %cst_77 = arith.constant 1.000000e+00 : f32
    %147 = vector.broadcast %cst_77 : f32 to vector<64x64xf32>
    %148 = arith.subf %147, %146 : vector<64x64xf32>
    %149 = arith.mulf %120, %148 : vector<64x64xf32>
    %cst_78 = arith.constant 1.000000e+00 : f32
    %150 = vector.broadcast %cst_78 : f32 to vector<64x64xf32>
    %151 = arith.addf %150, %149 : vector<64x64xf32>
    %152 = arith.mulf %113, %151 : vector<64x64xf32>
    %c0_79 = arith.constant 0 : index
    %c0_80 = arith.constant 0 : index
    %153 = vector.load %arg11[%c0_79, %c0_80] : memref<64x32xf32, #tpu.memory_space<vmem>>, vector<64x32xf32>
    %cst_81 = arith.constant dense<0.000000e+00> : vector<64x32xf32>
    %154 = tpu.matmul %152, %153, %cst_81 {dimension_numbers = #tpu.dot_dimension_numbers<[1], [0], [0], [1], [0, 0, 1, 1], [], []>} : vector<64x64xf32>, vector<64x32xf32>, vector<64x32xf32> -> vector<64x32xf32>
    %155 = arith.addf %82, %154 : vector<64x32xf32>
    %c0_82 = arith.constant 0 : index
    %c0_83 = arith.constant 0 : index
    %156 = vector.load %arg12[%c0_82, %c0_83] : memref<1x32xf32, #tpu.memory_space<vmem>>, vector<1x32xf32>
    %157 = vector.broadcast %156 : vector<1x32xf32> to vector<64x32xf32>
    %158 = arith.addf %155, %157 : vector<64x32xf32>
    %c0_84 = arith.constant 0 : index
    %c0_85 = arith.constant 0 : index
    %c0_86 = arith.constant 0 : index
    %159 = vector.load %arg13[%c0_84, %c0_85, %c0_86] : memref<1x64x32xf32, #tpu.memory_space<vmem>>, vector<1x64x32xf32>
    %160 = vector.shape_cast %159 : vector<1x64x32xf32> to vector<64x32xf32>
    %161 = vector.shape_cast %158 : vector<64x32xf32> to vector<1x64x32xf32>
    tpu.vector_store %arg13[%c0_84, %c0_85, %c0_86], %161 {strides = array<i32>} : memref<1x64x32xf32, #tpu.memory_space<vmem>>, vector<1x64x32xf32>,
    return
  }
  func.func @transform_0(%arg0: i32) -> (i32, i32, i32) {
    %c0_i32 = arith.constant 0 : i32
    %c0_i32_0 = arith.constant 0 : i32
    %c0_i32_1 = arith.constant 0 : i32
    return %arg0, %c0_i32, %c0_i32_0 : i32, i32, i32
  }
  func.func @transform_1(%arg0: i32) -> (i32, i32) {
    %c0_i32 = arith.constant 0 : i32
    %c0_i32_0 = arith.constant 0 : i32
    %c0_i32_1 = arith.constant 0 : i32
    return %c0_i32, %c0_i32_0 : i32, i32
  }
  func.func @transform_2(%arg0: i32) -> (i32, i32) {
    %c0_i32 = arith.constant 0 : i32
    %c0_i32_0 = arith.constant 0 : i32
    %c0_i32_1 = arith.constant 0 : i32
    return %c0_i32, %c0_i32_0 : i32, i32
  }
  func.func @transform_3(%arg0: i32) -> (i32, i32, i32) {
    %c0_i32 = arith.constant 0 : i32
    %c0_i32_0 = arith.constant 0 : i32
    %c0_i32_1 = arith.constant 0 : i32
    %c0_i32_2 = arith.constant 0 : i32
    return %c0_i32, %c0_i32_0, %c0_i32_1 : i32, i32, i32
  }
  func.func @transform_4(%arg0: i32) -> (i32, i32, i32) {
    %c0_i32 = arith.constant 0 : i32
    %c0_i32_0 = arith.constant 0 : i32
    %c0_i32_1 = arith.constant 0 : i32
    %c0_i32_2 = arith.constant 0 : i32
    return %c0_i32, %c0_i32_0, %c0_i32_1 : i32, i32, i32
  }
  func.func @transform_5(%arg0: i32) -> (i32, i32) {
    %c0_i32 = arith.constant 0 : i32
    %c0_i32_0 = arith.constant 0 : i32
    %c0_i32_1 = arith.constant 0 : i32
    return %c0_i32, %c0_i32_0 : i32, i32
  }
  func.func @transform_6(%arg0: i32) -> (i32, i32) {
    %c0_i32 = arith.constant 0 : i32
    %c0_i32_0 = arith.constant 0 : i32
    %c0_i32_1 = arith.constant 0 : i32
    return %c0_i32, %c0_i32_0 : i32, i32
  }
  func.func @transform_7(%arg0: i32) -> (i32, i32) {
    %c0_i32 = arith.constant 0 : i32
    %c0_i32_0 = arith.constant 0 : i32
    %c0_i32_1 = arith.constant 0 : i32
    return %c0_i32, %c0_i32_0 : i32, i32
  }
  func.func @transform_8(%arg0: i32) -> (i32, i32) {
    %c0_i32 = arith.constant 0 : i32
    %c0_i32_0 = arith.constant 0 : i32
    %c0_i32_1 = arith.constant 0 : i32
    return %c0_i32, %c0_i32_0 : i32, i32
  }
  func.func @transform_9(%arg0: i32) -> (i32, i32) {
    %c0_i32 = arith.constant 0 : i32
    %c0_i32_0 = arith.constant 0 : i32
    %c0_i32_1 = arith.constant 0 : i32
    return %c0_i32, %c0_i32_0 : i32, i32
  }
  func.func @transform_10(%arg0: i32) -> (i32, i32) {
    %c0_i32 = arith.constant 0 : i32
    %c0_i32_0 = arith.constant 0 : i32
    %c0_i32_1 = arith.constant 0 : i32
    return %c0_i32, %c0_i32_0 : i32, i32
  }
  func.func @transform_11(%arg0: i32) -> (i32, i32) {
    %c0_i32 = arith.constant 0 : i32
    %c0_i32_0 = arith.constant 0 : i32
    %c0_i32_1 = arith.constant 0 : i32
    return %c0_i32, %c0_i32_0 : i32, i32
  }
  func.func @transform_12(%arg0: i32) -> (i32, i32, i32) {
    %c0_i32 = arith.constant 0 : i32
    %c0_i32_0 = arith.constant 0 : i32
    %c0_i32_1 = arith.constant 0 : i32
    return %arg0, %c0_i32, %c0_i32_0 : i32, i32, i32
  }
}

</mosaic_0001>

<llo_original>
// kernel: tpu_custom_call.1
$region0: #{tpu_custom_call.1}
  #allocation0 [shape = 'u32[]', space=smem, size = 0x4, offset = 0x4, fixed_abs, tag = 'smem constant byte address 0x4 - core index']
  #allocation1 [shape = 'u32[72,128]{1,0:T(1,128)}', space=vmem, size = 0x9000, scoped, tag = 'internal scratch']
  %s0 = inlined_call_operand.hbm [shape: f32[8,128], index: 0, kind: input, shape index: {}]
  %s1 = inlined_call_operand.hbm [shape: f32[8,128], index: 1, kind: output, shape index: {}]
  %s2 = sld [smem:[#allocation0]]
  $region18: #{tpu_custom_call.1} parent=0
    _
  %s4 = ssub.s32 1, %s2
  %s5 = scalar_select 0, %s4, %s2
  $region1: #{tpu_custom_call.1} parent=0
    #allocation2 [shape = 'u8[4096]{0}', space=vmem, size = 0x1000, scoped, tag = 'input window, operand 0, single buffered']
    #allocation3 [shape = 's32[1]{0}', space=sflag, size = 0x4, scoped, tag = 'scoped memory for tpu_custom_call.1']
    #allocation4 [shape = 's32[1]{0}', space=sflag, size = 0x4, scoped, tag = 'scoped memory for tpu_custom_call.1']
    #allocation5 [shape = 'u8[4096]{0}', space=vmem, size = 0x1000, scoped, tag = 'output window, operand 0, single buffered']
    %6 = vsyncpa [#allocation3], 0
    %7 = vsyncpa [#allocation4], 0
    // Predicated region
    $region2: #{tpu_custom_call.1} parent=1 // pred_check
      _
    $region3: #{tpu_custom_call.1} parent=1 // pred_check_branch
      %9 = sbr.rel (0) target = $region5
    $region4: #{tpu_custom_call.1} parent=1 // pred_region
      %11 = vsyncadd [#allocation3], 0
      %s13 = sshll.u32 %s0, 4
      %s14 = int_to_ptr.hbm [resolvable:$true] %s13
      %s15 = sshll.u32 [#allocation2], 4
      %s16 = int_to_ptr.vmem [resolvable:$true] %s15
      %18 = dma.hbm_to_vmem [thread:$0]  %s14, 128, %s16, [#allocation3]
    $region5: #{tpu_custom_call.1} parent=1 // pred_fallthru
      _
    // Predicated region
    $region6: #{tpu_custom_call.1} parent=1 // pred_check
      _
    $region7: #{tpu_custom_call.1} parent=1 // pred_check_branch
      %20 = sbr.rel (0) target = $region9
    $region8: #{tpu_custom_call.1} parent=1 // pred_region
      %22 = dma.done [#allocation3], 128
    $region9: #{tpu_custom_call.1} parent=1 // pred_fallthru
      _
    %v23 = vld [vmem:[#allocation2] sm:$0xff]
    %v24 = vmul.f32 %v23, %v23
    %v25 = vmin.f32 16.0, %v24
    %v26 = vmul.f32 %v25, 2.1237322e-06
    %v27 = vadd.f32 %v26, 0.00028619796
    %v28 = vmul.f32 %v25, %v27
    %v29 = vadd.f32 %v28, 0.0036580483
    %v30 = vmul.f32 %v25, %v29
    %v31 = vadd.f32 %v30, 0.05243302
    %v32 = vmul.f32 %v25, %v31
    %v33 = vadd.f32 %v32, 0.18741608
    %v34 = vmul.f32 %v25, %v33
    %v35 = vadd.f32 %v34, 1.1283791
    %v36 = vmul.f32 %v23, %v35
    %v37 = vmul.f32 %v25, 3.8918573e-05
    %v38 = vadd.f32 %v37, 0.001143296
    %v39 = vmul.f32 %v25, %v38
    %v40 = vadd.f32 %v39, 0.014752088
    %v41 = vmul.f32 %v25, %v40
    %v42 = vadd.f32 %v41, 0.112945676
    %v43 = vmul.f32 %v25, %v42
    %v44 = vadd.f32 %v43, 0.4994258
    %v45 = vmul.f32 %v25, %v44
    %v46 = vadd.f32 %v45, 1.0
    %v47 = vrcp.pop %v46
    %v48 = vmul.f32 %v46, %v47
    %v49 = vsub.f32 1.0, %v48
    %v50 = vmul.f32 %v47, %v49
    %v51 = vadd.f32 %v47, %v50
    %vm52 = vweird.f32 %v46
    %vm53 = vweird.f32 %v47
    %vm54 = vmor %vm52, %vm53
    %v55 = vsel %vm54, %v47, %v51
    %v56 = vand.u32 2147483647, %v46
    %vm57 = vcmp.eq.f32.partialorder %v56, 8.507059e+37
    %v58 = vand.u32 %v46, 2147483648
    %v59 = vor.u32 1.1754944e-38, %v58
    %v60 = vsel %vm57, %v59, %v55
    %v61 = vmul.f32 %v36, %v60
    %v62 = vmin.f32 %v61, 1.0
    %v63 = vmax.f32 %v62, -1.0
    %64 = vst [vmem:[#allocation5] sm:$0xff] %v63
    // Predicated region
    $region10: #{tpu_custom_call.1} parent=1 // pred_check
      _
    $region11: #{tpu_custom_call.1} parent=1 // pred_check_branch
      %66 = sbr.rel (0) target = $region13
    $region12: #{tpu_custom_call.1} parent=1 // pred_region
      %68 = vsyncadd [#allocation4], 0
      %s70 = sshll.u32 [#allocation5], 4
      %s71 = int_to_ptr.vmem [resolvable:$true] %s70
      %s72 = sshll.u32 %s1, 4
      %s73 = int_to_ptr.hbm [resolvable:$true] %s72
      %75 = dma.vmem_to_hbm [thread:$0]  %s71, 128, %s73, [#allocation4]
    $region13: #{tpu_custom_call.1} parent=1 // pred_fallthru
      _
    // Predicated region
    $region14: #{tpu_custom_call.1} parent=1 // pred_check
      _
    $region15: #{tpu_custom_call.1} parent=1 // pred_check_branch
      %77 = sbr.rel (0) target = $region17
    $region16: #{tpu_custom_call.1} parent=1 // pred_region
      %79 = dma.done [#allocation4], 128
    $region17: #{tpu_custom_call.1} parent=1 // pred_fallthru
      _
    %80 = vsyncpa [#allocation3], 1
    %81 = vsyncpa [#allocation4], 1

// kernel: custom-call.51
$region0: #{custom-call.51}
  %s0 = inlined_call_operand.vmem [shape: f32[2,32], index: 0, kind: output, shape index: {}]

// kernel: model_forward.5
$region0: #{model_forward.5}
  #allocation0 [shape = 'u32[]', space=smem, size = 0x4, offset = 0x4, fixed_abs, tag = 'smem constant byte address 0x4 - core index']
  #allocation1 [shape = 'u32[72,128]{1,0:T(1,128)}', space=vmem, size = 0x9000, scoped, tag = 'internal scratch']
  %s0 = inlined_call_operand.vmem [shape: f32[2,768,5], index: 0, kind: input, shape index: {}]
  %s1 = inlined_call_operand.vmem [shape: f32[2,32,4], index: 1, kind: input, shape index: {}]
  %s2 = inlined_call_operand.vmem [shape: f32[5,32], index: 2, kind: input, shape index: {}]
  %s3 = inlined_call_operand.vmem [shape: f32[4,32], index: 3, kind: input, shape index: {}]
  %s4 = inlined_call_operand.vmem [shape: f32[1,32], index: 4, kind: input, shape index: {}]
  %s5 = inlined_call_operand.vmem [shape: f32[2,32,32], index: 5, kind: output, shape index: {}]
  %s6 = sld [smem:[#allocation0]]
  $region53: #{model_forward.5} parent=0
    _
  %s8 = ssub.s32 1, %s6
  %s9 = scalar_select 0, %s8, %s6
  loop: start=0, step=1, limit=4
  $region2: #{model_forward.5} parent=0 // loop_pre_header
    _
  $region3: #{model_forward.5} parent=0 // loop_header
    %s11 = sphi 0, %s15
    %p12 = scmp.ge.s32.totalorder %s11, 4
    %s21 = sphi 0, %s23
    %s24 = sphi 0, %s21
    %s25 = sphi 0, %s24
    %s41 = sphi 0, %s25
    %s47 = sphi 0, %s49
    %s50 = sphi 0, %s47
    %s51 = sphi 0, %s50
    %s67 = sphi 0, %s51
    %s71 = sphi 0, %s71
    %s73 = sphi 0, %s71
    %s74 = sphi 0, %s73
    %s88 = sphi 0, %s74
    %s92 = sphi 0, %s92
    %s94 = sphi 0, %s92
    %s95 = sphi 0, %s94
    %s109 = sphi 0, %s95
    %s113 = sphi 0, %s113
    %s115 = sphi 0, %s113
    %s116 = sphi 0, %s115
    %s130 = sphi 0, %s116
    %s136 = sphi 0, %s138
    %s139 = sphi 0, %s136
    %s140 = sphi 0, %s139
    %s156 = sphi 0, %s140
  $region4: #{model_forward.5} parent=0 // loop_header_branch
    %14 = sbr.rel (%p12) target = $region8
  $region5: #{model_forward.5} parent=0 // loop_body
    %s16 = ssub.s32 %s11, 1
    %s17 = ssub.s32 %s11, 2
    %s18 = sadd.s32 %s11, 1
    %s19 = ssub.s32 %s11, %s18
    %p20 = scmp.eq.s32.totalorder %s19, 0
    %s22 = sadd.s32 %s21, 1
    %s23 = scalar_select %p20, %s21, %s22
    %p26 = pneg %p20
    %p27 = scmp.eq.s32.totalorder %s11, 1
    %p28 = por %p26, %p27
    %p29 = scmp.ne.s32.totalorder %s21, %s24
    %p30 = scmp.eq.s32.totalorder %s11, 0
    %p31 = por %p29, %p30
    %p32 = scmp.ne.s32.totalorder %s21, %s24
    %p33 = scmp.eq.s32.totalorder %s16, 1
    %p34 = por %p32, %p33
    %p35 = scmp.ne.s32.totalorder %s24, %s25
    %p36 = scmp.eq.s32.totalorder %s16, 0
    %p37 = por %p35, %p36
    %p38 = scmp.ne.s32.totalorder %s24, %s25
    %p39 = scmp.eq.s32.totalorder %s17, 1
    %p40 = por %p38, %p39
    %p42 = scmp.ne.s32.totalorder %s25, %s41
    %p43 = scmp.eq.s32.totalorder %s17, 0
    %p44 = por %p42, %p43
    %s45 = ssub.s32 %s11, %s18
    %p46 = scmp.eq.s32.totalorder %s45, 0
    %s48 = sadd.s32 %s47, 1
    %s49 = scalar_select %p46, %s47, %s48
    %p52 = pneg %p46
    %p53 = scmp.eq.s32.totalorder %s11, 1
    %p54 = por %p52, %p53
    %p55 = scmp.ne.s32.totalorder %s47, %s50
    %p56 = scmp.eq.s32.totalorder %s11, 0
    %p57 = por %p55, %p56
    %p58 = scmp.ne.s32.totalorder %s47, %s50
    %p59 = scmp.eq.s32.totalorder %s16, 1
    %p60 = por %p58, %p59
    %p61 = scmp.ne.s32.totalorder %s50, %s51
    %p62 = scmp.eq.s32.totalorder %s16, 0
    %p63 = por %p61, %p62
    %p64 = scmp.ne.s32.totalorder %s50, %s51
    %p65 = scmp.eq.s32.totalorder %s17, 1
    %p66 = por %p64, %p65
    %p68 = scmp.ne.s32.totalorder %s51, %s67
    %p69 = scmp.eq.s32.totalorder %s17, 0
    %p70 = por %p68, %p69
    %s72 = sadd.s32 %s71, 1
    %p75 = scmp.eq.s32.totalorder %s11, 1
    %p76 = scmp.ne.s32.totalorder %s71, %s73
    %p77 = scmp.eq.s32.totalorder %s11, 0
    %p78 = por %p76, %p77
    %p79 = scmp.ne.s32.totalorder %s71, %s73
    %p80 = scmp.eq.s32.totalorder %s16, 1
    %p81 = por %p79, %p80
    %p82 = scmp.ne.s32.totalorder %s73, %s74
    %p83 = scmp.eq.s32.totalorder %s16, 0
    %p84 = por %p82, %p83
    %p85 = scmp.ne.s32.totalorder %s73, %s74
    %p86 = scmp.eq.s32.totalorder %s17, 1
    %p87 = por %p85, %p86
    %p89 = scmp.ne.s32.totalorder %s74, %s88
    %p90 = scmp.eq.s32.totalorder %s17, 0
    %p91 = por %p89, %p90
    %s93 = sadd.s32 %s92, 1
    %p96 = scmp.eq.s32.totalorder %s11, 1
    %p97 = scmp.ne.s32.totalorder %s92, %s94
    %p98 = scmp.eq.s32.totalorder %s11, 0
    %p99 = por %p97, %p98
    %p100 = scmp.ne.s32.totalorder %s92, %s94
    %p101 = scmp.eq.s32.totalorder %s16, 1
    %p102 = por %p100, %p101
    %p103 = scmp.ne.s32.totalorder %s94, %s95
    %p104 = scmp.eq.s32.totalorder %s16, 0
    %p105 = por %p103, %p104
    %p106 = scmp.ne.s32.totalorder %s94, %s95
    %p107 = scmp.eq.s32.totalorder %s17, 1
    %p108 = por %p106, %p107
    %p110 = scmp.ne.s32.totalorder %s95, %s109
    %p111 = scmp.eq.s32.totalorder %s17, 0
    %p112 = por %p110, %p111
    %s114 = sadd.s32 %s113, 1
    %p117 = scmp.eq.s32.totalorder %s11, 1
    %p118 = scmp.ne.s32.totalorder %s113, %s115
    %p119 = scmp.eq.s32.totalorder %s11, 0
    %p120 = por %p118, %p119
    %p121 = scmp.ne.s32.totalorder %s113, %s115
    %p122 = scmp.eq.s32.totalorder %s16, 1
    %p123 = por %p121, %p122
    %p124 = scmp.ne.s32.totalorder %s115, %s116
    %p125 = scmp.eq.s32.totalorder %s16, 0
    %p126 = por %p124, %p125
    %p127 = scmp.ne.s32.totalorder %s115, %s116
    %p128 = scmp.eq.s32.totalorder %s17, 1
    %p129 = por %p127, %p128
    %p131 = scmp.ne.s32.totalorder %s116, %s130
    %p132 = scmp.eq.s32.totalorder %s17, 0
    %p133 = por %p131, %p132
    %s134 = ssub.s32 %s11, %s18
    %p135 = scmp.eq.s32.totalorder %s134, 0
    %s137 = sadd.s32 %s136, 1
    %s138 = scalar_select %p135, %s136, %s137
    %p141 = pneg %p135
    %p142 = scmp.eq.s32.totalorder %s11, 1
    %p143 = por %p141, %p142
    %p144 = scmp.ne.s32.totalorder %s136, %s139
    %p145 = scmp.eq.s32.totalorder %s11, 0
    %p146 = por %p144, %p145
    %p147 = scmp.ne.s32.totalorder %s136, %s139
    %p148 = scmp.eq.s32.totalorder %s16, 1
    %p149 = por %p147, %p148
    %p150 = scmp.ne.s32.totalorder %s139, %s140
    %p151 = scmp.eq.s32.totalorder %s16, 0
    %p152 = por %p150, %p151
    %p153 = scmp.ne.s32.totalorder %s139, %s140
    %p154 = scmp.eq.s32.totalorder %s17, 1
    %p155 = por %p153, %p154
    %p157 = scmp.ne.s32.totalorder %s140, %s156
    %p158 = scmp.eq.s32.totalorder %s17, 0
    %p159 = por %p157, %p158
    %p160 = scmp.le.s32.totalorder 1, %s11
    %p161 = scmp.lt.s32.totalorder %s11, 3
    %p162 = pnand %p160, %p161
    %p163 = pneg %p162
    // Predicated region
    $region9: #{model_forward.5} parent=5 // pred_check
      _
    $region10: #{model_forward.5} parent=5 // pred_check_branch
      %165 = sbr.rel (%p162) target = $region12
    $region11: #{model_forward.5} parent=5 // pred_region
      %s166 = ssub.s32 %s11, 1
      // Predicated region
      $region13: #{model_forward.5} parent=11 // pred_check
        %p167 = pneg %p84
      $region14: #{model_forward.5} parent=11 // pred_check_branch
        %169 = sbr.rel (%p167) target = $region16
      $region15: #{model_forward.5} parent=11 // pred_region
        _
      $region16: #{model_forward.5} parent=11 // pred_fallthru
        _
      // Predicated region
      $region17: #{model_forward.5} parent=11 // pred_check
        %p170 = pneg %p105
      $region18: #{model_forward.5} parent=11 // pred_check_branch
        %172 = sbr.rel (%p170) target = $region20
      $region19: #{model_forward.5} parent=11 // pred_region
        _
      $region20: #{model_forward.5} parent=11 // pred_fallthru
        _
      // Predicated region
      $region21: #{model_forward.5} parent=11 // pred_check
        %p173 = pneg %p126
      $region22: #{model_forward.5} parent=11 // pred_check_branch
        %175 = sbr.rel (%p173) target = $region24
      $region23: #{model_forward.5} parent=11 // pred_region
        _
      $region24: #{model_forward.5} parent=11 // pred_fallthru
        _
    $region12: #{model_forward.5} parent=5 // pred_fallthru
      _
    %p176 = scmp.lt.s32.totalorder %s11, 2
    // Predicated region
    $region25: #{model_forward.5} parent=5 // pred_check
      %p177 = pneg %p176
    $region26: #{model_forward.5} parent=5 // pred_check_branch
      %179 = sbr.rel (%p177) target = $region28
    $region27: #{model_forward.5} parent=5 // pred_region
      // Predicated region
      $region29: #{model_forward.5} parent=27 // pred_check
        %p180 = pneg %p31
      $region30: #{model_forward.5} parent=27 // pred_check_branch
        %182 = sbr.rel (%p180) target = $region32
      $region31: #{model_forward.5} parent=27 // pred_region
        %p183 = scmp.lt.s32.totalorder %s11, 1
        %s184 = scalar_select %p183, %s11, 1
        %s185 = smul.addr %s184, 96
        %s186 = smul.addr %s185, 8
        %s187 = scalar_lea.vmem %s0, %s186
      $region32: #{model_forward.5} parent=27 // pred_fallthru
        _
      // Predicated region
      $region33: #{model_forward.5} parent=27 // pred_check
        %p188 = pneg %p57
      $region34: #{model_forward.5} parent=27 // pred_check_branch
        %190 = sbr.rel (%p188) target = $region36
      $region35: #{model_forward.5} parent=27 // pred_region
        %p191 = scmp.lt.s32.totalorder %s11, 1
        %s192 = scalar_select %p191, %s11, 1
        %s193 = smul.addr %s192, 4
        %s194 = smul.addr %s193, 8
        %s195 = scalar_lea.vmem %s1, %s194
      $region36: #{model_forward.5} parent=27 // pred_fallthru
        _
    $region28: #{model_forward.5} parent=5 // pred_fallthru
      _
    %p196 = scmp.le.s32.totalorder 1, %s11
    %p197 = scmp.lt.s32.totalorder %s11, 3
    %p198 = pnand %p196, %p197
    %p199 = pneg %p198
    // Predicated region
    $region37: #{model_forward.5} parent=5 // pred_check
      _
    $region38: #{model_forward.5} parent=5 // pred_check_branch
      %201 = sbr.rel (%p198) target = $region40
    $region39: #{model_forward.5} parent=5 // pred_region
      %s202 = ssub.s32 %s11, 1
      %p203 = scmp.lt.s32.totalorder %s16, 1
      %s204 = scalar_select %p203, %s16, 1
      %s205 = smul.addr %s204, 96
      %s206 = smul.addr %s205, 8
      %s207 = scalar_lea.vmem %s0, %s206
      %p208 = pneg %p37
      %p209 = pneg %p34
      %p210 = scmp.lt.s32.totalorder %s16, 1
      %s211 = scalar_select %p210, %s16, 1
      %s212 = smul.addr %s211, 4
      %s213 = smul.addr %s212, 8
      %s214 = scalar_lea.vmem %s1, %s213
      %p215 = pneg %p63
      %p216 = pneg %p60
      %p217 = pneg %p84
      %p218 = pneg %p81
      %p219 = pneg %p105
      %p220 = pneg %p102
      %p221 = pneg %p126
      %p222 = pneg %p123
      %p223 = pneg %p152
      %p224 = pneg %p149
      %p225 = scmp.lt.s32.totalorder %s16, 1
      %s226 = scalar_select %p225, %s16, 1
      %s227 = smul.addr %s226, 4
      %s228 = smul.addr %s227, 8
      %s229 = scalar_lea.vmem %s5, %s228
      %p230 = scmp.lt.s32.totalorder %s16, 1
      %s231 = scalar_select %p230, %s16, 1
      %s232 = smul.addr %s231, 96
      %s233 = smul.addr %s232, 8
      %s234 = scalar_lea.vmem %s0, %s233
      %p235 = scmp.lt.s32.totalorder %s16, 1
      %s236 = scalar_select %p235, %s16, 1
      %s237 = smul.addr %s236, 4
      %s238 = smul.addr %s237, 8
      %s239 = scalar_lea.vmem %s1, %s238
      %p240 = scmp.lt.s32.totalorder %s16, 1
      %s241 = scalar_select %p240, %s16, 1
      %s242 = smul.addr %s241, 4
      %s243 = smul.addr %s242, 8
      %s244 = scalar_lea.vmem %s5, %s243
      %v245 = vld [vmem:[%s2] sm:$0x1f]
      %v246 = vld [vmem:[%s234] sm:$0xff]
      %v247 = vld [vmem:[%s234 + $0x8] sm:$0xff]
      %v248 = vld [vmem:[%s234 + $0x10] sm:$0xff]
      %v249 = vld [vmem:[%s234 + $0x18] sm:$0xff]
      %vm250 = vcmask 39936
      %v252 = vsel %vm250, %v246, 0
      %v255 = vsel %vm250, %v247, 0
      %v258 = vsel %vm250, %v248, 0
      %v261 = vsel %vm250, %v249, 0
      %vm263 = vcmask 1044480
      %v265 = vsel %vm263, %v245, 0
      %267 = vmatpush.msra.mxu0 0.0
      %268 = vmatpush.msra.mxu0 0.0
      %269 = vmatpush.msra.mxu0 0.0
      %270 = vmatpush.msra.mxu0 0.0
      %271 = vmatpush.msra.mxu0 0.0
      %272 = vmatpush.msra.mxu0 0.0
      %273 = vmatpush.msra.mxu0 0.0
      %274 = vmatpush.msra.mxu0 0.0
      %275 = vmatpush.msra.mxu0 0.0
      %276 = vmatpush.msra.mxu0 0.0
      %277 = vmatpush.msra.mxu0 0.0
      %278 = vmatpush.msra.mxu0 0.0
      %279 = vmatpush.msra.mxu0 0.0
      %280 = vmatpush.msra.mxu0 0.0
      %281 = vmatpush.msra.mxu0 0.0
      %282 = vmatpush.msra.mxu0 %v265
      %283 = vmatmul.f32.gmra.mxu0 %v252
      %v284 = vpop.f32.mrf.mxu0
      %v285 = vadd.f32 0.0, %v284
      %286 = vmatmul.f32.gmra.mxu0 %v255
      %v287 = vpop.f32.mrf.mxu0
      %v288 = vadd.f32 0.0, %v287
      %289 = vmatmul.f32.gmra.mxu0 %v258
      %v290 = vpop.f32.mrf.mxu0
      %v291 = vadd.f32 0.0, %v290
      %292 = vmatmul.f32.gmra.mxu0 %v261
      %v293 = vpop.f32.mrf.mxu0
      %v294 = vadd.f32 0.0, %v293
      %295 = vdwg.mxu0
      %v296 = vld [vmem:[%s234 + $0x20] sm:$0xff]
      %v297 = vld [vmem:[%s234 + $0x28] sm:$0xff]
      %v298 = vld [vmem:[%s234 + $0x30] sm:$0xff]
      %v299 = vld [vmem:[%s234 + $0x38] sm:$0xff]
      %v301 = vsel %vm250, %v296, 0
      %v304 = vsel %vm250, %v297, 0
      %v307 = vsel %vm250, %v298, 0
      %v310 = vsel %vm250, %v299, 0
      %312 = vmatpush.msra.mxu0 0.0
      %313 = vmatpush.msra.mxu0 0.0
      %314 = vmatpush.msra.mxu0 0.0
      %315 = vmatpush.msra.mxu0 0.0
      %316 = vmatpush.msra.mxu0 0.0
      %317 = vmatpush.msra.mxu0 0.0
      %318 = vmatpush.msra.mxu0 0.0
      %319 = vmatpush.msra.mxu0 0.0
      %320 = vmatpush.msra.mxu0 0.0
      %321 = vmatpush.msra.mxu0 0.0
      %322 = vmatpush.msra.mxu0 0.0
      %323 = vmatpush.msra.mxu0 0.0
      %324 = vmatpush.msra.mxu0 0.0
      %325 = vmatpush.msra.mxu0 0.0
      %326 = vmatpush.msra.mxu0 0.0
      %327 = vmatpush.msra.mxu0 %v265
      %328 = vmatmul.f32.gmra.mxu0 %v301
      %v329 = vpop.f32.mrf.mxu0
      %v330 = vadd.f32 0.0, %v329
      %331 = vmatmul.f32.gmra.mxu0 %v304
      %v332 = vpop.f32.mrf.mxu0
      %v333 = vadd.f32 0.0, %v332
      %334 = vmatmul.f32.gmra.mxu0 %v307
      %v335 = vpop.f32.mrf.mxu0
      %v336 = vadd.f32 0.0, %v335
      %337 = vmatmul.f32.gmra.mxu0 %v310
      %v338 = vpop.f32.mrf.mxu0
      %v339 = vadd.f32 0.0, %v338
      %340 = vdwg.mxu0
      %v341 = vmax.f32 %v285, %v330
      %v342 = vmax.f32 %v288, %v333
      %v343 = vmax.f32 %v291, %v336
      %v344 = vmax.f32 %v294, %v339
      %v345 = vld [vmem:[%s234 + $0x40] sm:$0xff]
      %v346 = vld [vmem:[%s234 + $0x48] sm:$0xff]
      %v347 = vld [vmem:[%s234 + $0x50] sm:$0xff]
      %v348 = vld [vmem:[%s234 + $0x58] sm:$0xff]
      %v350 = vsel %vm250, %v345, 0
      %v353 = vsel %vm250, %v346, 0
      %v356 = vsel %vm250, %v347, 0
      %v359 = vsel %vm250, %v348, 0
      %361 = vmatpush.msra.mxu0 0.0
      %362 = vmatpush.msra.mxu0 0.0
      %363 = vmatpush.msra.mxu0 0.0
      %364 = vmatpush.msra.mxu0 0.0
      %365 = vmatpush.msra.mxu0 0.0
      %366 = vmatpush.msra.mxu0 0.0
      %367 = vmatpush.msra.mxu0 0.0
      %368 = vmatpush.msra.mxu0 0.0
      %369 = vmatpush.msra.mxu0 0.0
      %370 = vmatpush.msra.mxu0 0.0
      %371 = vmatpush.msra.mxu0 0.0
      %372 = vmatpush.msra.mxu0 0.0
      %373 = vmatpush.msra.mxu0 0.0
      %374 = vmatpush.msra.mxu0 0.0
      %375 = vmatpush.msra.mxu0 0.0
      %376 = vmatpush.msra.mxu0 %v265
      %377 = vmatmul.f32.gmra.mxu0 %v350
      %v378 = vpop.f32.mrf.mxu0
      %v379 = vadd.f32 0.0, %v378
      %380 = vmatmul.f32.gmra.mxu0 %v353
      %v381 = vpop.f32.mrf.mxu0
      %v382 = vadd.f32 0.0, %v381
      %383 = vmatmul.f32.gmra.mxu0 %v356
      %v384 = vpop.f32.mrf.mxu0
      %v385 = vadd.f32 0.0, %v384
      %386 = vmatmul.f32.gmra.mxu0 %v359
      %v387 = vpop.f32.mrf.mxu0
      %v388 = vadd.f32 0.0, %v387
      %389 = vdwg.mxu0
      %v390 = vmax.f32 %v341, %v379
      %v391 = vmax.f32 %v342, %v382
      %v392 = vmax.f32 %v343, %v385
      %v393 = vmax.f32 %v344, %v388
      %v394 = vld [vmem:[%s234 + $0x60] sm:$0xff]
      %v395 = vld [vmem:[%s234 + $0x68] sm:$0xff]
      %v396 = vld [vmem:[%s234 + $0x70] sm:$0xff]
      %v397 = vld [vmem:[%s234 + $0x78] sm:$0xff]
      %v399 = vsel %vm250, %v394, 0
      %v402 = vsel %vm250, %v395, 0
      %v405 = vsel %vm250, %v396, 0
      %v408 = vsel %vm250, %v397, 0
      %410 = vmatpush.msra.mxu0 0.0
      %411 = vmatpush.msra.mxu0 0.0
      %412 = vmatpush.msra.mxu0 0.0
      %413 = vmatpush.msra.mxu0 0.0
      %414 = vmatpush.msra.mxu0 0.0
      %415 = vmatpush.msra.mxu0 0.0
      %416 = vmatpush.msra.mxu0 0.0
      %417 = vmatpush.msra.mxu0 0.0
      %418 = vmatpush.msra.mxu0 0.0
      %419 = vmatpush.msra.mxu0 0.0
      %420 = vmatpush.msra.mxu0 0.0
      %421 = vmatpush.msra.mxu0 0.0
      %422 = vmatpush.msra.mxu0 0.0
      %423 = vmatpush.msra.mxu0 0.0
      %424 = vmatpush.msra.mxu0 0.0
      %425 = vmatpush.msra.mxu0 %v265
      %426 = vmatmul.f32.gmra.mxu0 %v399
      %v427 = vpop.f32.mrf.mxu0
      %v428 = vadd.f32 0.0, %v427
      %429 = vmatmul.f32.gmra.mxu0 %v402
      %v430 = vpop.f32.mrf.mxu0
      %v431 = vadd.f32 0.0, %v430
      %432 = vmatmul.f32.gmra.mxu0 %v405
      %v433 = vpop.f32.mrf.mxu0
      %v434 = vadd.f32 0.0, %v433
      %435 = vmatmul.f32.gmra.mxu0 %v408
      %v436 = vpop.f32.mrf.mxu0
      %v437 = vadd.f32 0.0, %v436
      %438 = vdwg.mxu0
      %v439 = vmax.f32 %v390, %v428
      %v440 = vmax.f32 %v391, %v431
      %v441 = vmax.f32 %v392, %v434
      %v442 = vmax.f32 %v393, %v437
      %v443 = vld [vmem:[%s234 + $0x80] sm:$0xff]
      %v444 = vld [vmem:[%s234 + $0x88] sm:$0xff]
      %v445 = vld [vmem:[%s234 + $0x90] sm:$0xff]
      %v446 = vld [vmem:[%s234 + $0x98] sm:$0xff]
      %v448 = vsel %vm250, %v443, 0
      %v451 = vsel %vm250, %v444, 0
      %v454 = vsel %vm250, %v445, 0
      %v457 = vsel %vm250, %v446, 0
      %459 = vmatpush.msra.mxu0 0.0
      %460 = vmatpush.msra.mxu0 0.0
      %461 = vmatpush.msra.mxu0 0.0
      %462 = vmatpush.msra.mxu0 0.0
      %463 = vmatpush.msra.mxu0 0.0
      %464 = vmatpush.msra.mxu0 0.0
      %465 = vmatpush.msra.mxu0 0.0
      %466 = vmatpush.msra.mxu0 0.0
      %467 = vmatpush.msra.mxu0 0.0
      %468 = vmatpush.msra.mxu0 0.0
      %469 = vmatpush.msra.mxu0 0.0
      %470 = vmatpush.msra.mxu0 0.0
      %471 = vmatpush.msra.mxu0 0.0
      %472 = vmatpush.msra.mxu0 0.0
      %473 = vmatpush.msra.mxu0 0.0
      %474 = vmatpush.msra.mxu0 %v265
      %475 = vmatmul.f32.gmra.mxu0 %v448
      %v476 = vpop.f32.mrf.mxu0
      %v477 = vadd.f32 0.0, %v476
      %478 = vmatmul.f32.gmra.mxu0 %v451
      %v479 = vpop.f32.mrf.mxu0
      %v480 = vadd.f32 0.0, %v479
      %481 = vmatmul.f32.gmra.mxu0 %v454
      %v482 = vpop.f32.mrf.mxu0
      %v483 = vadd.f32 0.0, %v482
      %484 = vmatmul.f32.gmra.mxu0 %v457
      %v485 = vpop.f32.mrf.mxu0
      %v486 = vadd.f32 0.0, %v485
      %487 = vdwg.mxu0
      %v488 = vmax.f32 %v439, %v477
      %v489 = vmax.f32 %v440, %v480
      %v490 = vmax.f32 %v441, %v483
      %v491 = vmax.f32 %v442, %v486
      %v492 = vld [vmem:[%s234 + $0xa0] sm:$0xff]
      %v493 = vld [vmem:[%s234 + $0xa8] sm:$0xff]
      %v494 = vld [vmem:[%s234 + $0xb0] sm:$0xff]
      %v495 = vld [vmem:[%s234 + $0xb8] sm:$0xff]
      %v497 = vsel %vm250, %v492, 0
      %v500 = vsel %vm250, %v493, 0
      %v503 = vsel %vm250, %v494, 0
      %v506 = vsel %vm250, %v495, 0
      %508 = vmatpush.msra.mxu0 0.0
      %509 = vmatpush.msra.mxu0 0.0
      %510 = vmatpush.msra.mxu0 0.0
      %511 = vmatpush.msra.mxu0 0.0
      %512 = vmatpush.msra.mxu0 0.0
      %513 = vmatpush.msra.mxu0 0.0
      %514 = vmatpush.msra.mxu0 0.0
      %515 = vmatpush.msra.mxu0 0.0
      %516 = vmatpush.msra.mxu0 0.0
      %517 = vmatpush.msra.mxu0 0.0
      %518 = vmatpush.msra.mxu0 0.0
      %519 = vmatpush.msra.mxu0 0.0
      %520 = vmatpush.msra.mxu0 0.0
      %521 = vmatpush.msra.mxu0 0.0
      %522 = vmatpush.msra.mxu0 0.0
      %523 = vmatpush.msra.mxu0 %v265
      %524 = vmatmul.f32.gmra.mxu0 %v497
      %v525 = vpop.f32.mrf.mxu0
      %v526 = vadd.f32 0.0, %v525
      %527 = vmatmul.f32.gmra.mxu0 %v500
      %v528 = vpop.f32.mrf.mxu0
      %v529 = vadd.f32 0.0, %v528
      %530 = vmatmul.f32.gmra.mxu0 %v503
      %v531 = vpop.f32.mrf.mxu0
      %v532 = vadd.f32 0.0, %v531
      %533 = vmatmul.f32.gmra.mxu0 %v506
      %v534 = vpop.f32.mrf.mxu0
      %v535 = vadd.f32 0.0, %v534
      %536 = vdwg.mxu0
      %v537 = vmax.f32 %v488, %v526
      %v538 = vmax.f32 %v489, %v529
      %v539 = vmax.f32 %v490, %v532
      %v540 = vmax.f32 %v491, %v535
      %v541 = vld [vmem:[%s234 + $0xc0] sm:$0xff]
      %v542 = vld [vmem:[%s234 + $0xc8] sm:$0xff]
      %v543 = vld [vmem:[%s234 + $0xd0] sm:$0xff]
      %v544 = vld [vmem:[%s234 + $0xd8] sm:$0xff]
      %v546 = vsel %vm250, %v541, 0
      %v549 = vsel %vm250, %v542, 0
      %v552 = vsel %vm250, %v543, 0
      %v555 = vsel %vm250, %v544, 0
      %557 = vmatpush.msra.mxu0 0.0
      %558 = vmatpush.msra.mxu0 0.0
      %559 = vmatpush.msra.mxu0 0.0
      %560 = vmatpush.msra.mxu0 0.0
      %561 = vmatpush.msra.mxu0 0.0
      %562 = vmatpush.msra.mxu0 0.0
      %563 = vmatpush.msra.mxu0 0.0
      %564 = vmatpush.msra.mxu0 0.0
      %565 = vmatpush.msra.mxu0 0.0
      %566 = vmatpush.msra.mxu0 0.0
      %567 = vmatpush.msra.mxu0 0.0
      %568 = vmatpush.msra.mxu0 0.0
      %569 = vmatpush.msra.mxu0 0.0
      %570 = vmatpush.msra.mxu0 0.0
      %571 = vmatpush.msra.mxu0 0.0
      %572 = vmatpush.msra.mxu0 %v265
      %573 = vmatmul.f32.gmra.mxu0 %v546
      %v574 = vpop.f32.mrf.mxu0
      %v575 = vadd.f32 0.0, %v574
      %576 = vmatmul.f32.gmra.mxu0 %v549
      %v577 = vpop.f32.mrf.mxu0
      %v578 = vadd.f32 0.0, %v577
      %579 = vmatmul.f32.gmra.mxu0 %v552
      %v580 = vpop.f32.mrf.mxu0
      %v581 = vadd.f32 0.0, %v580
      %582 = vmatmul.f32.gmra.mxu0 %v555
      %v583 = vpop.f32.mrf.mxu0
      %v584 = vadd.f32 0.0, %v583
      %585 = vdwg.mxu0
      %v586 = vmax.f32 %v537, %v575
      %v587 = vmax.f32 %v538, %v578
      %v588 = vmax.f32 %v539, %v581
      %v589 = vmax.f32 %v540, %v584
      %v590 = vld [vmem:[%s234 + $0xe0] sm:$0xff]
      %v591 = vld [vmem:[%s234 + $0xe8] sm:$0xff]
      %v592 = vld [vmem:[%s234 + $0xf0] sm:$0xff]
      %v593 = vld [vmem:[%s234 + $0xf8] sm:$0xff]
      %v595 = vsel %vm250, %v590, 0
      %v598 = vsel %vm250, %v591, 0
      %v601 = vsel %vm250, %v592, 0
      %v604 = vsel %vm250, %v593, 0
      %606 = vmatpush.msra.mxu0 0.0
      %607 = vmatpush.msra.mxu0 0.0
      %608 = vmatpush.msra.mxu0 0.0
      %609 = vmatpush.msra.mxu0 0.0
      %610 = vmatpush.msra.mxu0 0.0
      %611 = vmatpush.msra.mxu0 0.0
      %612 = vmatpush.msra.mxu0 0.0
      %613 = vmatpush.msra.mxu0 0.0
      %614 = vmatpush.msra.mxu0 0.0
      %615 = vmatpush.msra.mxu0 0.0
      %616 = vmatpush.msra.mxu0 0.0
      %617 = vmatpush.msra.mxu0 0.0
      %618 = vmatpush.msra.mxu0 0.0
      %619 = vmatpush.msra.mxu0 0.0
      %620 = vmatpush.msra.mxu0 0.0
      %621 = vmatpush.msra.mxu0 %v265
      %622 = vmatmul.f32.gmra.mxu0 %v595
      %v623 = vpop.f32.mrf.mxu0
      %v624 = vadd.f32 0.0, %v623
      %625 = vmatmul.f32.gmra.mxu0 %v598
      %v626 = vpop.f32.mrf.mxu0
      %v627 = vadd.f32 0.0, %v626
      %628 = vmatmul.f32.gmra.mxu0 %v601
      %v629 = vpop.f32.mrf.mxu0
      %v630 = vadd.f32 0.0, %v629
      %631 = vmatmul.f32.gmra.mxu0 %v604
      %v632 = vpop.f32.mrf.mxu0
      %v633 = vadd.f32 0.0, %v632
      %634 = vdwg.mxu0
      %v635 = vmax.f32 %v586, %v624
      %v636 = vmax.f32 %v587, %v627
      %v637 = vmax.f32 %v588, %v630
      %v638 = vmax.f32 %v589, %v633
      %v639 = vld [vmem:[%s234 + $0x100] sm:$0xff]
      %v640 = vld [vmem:[%s234 + $0x108] sm:$0xff]
      %v641 = vld [vmem:[%s234 + $0x110] sm:$0xff]
      %v642 = vld [vmem:[%s234 + $0x118] sm:$0xff]
      %v644 = vsel %vm250, %v639, 0
      %v647 = vsel %vm250, %v640, 0
      %v650 = vsel %vm250, %v641, 0
      %v653 = vsel %vm250, %v642, 0
      %655 = vmatpush.msra.mxu0 0.0
      %656 = vmatpush.msra.mxu0 0.0
      %657 = vmatpush.msra.mxu0 0.0
      %658 = vmatpush.msra.mxu0 0.0
      %659 = vmatpush.msra.mxu0 0.0
      %660 = vmatpush.msra.mxu0 0.0
      %661 = vmatpush.msra.mxu0 0.0
      %662 = vmatpush.msra.mxu0 0.0
      %663 = vmatpush.msra.mxu0 0.0
      %664 = vmatpush.msra.mxu0 0.0
      %665 = vmatpush.msra.mxu0 0.0
      %666 = vmatpush.msra.mxu0 0.0
      %667 = vmatpush.msra.mxu0 0.0
      %668 = vmatpush.msra.mxu0 0.0
      %669 = vmatpush.msra.mxu0 0.0
      %670 = vmatpush.msra.mxu0 %v265
      %671 = vmatmul.f32.gmra.mxu0 %v644
      %v672 = vpop.f32.mrf.mxu0
      %v673 = vadd.f32 0.0, %v672
      %674 = vmatmul.f32.gmra.mxu0 %v647
      %v675 = vpop.f32.mrf.mxu0
      %v676 = vadd.f32 0.0, %v675
      %677 = vmatmul.f32.gmra.mxu0 %v650
      %v678 = vpop.f32.mrf.mxu0
      %v679 = vadd.f32 0.0, %v678
      %680 = vmatmul.f32.gmra.mxu0 %v653
      %v681 = vpop.f32.mrf.mxu0
      %v682 = vadd.f32 0.0, %v681
      %683 = vdwg.mxu0
      %v684 = vmax.f32 %v635, %v673
      %v685 = vmax.f32 %v636, %v676
      %v686 = vmax.f32 %v637, %v679
      %v687 = vmax.f32 %v638, %v682
      %v688 = vld [vmem:[%s234 + $0x120] sm:$0xff]
      %v689 = vld [vmem:[%s234 + $0x128] sm:$0xff]
      %v690 = vld [vmem:[%s234 + $0x130] sm:$0xff]
      %v691 = vld [vmem:[%s234 + $0x138] sm:$0xff]
      %v693 = vsel %vm250, %v688, 0
      %v696 = vsel %vm250, %v689, 0
      %v699 = vsel %vm250, %v690, 0
      %v702 = vsel %vm250, %v691, 0
      %704 = vmatpush.msra.mxu0 0.0
      %705 = vmatpush.msra.mxu0 0.0
      %706 = vmatpush.msra.mxu0 0.0
      %707 = vmatpush.msra.mxu0 0.0
      %708 = vmatpush.msra.mxu0 0.0
      %709 = vmatpush.msra.mxu0 0.0
      %710 = vmatpush.msra.mxu0 0.0
      %711 = vmatpush.msra.mxu0 0.0
      %712 = vmatpush.msra.mxu0 0.0
      %713 = vmatpush.msra.mxu0 0.0
      %714 = vmatpush.msra.mxu0 0.0
      %715 = vmatpush.msra.mxu0 0.0
      %716 = vmatpush.msra.mxu0 0.0
      %717 = vmatpush.msra.mxu0 0.0
      %718 = vmatpush.msra.mxu0 0.0
      %719 = vmatpush.msra.mxu0 %v265
      %720 = vmatmul.f32.gmra.mxu0 %v693
      %v721 = vpop.f32.mrf.mxu0
      %v722 = vadd.f32 0.0, %v721
      %723 = vmatmul.f32.gmra.mxu0 %v696
      %v724 = vpop.f32.mrf.mxu0
      %v725 = vadd.f32 0.0, %v724
      %726 = vmatmul.f32.gmra.mxu0 %v699
      %v727 = vpop.f32.mrf.mxu0
      %v728 = vadd.f32 0.0, %v727
      %729 = vmatmul.f32.gmra.mxu0 %v702
      %v730 = vpop.f32.mrf.mxu0
      %v731 = vadd.f32 0.0, %v730
      %732 = vdwg.mxu0
      %v733 = vmax.f32 %v684, %v722
      %v734 = vmax.f32 %v685, %v725
      %v735 = vmax.f32 %v686, %v728
      %v736 = vmax.f32 %v687, %v731
      %v737 = vld [vmem:[%s234 + $0x140] sm:$0xff]
      %v738 = vld [vmem:[%s234 + $0x148] sm:$0xff]
      %v739 = vld [vmem:[%s234 + $0x150] sm:$0xff]
      %v740 = vld [vmem:[%s234 + $0x158] sm:$0xff]
      %v742 = vsel %vm250, %v737, 0
      %v745 = vsel %vm250, %v738, 0
      %v748 = vsel %vm250, %v739, 0
      %v751 = vsel %vm250, %v740, 0
      %753 = vmatpush.msra.mxu0 0.0
      %754 = vmatpush.msra.mxu0 0.0
      %755 = vmatpush.msra.mxu0 0.0
      %756 = vmatpush.msra.mxu0 0.0
      %757 = vmatpush.msra.mxu0 0.0
      %758 = vmatpush.msra.mxu0 0.0
      %759 = vmatpush.msra.mxu0 0.0
      %760 = vmatpush.msra.mxu0 0.0
      %761 = vmatpush.msra.mxu0 0.0
      %762 = vmatpush.msra.mxu0 0.0
      %763 = vmatpush.msra.mxu0 0.0
      %764 = vmatpush.msra.mxu0 0.0
      %765 = vmatpush.msra.mxu0 0.0
      %766 = vmatpush.msra.mxu0 0.0
      %767 = vmatpush.msra.mxu0 0.0
      %768 = vmatpush.msra.mxu0 %v265
      %769 = vmatmul.f32.gmra.mxu0 %v742
      %v770 = vpop.f32.mrf.mxu0
      %v771 = vadd.f32 0.0, %v770
      %772 = vmatmul.f32.gmra.mxu0 %v745
      %v773 = vpop.f32.mrf.mxu0
      %v774 = vadd.f32 0.0, %v773
      %775 = vmatmul.f32.gmra.mxu0 %v748
      %v776 = vpop.f32.mrf.mxu0
      %v777 = vadd.f32 0.0, %v776
      %778 = vmatmul.f32.gmra.mxu0 %v751
      %v779 = vpop.f32.mrf.mxu0
      %v780 = vadd.f32 0.0, %v779
      %781 = vdwg.mxu0
      %v782 = vmax.f32 %v733, %v771
      %v783 = vmax.f32 %v734, %v774
      %v784 = vmax.f32 %v735, %v777
      %v785 = vmax.f32 %v736, %v780
      %v786 = vld [vmem:[%s234 + $0x160] sm:$0xff]
      %v787 = vld [vmem:[%s234 + $0x168] sm:$0xff]
      %v788 = vld [vmem:[%s234 + $0x170] sm:$0xff]
      %v789 = vld [vmem:[%s234 + $0x178] sm:$0xff]
      %v791 = vsel %vm250, %v786, 0
      %v794 = vsel %vm250, %v787, 0
      %v797 = vsel %vm250, %v788, 0
      %v800 = vsel %vm250, %v789, 0
      %802 = vmatpush.msra.mxu0 0.0
      %803 = vmatpush.msra.mxu0 0.0
      %804 = vmatpush.msra.mxu0 0.0
      %805 = vmatpush.msra.mxu0 0.0
      %806 = vmatpush.msra.mxu0 0.0
      %807 = vmatpush.msra.mxu0 0.0
      %808 = vmatpush.msra.mxu0 0.0
      %809 = vmatpush.msra.mxu0 0.0
      %810 = vmatpush.msra.mxu0 0.0
      %811 = vmatpush.msra.mxu0 0.0
      %812 = vmatpush.msra.mxu0 0.0
      %813 = vmatpush.msra.mxu0 0.0
      %814 = vmatpush.msra.mxu0 0.0
      %815 = vmatpush.msra.mxu0 0.0
      %816 = vmatpush.msra.mxu0 0.0
      %817 = vmatpush.msra.mxu0 %v265
      %818 = vmatmul.f32.gmra.mxu0 %v791
      %v819 = vpop.f32.mrf.mxu0
      %v820 = vadd.f32 0.0, %v819
      %821 = vmatmul.f32.gmra.mxu0 %v794
      %v822 = vpop.f32.mrf.mxu0
      %v823 = vadd.f32 0.0, %v822
      %824 = vmatmul.f32.gmra.mxu0 %v797
      %v825 = vpop.f32.mrf.mxu0
      %v826 = vadd.f32 0.0, %v825
      %827 = vmatmul.f32.gmra.mxu0 %v800
      %v828 = vpop.f32.mrf.mxu0
      %v829 = vadd.f32 0.0, %v828
      %830 = vdwg.mxu0
      %v831 = vmax.f32 %v782, %v820
      %v832 = vmax.f32 %v783, %v823
      %v833 = vmax.f32 %v784, %v826
      %v834 = vmax.f32 %v785, %v829
      %v835 = vld [vmem:[%s234 + $0x180] sm:$0xff]
      %v836 = vld [vmem:[%s234 + $0x188] sm:$0xff]
      %v837 = vld [vmem:[%s234 + $0x190] sm:$0xff]
      %v838 = vld [vmem:[%s234 + $0x198] sm:$0xff]
      %v840 = vsel %vm250, %v835, 0
      %v843 = vsel %vm250, %v836, 0
      %v846 = vsel %vm250, %v837, 0
      %v849 = vsel %vm250, %v838, 0
      %851 = vmatpush.msra.mxu0 0.0
      %852 = vmatpush.msra.mxu0 0.0
      %853 = vmatpush.msra.mxu0 0.0
      %854 = vmatpush.msra.mxu0 0.0
      %855 = vmatpush.msra.mxu0 0.0
      %856 = vmatpush.msra.mxu0 0.0
      %857 = vmatpush.msra.mxu0 0.0
      %858 = vmatpush.msra.mxu0 0.0
      %859 = vmatpush.msra.mxu0 0.0
      %860 = vmatpush.msra.mxu0 0.0
      %861 = vmatpush.msra.mxu0 0.0
      %862 = vmatpush.msra.mxu0 0.0
      %863 = vmatpush.msra.mxu0 0.0
      %864 = vmatpush.msra.mxu0 0.0
      %865 = vmatpush.msra.mxu0 0.0
      %866 = vmatpush.msra.mxu0 %v265
      %867 = vmatmul.f32.gmra.mxu0 %v840
      %v868 = vpop.f32.mrf.mxu0
      %v869 = vadd.f32 0.0, %v868
      %870 = vmatmul.f32.gmra.mxu0 %v843
      %v871 = vpop.f32.mrf.mxu0
      %v872 = vadd.f32 0.0, %v871
      %873 = vmatmul.f32.gmra.mxu0 %v846
      %v874 = vpop.f32.mrf.mxu0
      %v875 = vadd.f32 0.0, %v874
      %876 = vmatmul.f32.gmra.mxu0 %v849
      %v877 = vpop.f32.mrf.mxu0
      %v878 = vadd.f32 0.0, %v877
      %879 = vdwg.mxu0
      %v880 = vmax.f32 %v831, %v869
      %v881 = vmax.f32 %v832, %v872
      %v882 = vmax.f32 %v833, %v875
      %v883 = vmax.f32 %v834, %v878
      %v884 = vld [vmem:[%s234 + $0x1a0] sm:$0xff]
      %v885 = vld [vmem:[%s234 + $0x1a8] sm:$0xff]
      %v886 = vld [vmem:[%s234 + $0x1b0] sm:$0xff]
      %v887 = vld [vmem:[%s234 + $0x1b8] sm:$0xff]
      %v889 = vsel %vm250, %v884, 0
      %v892 = vsel %vm250, %v885, 0
      %v895 = vsel %vm250, %v886, 0
      %v898 = vsel %vm250, %v887, 0
      %900 = vmatpush.msra.mxu0 0.0
      %901 = vmatpush.msra.mxu0 0.0
      %902 = vmatpush.msra.mxu0 0.0
      %903 = vmatpush.msra.mxu0 0.0
      %904 = vmatpush.msra.mxu0 0.0
      %905 = vmatpush.msra.mxu0 0.0
      %906 = vmatpush.msra.mxu0 0.0
      %907 = vmatpush.msra.mxu0 0.0
      %908 = vmatpush.msra.mxu0 0.0
      %909 = vmatpush.msra.mxu0 0.0
      %910 = vmatpush.msra.mxu0 0.0
      %911 = vmatpush.msra.mxu0 0.0
      %912 = vmatpush.msra.mxu0 0.0
      %913 = vmatpush.msra.mxu0 0.0
      %914 = vmatpush.msra.mxu0 0.0
      %915 = vmatpush.msra.mxu0 %v265
      %916 = vmatmul.f32.gmra.mxu0 %v889
      %v917 = vpop.f32.mrf.mxu0
      %v918 = vadd.f32 0.0, %v917
      %919 = vmatmul.f32.gmra.mxu0 %v892
      %v920 = vpop.f32.mrf.mxu0
      %v921 = vadd.f32 0.0, %v920
      %922 = vmatmul.f32.gmra.mxu0 %v895
      %v923 = vpop.f32.mrf.mxu0
      %v924 = vadd.f32 0.0, %v923
      %925 = vmatmul.f32.gmra.mxu0 %v898
      %v926 = vpop.f32.mrf.mxu0
      %v927 = vadd.f32 0.0, %v926
      %928 = vdwg.mxu0
      %v929 = vmax.f32 %v880, %v918
      %v930 = vmax.f32 %v881, %v921
      %v931 = vmax.f32 %v882, %v924
      %v932 = vmax.f32 %v883, %v927
      %v933 = vld [vmem:[%s234 + $0x1c0] sm:$0xff]
      %v934 = vld [vmem:[%s234 + $0x1c8] sm:$0xff]
      %v935 = vld [vmem:[%s234 + $0x1d0] sm:$0xff]
      %v936 = vld [vmem:[%s234 + $0x1d8] sm:$0xff]
      %v938 = vsel %vm250, %v933, 0
      %v941 = vsel %vm250, %v934, 0
      %v944 = vsel %vm250, %v935, 0
      %v947 = vsel %vm250, %v936, 0
      %949 = vmatpush.msra.mxu0 0.0
      %950 = vmatpush.msra.mxu0 0.0
      %951 = vmatpush.msra.mxu0 0.0
      %952 = vmatpush.msra.mxu0 0.0
      %953 = vmatpush.msra.mxu0 0.0
      %954 = vmatpush.msra.mxu0 0.0
      %955 = vmatpush.msra.mxu0 0.0
      %956 = vmatpush.msra.mxu0 0.0
      %957 = vmatpush.msra.mxu0 0.0
      %958 = vmatpush.msra.mxu0 0.0
      %959 = vmatpush.msra.mxu0 0.0
      %960 = vmatpush.msra.mxu0 0.0
      %961 = vmatpush.msra.mxu0 0.0
      %962 = vmatpush.msra.mxu0 0.0
      %963 = vmatpush.msra.mxu0 0.0
      %964 = vmatpush.msra.mxu0 %v265
      %965 = vmatmul.f32.gmra.mxu0 %v938
      %v966 = vpop.f32.mrf.mxu0
      %v967 = vadd.f32 0.0, %v966
      %968 = vmatmul.f32.gmra.mxu0 %v941
      %v969 = vpop.f32.mrf.mxu0
      %v970 = vadd.f32 0.0, %v969
      %971 = vmatmul.f32.gmra.mxu0 %v944
      %v972 = vpop.f32.mrf.mxu0
      %v973 = vadd.f32 0.0, %v972
      %974 = vmatmul.f32.gmra.mxu0 %v947
      %v975 = vpop.f32.mrf.mxu0
      %v976 = vadd.f32 0.0, %v975
      %977 = vdwg.mxu0
      %v978 = vmax.f32 %v929, %v967
      %v979 = vmax.f32 %v930, %v970
      %v980 = vmax.f32 %v931, %v973
      %v981 = vmax.f32 %v932, %v976
      %v982 = vld [vmem:[%s234 + $0x1e0] sm:$0xff]
      %v983 = vld [vmem:[%s234 + $0x1e8] sm:$0xff]
      %v984 = vld [vmem:[%s234 + $0x1f0] sm:$0xff]
      %v985 = vld [vmem:[%s234 + $0x1f8] sm:$0xff]
      %v987 = vsel %vm250, %v982, 0
      %v990 = vsel %vm250, %v983, 0
      %v993 = vsel %vm250, %v984, 0
      %v996 = vsel %vm250, %v985, 0
      %998 = vmatpush.msra.mxu0 0.0
      %999 = vmatpush.msra.mxu0 0.0
      %1000 = vmatpush.msra.mxu0 0.0
      %1001 = vmatpush.msra.mxu0 0.0
      %1002 = vmatpush.msra.mxu0 0.0
      %1003 = vmatpush.msra.mxu0 0.0
      %1004 = vmatpush.msra.mxu0 0.0
      %1005 = vmatpush.msra.mxu0 0.0
      %1006 = vmatpush.msra.mxu0 0.0
      %1007 = vmatpush.msra.mxu0 0.0
      %1008 = vmatpush.msra.mxu0 0.0
      %1009 = vmatpush.msra.mxu0 0.0
      %1010 = vmatpush.msra.mxu0 0.0
      %1011 = vmatpush.msra.mxu0 0.0
      %1012 = vmatpush.msra.mxu0 0.0
      %1013 = vmatpush.msra.mxu0 %v265
      %1014 = vmatmul.f32.gmra.mxu0 %v987
      %v1015 = vpop.f32.mrf.mxu0
      %v1016 = vadd.f32 0.0, %v1015
      %1017 = vmatmul.f32.gmra.mxu0 %v990
      %v1018 = vpop.f32.mrf.mxu0
      %v1019 = vadd.f32 0.0, %v1018
      %1020 = vmatmul.f32.gmra.mxu0 %v993
      %v1021 = vpop.f32.mrf.mxu0
      %v1022 = vadd.f32 0.0, %v1021
      %1023 = vmatmul.f32.gmra.mxu0 %v996
      %v1024 = vpop.f32.mrf.mxu0
      %v1025 = vadd.f32 0.0, %v1024
      %1026 = vdwg.mxu0
      %v1027 = vmax.f32 %v978, %v1016
      %v1028 = vmax.f32 %v979, %v1019
      %v1029 = vmax.f32 %v980, %v1022
      %v1030 = vmax.f32 %v981, %v1025
      %v1031 = vld [vmem:[%s234 + $0x200] sm:$0xff]
      %v1032 = vld [vmem:[%s234 + $0x208] sm:$0xff]
      %v1033 = vld [vmem:[%s234 + $0x210] sm:$0xff]
      %v1034 = vld [vmem:[%s234 + $0x218] sm:$0xff]
      %v1036 = vsel %vm250, %v1031, 0
      %v1039 = vsel %vm250, %v1032, 0
      %v1042 = vsel %vm250, %v1033, 0
      %v1045 = vsel %vm250, %v1034, 0
      %1047 = vmatpush.msra.mxu0 0.0
      %1048 = vmatpush.msra.mxu0 0.0
      %1049 = vmatpush.msra.mxu0 0.0
      %1050 = vmatpush.msra.mxu0 0.0
      %1051 = vmatpush.msra.mxu0 0.0
      %1052 = vmatpush.msra.mxu0 0.0
      %1053 = vmatpush.msra.mxu0 0.0
      %1054 = vmatpush.msra.mxu0 0.0
      %1055 = vmatpush.msra.mxu0 0.0
      %1056 = vmatpush.msra.mxu0 0.0
      %1057 = vmatpush.msra.mxu0 0.0
      %1058 = vmatpush.msra.mxu0 0.0
      %1059 = vmatpush.msra.mxu0 0.0
      %1060 = vmatpush.msra.mxu0 0.0
      %1061 = vmatpush.msra.mxu0 0.0
      %1062 = vmatpush.msra.mxu0 %v265
      %1063 = vmatmul.f32.gmra.mxu0 %v1036
      %v1064 = vpop.f32.mrf.mxu0
      %v1065 = vadd.f32 0.0, %v1064
      %1066 = vmatmul.f32.gmra.mxu0 %v1039
      %v1067 = vpop.f32.mrf.mxu0
      %v1068 = vadd.f32 0.0, %v1067
      %1069 = vmatmul.f32.gmra.mxu0 %v1042
      %v1070 = vpop.f32.mrf.mxu0
      %v1071 = vadd.f32 0.0, %v1070
      %1072 = vmatmul.f32.gmra.mxu0 %v1045
      %v1073 = vpop.f32.mrf.mxu0
      %v1074 = vadd.f32 0.0, %v1073
      %1075 = vdwg.mxu0
      %v1076 = vmax.f32 %v1027, %v1065
      %v1077 = vmax.f32 %v1028, %v1068
      %v1078 = vmax.f32 %v1029, %v1071
      %v1079 = vmax.f32 %v1030, %v1074
      %v1080 = vld [vmem:[%s234 + $0x220] sm:$0xff]
      %v1081 = vld [vmem:[%s234 + $0x228] sm:$0xff]
      %v1082 = vld [vmem:[%s234 + $0x230] sm:$0xff]
      %v1083 = vld [vmem:[%s234 + $0x238] sm:$0xff]
      %v1085 = vsel %vm250, %v1080, 0
      %v1088 = vsel %vm250, %v1081, 0
      %v1091 = vsel %vm250, %v1082, 0
      %v1094 = vsel %vm250, %v1083, 0
      %1096 = vmatpush.msra.mxu0 0.0
      %1097 = vmatpush.msra.mxu0 0.0
      %1098 = vmatpush.msra.mxu0 0.0
      %1099 = vmatpush.msra.mxu0 0.0
      %1100 = vmatpush.msra.mxu0 0.0
      %1101 = vmatpush.msra.mxu0 0.0
      %1102 = vmatpush.msra.mxu0 0.0
      %1103 = vmatpush.msra.mxu0 0.0
      %1104 = vmatpush.msra.mxu0 0.0
      %1105 = vmatpush.msra.mxu0 0.0
      %1106 = vmatpush.msra.mxu0 0.0
      %1107 = vmatpush.msra.mxu0 0.0
      %1108 = vmatpush.msra.mxu0 0.0
      %1109 = vmatpush.msra.mxu0 0.0
      %1110 = vmatpush.msra.mxu0 0.0
      %1111 = vmatpush.msra.mxu0 %v265
      %1112 = vmatmul.f32.gmra.mxu0 %v1085
      %v1113 = vpop.f32.mrf.mxu0
      %v1114 = vadd.f32 0.0, %v1113
      %1115 = vmatmul.f32.gmra.mxu0 %v1088
      %v1116 = vpop.f32.mrf.mxu0
      %v1117 = vadd.f32 0.0, %v1116
      %1118 = vmatmul.f32.gmra.mxu0 %v1091
      %v1119 = vpop.f32.mrf.mxu0
      %v1120 = vadd.f32 0.0, %v1119
      %1121 = vmatmul.f32.gmra.mxu0 %v1094
      %v1122 = vpop.f32.mrf.mxu0
      %v1123 = vadd.f32 0.0, %v1122
      %1124 = vdwg.mxu0
      %v1125 = vmax.f32 %v1076, %v1114
      %v1126 = vmax.f32 %v1077, %v1117
      %v1127 = vmax.f32 %v1078, %v1120
      %v1128 = vmax.f32 %v1079, %v1123
      %v1129 = vld [vmem:[%s234 + $0x240] sm:$0xff]
      %v1130 = vld [vmem:[%s234 + $0x248] sm:$0xff]
      %v1131 = vld [vmem:[%s234 + $0x250] sm:$0xff]
      %v1132 = vld [vmem:[%s234 + $0x258] sm:$0xff]
      %v1134 = vsel %vm250, %v1129, 0
      %v1137 = vsel %vm250, %v1130, 0
      %v1140 = vsel %vm250, %v1131, 0
      %v1143 = vsel %vm250, %v1132, 0
      %1145 = vmatpush.msra.mxu0 0.0
      %1146 = vmatpush.msra.mxu0 0.0
      %1147 = vmatpush.msra.mxu0 0.0
      %1148 = vmatpush.msra.mxu0 0.0
      %1149 = vmatpush.msra.mxu0 0.0
      %1150 = vmatpush.msra.mxu0 0.0
      %1151 = vmatpush.msra.mxu0 0.0
      %1152 = vmatpush.msra.mxu0 0.0
      %1153 = vmatpush.msra.mxu0 0.0
      %1154 = vmatpush.msra.mxu0 0.0
      %1155 = vmatpush.msra.mxu0 0.0
      %1156 = vmatpush.msra.mxu0 0.0
      %1157 = vmatpush.msra.mxu0 0.0
      %1158 = vmatpush.msra.mxu0 0.0
      %1159 = vmatpush.msra.mxu0 0.0
      %1160 = vmatpush.msra.mxu0 %v265
      %1161 = vmatmul.f32.gmra.mxu0 %v1134
      %v1162 = vpop.f32.mrf.mxu0
      %v1163 = vadd.f32 0.0, %v1162
      %1164 = vmatmul.f32.gmra.mxu0 %v1137
      %v1165 = vpop.f32.mrf.mxu0
      %v1166 = vadd.f32 0.0, %v1165
      %1167 = vmatmul.f32.gmra.mxu0 %v1140
      %v1168 = vpop.f32.mrf.mxu0
      %v1169 = vadd.f32 0.0, %v1168
      %1170 = vmatmul.f32.gmra.mxu0 %v1143
      %v1171 = vpop.f32.mrf.mxu0
      %v1172 = vadd.f32 0.0, %v1171
      %1173 = vdwg.mxu0
      %v1174 = vmax.f32 %v1125, %v1163
      %v1175 = vmax.f32 %v1126, %v1166
      %v1176 = vmax.f32 %v1127, %v1169
      %v1177 = vmax.f32 %v1128, %v1172
      %v1178 = vld [vmem:[%s234 + $0x260] sm:$0xff]
      %v1179 = vld [vmem:[%s234 + $0x268] sm:$0xff]
      %v1180 = vld [vmem:[%s234 + $0x270] sm:$0xff]
      %v1181 = vld [vmem:[%s234 + $0x278] sm:$0xff]
      %v1183 = vsel %vm250, %v1178, 0
      %v1186 = vsel %vm250, %v1179, 0
      %v1189 = vsel %vm250, %v1180, 0
      %v1192 = vsel %vm250, %v1181, 0
      %1194 = vmatpush.msra.mxu0 0.0
      %1195 = vmatpush.msra.mxu0 0.0
      %1196 = vmatpush.msra.mxu0 0.0
      %1197 = vmatpush.msra.mxu0 0.0
      %1198 = vmatpush.msra.mxu0 0.0
      %1199 = vmatpush.msra.mxu0 0.0
      %1200 = vmatpush.msra.mxu0 0.0
      %1201 = vmatpush.msra.mxu0 0.0
      %1202 = vmatpush.msra.mxu0 0.0
      %1203 = vmatpush.msra.mxu0 0.0
      %1204 = vmatpush.msra.mxu0 0.0
      %1205 = vmatpush.msra.mxu0 0.0
      %1206 = vmatpush.msra.mxu0 0.0
      %1207 = vmatpush.msra.mxu0 0.0
      %1208 = vmatpush.msra.mxu0 0.0
      %1209 = vmatpush.msra.mxu0 %v265
      %1210 = vmatmul.f32.gmra.mxu0 %v1183
      %v1211 = vpop.f32.mrf.mxu0
      %v1212 = vadd.f32 0.0, %v1211
      %1213 = vmatmul.f32.gmra.mxu0 %v1186
      %v1214 = vpop.f32.mrf.mxu0
      %v1215 = vadd.f32 0.0, %v1214
      %1216 = vmatmul.f32.gmra.mxu0 %v1189
      %v1217 = vpop.f32.mrf.mxu0
      %v1218 = vadd.f32 0.0, %v1217
      %1219 = vmatmul.f32.gmra.mxu0 %v1192
      %v1220 = vpop.f32.mrf.mxu0
      %v1221 = vadd.f32 0.0, %v1220
      %1222 = vdwg.mxu0
      %v1223 = vmax.f32 %v1174, %v1212
      %v1224 = vmax.f32 %v1175, %v1215
      %v1225 = vmax.f32 %v1176, %v1218
      %v1226 = vmax.f32 %v1177, %v1221
      %v1227 = vld [vmem:[%s234 + $0x280] sm:$0xff]
      %v1228 = vld [vmem:[%s234 + $0x288] sm:$0xff]
      %v1229 = vld [vmem:[%s234 + $0x290] sm:$0xff]
      %v1230 = vld [vmem:[%s234 + $0x298] sm:$0xff]
      %v1232 = vsel %vm250, %v1227, 0
      %v1235 = vsel %vm250, %v1228, 0
      %v1238 = vsel %vm250, %v1229, 0
      %v1241 = vsel %vm250, %v1230, 0
      %1243 = vmatpush.msra.mxu0 0.0
      %1244 = vmatpush.msra.mxu0 0.0
      %1245 = vmatpush.msra.mxu0 0.0
      %1246 = vmatpush.msra.mxu0 0.0
      %1247 = vmatpush.msra.mxu0 0.0
      %1248 = vmatpush.msra.mxu0 0.0
      %1249 = vmatpush.msra.mxu0 0.0
      %1250 = vmatpush.msra.mxu0 0.0
      %1251 = vmatpush.msra.mxu0 0.0
      %1252 = vmatpush.msra.mxu0 0.0
      %1253 = vmatpush.msra.mxu0 0.0
      %1254 = vmatpush.msra.mxu0 0.0
      %1255 = vmatpush.msra.mxu0 0.0
      %1256 = vmatpush.msra.mxu0 0.0
      %1257 = vmatpush.msra.mxu0 0.0
      %1258 = vmatpush.msra.mxu0 %v265
      %1259 = vmatmul.f32.gmra.mxu0 %v1232
      %v1260 = vpop.f32.mrf.mxu0
      %v1261 = vadd.f32 0.0, %v1260
      %1262 = vmatmul.f32.gmra.mxu0 %v1235
      %v1263 = vpop.f32.mrf.mxu0
      %v1264 = vadd.f32 0.0, %v1263
      %1265 = vmatmul.f32.gmra.mxu0 %v1238
      %v1266 = vpop.f32.mrf.mxu0
      %v1267 = vadd.f32 0.0, %v1266
      %1268 = vmatmul.f32.gmra.mxu0 %v1241
      %v1269 = vpop.f32.mrf.mxu0
      %v1270 = vadd.f32 0.0, %v1269
      %1271 = vdwg.mxu0
      %v1272 = vmax.f32 %v1223, %v1261
      %v1273 = vmax.f32 %v1224, %v1264
      %v1274 = vmax.f32 %v1225, %v1267
      %v1275 = vmax.f32 %v1226, %v1270
      %v1276 = vld [vmem:[%s234 + $0x2a0] sm:$0xff]
      %v1277 = vld [vmem:[%s234 + $0x2a8] sm:$0xff]
      %v1278 = vld [vmem:[%s234 + $0x2b0] sm:$0xff]
      %v1279 = vld [vmem:[%s234 + $0x2b8] sm:$0xff]
      %v1281 = vsel %vm250, %v1276, 0
      %v1284 = vsel %vm250, %v1277, 0
      %v1287 = vsel %vm250, %v1278, 0
      %v1290 = vsel %vm250, %v1279, 0
      %1292 = vmatpush.msra.mxu0 0.0
      %1293 = vmatpush.msra.mxu0 0.0
      %1294 = vmatpush.msra.mxu0 0.0
      %1295 = vmatpush.msra.mxu0 0.0
      %1296 = vmatpush.msra.mxu0 0.0
      %1297 = vmatpush.msra.mxu0 0.0
      %1298 = vmatpush.msra.mxu0 0.0
      %1299 = vmatpush.msra.mxu0 0.0
      %1300 = vmatpush.msra.mxu0 0.0
      %1301 = vmatpush.msra.mxu0 0.0
      %1302 = vmatpush.msra.mxu0 0.0
      %1303 = vmatpush.msra.mxu0 0.0
      %1304 = vmatpush.msra.mxu0 0.0
      %1305 = vmatpush.msra.mxu0 0.0
      %1306 = vmatpush.msra.mxu0 0.0
      %1307 = vmatpush.msra.mxu0 %v265
      %1308 = vmatmul.f32.gmra.mxu0 %v1281
      %v1309 = vpop.f32.mrf.mxu0
      %v1310 = vadd.f32 0.0, %v1309
      %1311 = vmatmul.f32.gmra.mxu0 %v1284
      %v1312 = vpop.f32.mrf.mxu0
      %v1313 = vadd.f32 0.0, %v1312
      %1314 = vmatmul.f32.gmra.mxu0 %v1287
      %v1315 = vpop.f32.mrf.mxu0
      %v1316 = vadd.f32 0.0, %v1315
      %1317 = vmatmul.f32.gmra.mxu0 %v1290
      %v1318 = vpop.f32.mrf.mxu0
      %v1319 = vadd.f32 0.0, %v1318
      %1320 = vdwg.mxu0
      %v1321 = vmax.f32 %v1272, %v1310
      %v1322 = vmax.f32 %v1273, %v1313
      %v1323 = vmax.f32 %v1274, %v1316
      %v1324 = vmax.f32 %v1275, %v1319
      %v1325 = vld [vmem:[%s234 + $0x2c0] sm:$0xff]
      %v1326 = vld [vmem:[%s234 + $0x2c8] sm:$0xff]
      %v1327 = vld [vmem:[%s234 + $0x2d0] sm:$0xff]
      %v1328 = vld [vmem:[%s234 + $0x2d8] sm:$0xff]
      %v1330 = vsel %vm250, %v1325, 0
      %v1333 = vsel %vm250, %v1326, 0
      %v1336 = vsel %vm250, %v1327, 0
      %v1339 = vsel %vm250, %v1328, 0
      %1341 = vmatpush.msra.mxu0 0.0
      %1342 = vmatpush.msra.mxu0 0.0
      %1343 = vmatpush.msra.mxu0 0.0
      %1344 = vmatpush.msra.mxu0 0.0
      %1345 = vmatpush.msra.mxu0 0.0
      %1346 = vmatpush.msra.mxu0 0.0
      %1347 = vmatpush.msra.mxu0 0.0
      %1348 = vmatpush.msra.mxu0 0.0
      %1349 = vmatpush.msra.mxu0 0.0
      %1350 = vmatpush.msra.mxu0 0.0
      %1351 = vmatpush.msra.mxu0 0.0
      %1352 = vmatpush.msra.mxu0 0.0
      %1353 = vmatpush.msra.mxu0 0.0
      %1354 = vmatpush.msra.mxu0 0.0
      %1355 = vmatpush.msra.mxu0 0.0
      %1356 = vmatpush.msra.mxu0 %v265
      %1357 = vmatmul.f32.gmra.mxu0 %v1330
      %v1358 = vpop.f32.mrf.mxu0
      %v1359 = vadd.f32 0.0, %v1358
      %1360 = vmatmul.f32.gmra.mxu0 %v1333
      %v1361 = vpop.f32.mrf.mxu0
      %v1362 = vadd.f32 0.0, %v1361
      %1363 = vmatmul.f32.gmra.mxu0 %v1336
      %v1364 = vpop.f32.mrf.mxu0
      %v1365 = vadd.f32 0.0, %v1364
      %1366 = vmatmul.f32.gmra.mxu0 %v1339
      %v1367 = vpop.f32.mrf.mxu0
      %v1368 = vadd.f32 0.0, %v1367
      %1369 = vdwg.mxu0
      %v1370 = vmax.f32 %v1321, %v1359
      %v1371 = vmax.f32 %v1322, %v1362
      %v1372 = vmax.f32 %v1323, %v1365
      %v1373 = vmax.f32 %v1324, %v1368
      %v1374 = vld [vmem:[%s234 + $0x2e0] sm:$0xff]
      %v1375 = vld [vmem:[%s234 + $0x2e8] sm:$0xff]
      %v1376 = vld [vmem:[%s234 + $0x2f0] sm:$0xff]
      %v1377 = vld [vmem:[%s234 + $0x2f8] sm:$0xff]
      %v1379 = vsel %vm250, %v1374, 0
      %v1382 = vsel %vm250, %v1375, 0
      %v1385 = vsel %vm250, %v1376, 0
      %v1388 = vsel %vm250, %v1377, 0
      %1390 = vmatpush.msra.mxu0 0.0
      %1391 = vmatpush.msra.mxu0 0.0
      %1392 = vmatpush.msra.mxu0 0.0
      %1393 = vmatpush.msra.mxu0 0.0
      %1394 = vmatpush.msra.mxu0 0.0
      %1395 = vmatpush.msra.mxu0 0.0
      %1396 = vmatpush.msra.mxu0 0.0
      %1397 = vmatpush.msra.mxu0 0.0
      %1398 = vmatpush.msra.mxu0 0.0
      %1399 = vmatpush.msra.mxu0 0.0
      %1400 = vmatpush.msra.mxu0 0.0
      %1401 = vmatpush.msra.mxu0 0.0
      %1402 = vmatpush.msra.mxu0 0.0
      %1403 = vmatpush.msra.mxu0 0.0
      %1404 = vmatpush.msra.mxu0 0.0
      %1405 = vmatpush.msra.mxu0 %v265
      %1406 = vmatmul.f32.gmra.mxu0 %v1379
      %v1407 = vpop.f32.mrf.mxu0
      %v1408 = vadd.f32 0.0, %v1407
      %1409 = vmatmul.f32.gmra.mxu0 %v1382
      %v1410 = vpop.f32.mrf.mxu0
      %v1411 = vadd.f32 0.0, %v1410
      %1412 = vmatmul.f32.gmra.mxu0 %v1385
      %v1413 = vpop.f32.mrf.mxu0
      %v1414 = vadd.f32 0.0, %v1413
      %1415 = vmatmul.f32.gmra.mxu0 %v1388
      %v1416 = vpop.f32.mrf.mxu0
      %v1417 = vadd.f32 0.0, %v1416
      %1418 = vdwg.mxu0
      %v1419 = vmax.f32 %v1370, %v1408
      %v1420 = vmax.f32 %v1371, %v1411
      %v1421 = vmax.f32 %v1372, %v1414
      %v1422 = vmax.f32 %v1373, %v1417
      %v1423 = vld [vmem:[%s239] sm:$0xff]
      %v1424 = vld [vmem:[%s239 + $0x8] sm:$0xff]
      %v1425 = vld [vmem:[%s239 + $0x10] sm:$0xff]
      %v1426 = vld [vmem:[%s239 + $0x18] sm:$0xff]
      %v1427 = vld [vmem:[%s3] sm:$0xf]
      %v1428 = vld [vmem:[%s4] sm:$0x1]
      %v1430 = vperm.slane %v1428, 0
      %vm1432 = vcmask 31744
      %v1434 = vsel %vm1432, %v1423, 0
      %v1437 = vsel %vm1432, %v1424, 0
      %v1440 = vsel %vm1432, %v1425, 0
      %v1443 = vsel %vm1432, %v1426, 0
      %vm1445 = vcmask 1043456
      %v1447 = vsel %vm1445, %v1427, 0
      %1449 = vmatpush.msra.mxu0 0.0
      %1450 = vmatpush.msra.mxu0 0.0
      %1451 = vmatpush.msra.mxu0 0.0
      %1452 = vmatpush.msra.mxu0 0.0
      %1453 = vmatpush.msra.mxu0 0.0
      %1454 = vmatpush.msra.mxu0 0.0
      %1455 = vmatpush.msra.mxu0 0.0
      %1456 = vmatpush.msra.mxu0 0.0
      %1457 = vmatpush.msra.mxu0 0.0
      %1458 = vmatpush.msra.mxu0 0.0
      %1459 = vmatpush.msra.mxu0 0.0
      %1460 = vmatpush.msra.mxu0 0.0
      %1461 = vmatpush.msra.mxu0 0.0
      %1462 = vmatpush.msra.mxu0 0.0
      %1463 = vmatpush.msra.mxu0 0.0
      %1464 = vmatpush.msra.mxu0 %v1447
      %1465 = vmatmul.f32.gmra.mxu0 %v1434
      %v1466 = vpop.f32.mrf.mxu0
      %v1467 = vadd.f32 %v1430, %v1466
      %1468 = vmatmul.f32.gmra.mxu0 %v1437
      %v1469 = vpop.f32.mrf.mxu0
      %v1470 = vadd.f32 %v1430, %v1469
      %1471 = vmatmul.f32.gmra.mxu0 %v1440
      %v1472 = vpop.f32.mrf.mxu0
      %v1473 = vadd.f32 %v1430, %v1472
      %1474 = vmatmul.f32.gmra.mxu0 %v1443
      %v1475 = vpop.f32.mrf.mxu0
      %v1476 = vadd.f32 %v1430, %v1475
      %1477 = vdwg.mxu0
      %v1478 = vadd.f32 %v1467, %v1419
      %v1479 = vadd.f32 %v1470, %v1420
      %v1480 = vadd.f32 %v1473, %v1421
      %v1481 = vadd.f32 %v1476, %v1422
      %v1482 = vmax.f32 %v1478, 0.0
      %v1483 = vmax.f32 %v1479, 0.0
      %v1484 = vmax.f32 %v1480, 0.0
      %v1485 = vmax.f32 %v1481, 0.0
      %vm1486 = vcmask 261120
      %1487 = vst.msk [vmem:[%s244] sm:$0xff] %vm1486, %v1482
      %1488 = vst.msk [vmem:[%s244 + $0x8] sm:$0xff] %vm1486, %v1483
      %1489 = vst.msk [vmem:[%s244 + $0x10] sm:$0xff] %vm1486, %v1484
      %1490 = vst.msk [vmem:[%s244 + $0x18] sm:$0xff] %vm1486, %v1485
      %p1491 = scmp.lt.s32.totalorder %s16, 1
      %s1492 = scalar_select %p1491, %s16, 1
      %s1493 = smul.addr %s1492, 4
      %s1494 = smul.addr %s1493, 8
      %s1495 = scalar_lea.vmem %s5, %s1494
      // Predicated region
      $region41: #{model_forward.5} parent=39 // pred_check
        %p1496 = pneg %p149
      $region42: #{model_forward.5} parent=39 // pred_check_branch
        %1498 = sbr.rel (%p1496) target = $region44
      $region43: #{model_forward.5} parent=39 // pred_region
        _
      $region44: #{model_forward.5} parent=39 // pred_fallthru
        _
    $region40: #{model_forward.5} parent=5 // pred_fallthru
      _
    %p1499 = scmp.le.s32.totalorder 2, %s11
    // Predicated region
    $region45: #{model_forward.5} parent=5 // pred_check
      %p1500 = pneg %p1499
    $region46: #{model_forward.5} parent=5 // pred_check_branch
      %1502 = sbr.rel (%p1500) target = $region48
    $region47: #{model_forward.5} parent=5 // pred_region
      %s1503 = ssub.s32 %s11, 2
      // Predicated region
      $region49: #{model_forward.5} parent=47 // pred_check
        %p1504 = pneg %p155
      $region50: #{model_forward.5} parent=47 // pred_check_branch
        %1506 = sbr.rel (%p1504) target = $region52
      $region51: #{model_forward.5} parent=47 // pred_region
        %p1507 = scmp.lt.s32.totalorder %s17, 1
        %s1508 = scalar_select %p1507, %s17, 1
        %s1509 = smul.addr %s1508, 4
        %s1510 = smul.addr %s1509, 8
        %s1511 = scalar_lea.vmem %s5, %s1510
      $region52: #{model_forward.5} parent=47 // pred_fallthru
        _
    $region48: #{model_forward.5} parent=5 // pred_fallthru
      _
  $region6: #{model_forward.5} parent=0 // loop_footer
    %s15 = sadd.s32 1, %s11
  $region7: #{model_forward.5} parent=0 // loop_footer_branch
    %10 = sbr.rel target = $region3
  $region8: #{model_forward.5} parent=0 // loop_exit
    _

// kernel: model_forward.9
$region0: #{model_forward.9}
  #allocation0 [shape = 'u32[]', space=smem, size = 0x4, offset = 0x4, fixed_abs, tag = 'smem constant byte address 0x4 - core index']
  #allocation1 [shape = 'u32[72,128]{1,0:T(1,128)}', space=vmem, size = 0x9000, scoped, tag = 'internal scratch']
  %s0 = inlined_call_operand.vmem [shape: f32[2,64,32], index: 0, kind: input, shape index: {}]
  %s1 = inlined_call_operand.vmem [shape: f32[1,32], index: 1, kind: input, shape index: {}]
  %s2 = inlined_call_operand.vmem [shape: f32[1,32], index: 2, kind: input, shape index: {}]
  %s3 = inlined_call_operand.vmem [shape: f32[32,64], index: 3, kind: input, shape index: {}]
  %s4 = inlined_call_operand.vmem [shape: f32[1,64], index: 4, kind: input, shape index: {}]
  %s5 = inlined_call_operand.vmem [shape: f32[64,12], index: 5, kind: input, shape index: {}]
  %s6 = inlined_call_operand.vmem [shape: f32[1,12], index: 6, kind: input, shape index: {}]
  %s7 = inlined_call_operand.vmem [shape: f32[2,1,12], index: 7, kind: output, shape index: {}]
  %s8 = sld [smem:[#allocation0]]
  $region61: #{model_forward.9} parent=0
    _
  %s10 = ssub.s32 1, %s8
  %s11 = scalar_select 0, %s10, %s8
  loop: start=0, step=1, limit=4
  $region2: #{model_forward.9} parent=0 // loop_pre_header
    _
  $region3: #{model_forward.9} parent=0 // loop_header
    %s13 = sphi 0, %s17
    %p14 = scmp.ge.s32.totalorder %s13, 4
    %s23 = sphi 0, %s25
    %s26 = sphi 0, %s23
    %s27 = sphi 0, %s26
    %s43 = sphi 0, %s27
    %s47 = sphi 0, %s47
    %s49 = sphi 0, %s47
    %s50 = sphi 0, %s49
    %s64 = sphi 0, %s50
    %s68 = sphi 0, %s68
    %s70 = sphi 0, %s68
    %s71 = sphi 0, %s70
    %s85 = sphi 0, %s71
    %s89 = sphi 0, %s89
    %s91 = sphi 0, %s89
    %s92 = sphi 0, %s91
    %s106 = sphi 0, %s92
    %s110 = sphi 0, %s110
    %s112 = sphi 0, %s110
    %s113 = sphi 0, %s112
    %s127 = sphi 0, %s113
    %s131 = sphi 0, %s131
    %s133 = sphi 0, %s131
    %s134 = sphi 0, %s133
    %s148 = sphi 0, %s134
    %s152 = sphi 0, %s152
    %s154 = sphi 0, %s152
    %s155 = sphi 0, %s154
    %s169 = sphi 0, %s155
    %s175 = sphi 0, %s177
    %s178 = sphi 0, %s175
    %s179 = sphi 0, %s178
    %s195 = sphi 0, %s179
  $region4: #{model_forward.9} parent=0 // loop_header_branch
    %16 = sbr.rel (%p14) target = $region8
  $region5: #{model_forward.9} parent=0 // loop_body
    %s18 = ssub.s32 %s13, 1
    %s19 = ssub.s32 %s13, 2
    %s20 = sadd.s32 %s13, 1
    %s21 = ssub.s32 %s13, %s20
    %p22 = scmp.eq.s32.totalorder %s21, 0
    %s24 = sadd.s32 %s23, 1
    %s25 = scalar_select %p22, %s23, %s24
    %p28 = pneg %p22
    %p29 = scmp.eq.s32.totalorder %s13, 1
    %p30 = por %p28, %p29
    %p31 = scmp.ne.s32.totalorder %s23, %s26
    %p32 = scmp.eq.s32.totalorder %s13, 0
    %p33 = por %p31, %p32
    %p34 = scmp.ne.s32.totalorder %s23, %s26
    %p35 = scmp.eq.s32.totalorder %s18, 1
    %p36 = por %p34, %p35
    %p37 = scmp.ne.s32.totalorder %s26, %s27
    %p38 = scmp.eq.s32.totalorder %s18, 0
    %p39 = por %p37, %p38
    %p40 = scmp.ne.s32.totalorder %s26, %s27
    %p41 = scmp.eq.s32.totalorder %s19, 1
    %p42 = por %p40, %p41
    %p44 = scmp.ne.s32.totalorder %s27, %s43
    %p45 = scmp.eq.s32.totalorder %s19, 0
    %p46 = por %p44, %p45
    %s48 = sadd.s32 %s47, 1
    %p51 = scmp.eq.s32.totalorder %s13, 1
    %p52 = scmp.ne.s32.totalorder %s47, %s49
    %p53 = scmp.eq.s32.totalorder %s13, 0
    %p54 = por %p52, %p53
    %p55 = scmp.ne.s32.totalorder %s47, %s49
    %p56 = scmp.eq.s32.totalorder %s18, 1
    %p57 = por %p55, %p56
    %p58 = scmp.ne.s32.totalorder %s49, %s50
    %p59 = scmp.eq.s32.totalorder %s18, 0
    %p60 = por %p58, %p59
    %p61 = scmp.ne.s32.totalorder %s49, %s50
    %p62 = scmp.eq.s32.totalorder %s19, 1
    %p63 = por %p61, %p62
    %p65 = scmp.ne.s32.totalorder %s50, %s64
    %p66 = scmp.eq.s32.totalorder %s19, 0
    %p67 = por %p65, %p66
    %s69 = sadd.s32 %s68, 1
    %p72 = scmp.eq.s32.totalorder %s13, 1
    %p73 = scmp.ne.s32.totalorder %s68, %s70
    %p74 = scmp.eq.s32.totalorder %s13, 0
    %p75 = por %p73, %p74
    %p76 = scmp.ne.s32.totalorder %s68, %s70
    %p77 = scmp.eq.s32.totalorder %s18, 1
    %p78 = por %p76, %p77
    %p79 = scmp.ne.s32.totalorder %s70, %s71
    %p80 = scmp.eq.s32.totalorder %s18, 0
    %p81 = por %p79, %p80
    %p82 = scmp.ne.s32.totalorder %s70, %s71
    %p83 = scmp.eq.s32.totalorder %s19, 1
    %p84 = por %p82, %p83
    %p86 = scmp.ne.s32.totalorder %s71, %s85
    %p87 = scmp.eq.s32.totalorder %s19, 0
    %p88 = por %p86, %p87
    %s90 = sadd.s32 %s89, 1
    %p93 = scmp.eq.s32.totalorder %s13, 1
    %p94 = scmp.ne.s32.totalorder %s89, %s91
    %p95 = scmp.eq.s32.totalorder %s13, 0
    %p96 = por %p94, %p95
    %p97 = scmp.ne.s32.totalorder %s89, %s91
    %p98 = scmp.eq.s32.totalorder %s18, 1
    %p99 = por %p97, %p98
    %p100 = scmp.ne.s32.totalorder %s91, %s92
    %p101 = scmp.eq.s32.totalorder %s18, 0
    %p102 = por %p100, %p101
    %p103 = scmp.ne.s32.totalorder %s91, %s92
    %p104 = scmp.eq.s32.totalorder %s19, 1
    %p105 = por %p103, %p104
    %p107 = scmp.ne.s32.totalorder %s92, %s106
    %p108 = scmp.eq.s32.totalorder %s19, 0
    %p109 = por %p107, %p108
    %s111 = sadd.s32 %s110, 1
    %p114 = scmp.eq.s32.totalorder %s13, 1
    %p115 = scmp.ne.s32.totalorder %s110, %s112
    %p116 = scmp.eq.s32.totalorder %s13, 0
    %p117 = por %p115, %p116
    %p118 = scmp.ne.s32.totalorder %s110, %s112
    %p119 = scmp.eq.s32.totalorder %s18, 1
    %p120 = por %p118, %p119
    %p121 = scmp.ne.s32.totalorder %s112, %s113
    %p122 = scmp.eq.s32.totalorder %s18, 0
    %p123 = por %p121, %p122
    %p124 = scmp.ne.s32.totalorder %s112, %s113
    %p125 = scmp.eq.s32.totalorder %s19, 1
    %p126 = por %p124, %p125
    %p128 = scmp.ne.s32.totalorder %s113, %s127
    %p129 = scmp.eq.s32.totalorder %s19, 0
    %p130 = por %p128, %p129
    %s132 = sadd.s32 %s131, 1
    %p135 = scmp.eq.s32.totalorder %s13, 1
    %p136 = scmp.ne.s32.totalorder %s131, %s133
    %p137 = scmp.eq.s32.totalorder %s13, 0
    %p138 = por %p136, %p137
    %p139 = scmp.ne.s32.totalorder %s131, %s133
    %p140 = scmp.eq.s32.totalorder %s18, 1
    %p141 = por %p139, %p140
    %p142 = scmp.ne.s32.totalorder %s133, %s134
    %p143 = scmp.eq.s32.totalorder %s18, 0
    %p144 = por %p142, %p143
    %p145 = scmp.ne.s32.totalorder %s133, %s134
    %p146 = scmp.eq.s32.totalorder %s19, 1
    %p147 = por %p145, %p146
    %p149 = scmp.ne.s32.totalorder %s134, %s148
    %p150 = scmp.eq.s32.totalorder %s19, 0
    %p151 = por %p149, %p150
    %s153 = sadd.s32 %s152, 1
    %p156 = scmp.eq.s32.totalorder %s13, 1
    %p157 = scmp.ne.s32.totalorder %s152, %s154
    %p158 = scmp.eq.s32.totalorder %s13, 0
    %p159 = por %p157, %p158
    %p160 = scmp.ne.s32.totalorder %s152, %s154
    %p161 = scmp.eq.s32.totalorder %s18, 1
    %p162 = por %p160, %p161
    %p163 = scmp.ne.s32.totalorder %s154, %s155
    %p164 = scmp.eq.s32.totalorder %s18, 0
    %p165 = por %p163, %p164
    %p166 = scmp.ne.s32.totalorder %s154, %s155
    %p167 = scmp.eq.s32.totalorder %s19, 1
    %p168 = por %p166, %p167
    %p170 = scmp.ne.s32.totalorder %s155, %s169
    %p171 = scmp.eq.s32.totalorder %s19, 0
    %p172 = por %p170, %p171
    %s173 = ssub.s32 %s13, %s20
    %p174 = scmp.eq.s32.totalorder %s173, 0
    %s176 = sadd.s32 %s175, 1
    %s177 = scalar_select %p174, %s175, %s176
    %p180 = pneg %p174
    %p181 = scmp.eq.s32.totalorder %s13, 1
    %p182 = por %p180, %p181
    %p183 = scmp.ne.s32.totalorder %s175, %s178
    %p184 = scmp.eq.s32.totalorder %s13, 0
    %p185 = por %p183, %p184
    %p186 = scmp.ne.s32.totalorder %s175, %s178
    %p187 = scmp.eq.s32.totalorder %s18, 1
    %p188 = por %p186, %p187
    %p189 = scmp.ne.s32.totalorder %s178, %s179
    %p190 = scmp.eq.s32.totalorder %s18, 0
    %p191 = por %p189, %p190
    %p192 = scmp.ne.s32.totalorder %s178, %s179
    %p193 = scmp.eq.s32.totalorder %s19, 1
    %p194 = por %p192, %p193
    %p196 = scmp.ne.s32.totalorder %s179, %s195
    %p197 = scmp.eq.s32.totalorder %s19, 0
    %p198 = por %p196, %p197
    %p199 = scmp.le.s32.totalorder 1, %s13
    %p200 = scmp.lt.s32.totalorder %s13, 3
    %p201 = pnand %p199, %p200
    %p202 = pneg %p201
    // Predicated region
    $region9: #{model_forward.9} parent=5 // pred_check
      _
    $region10: #{model_forward.9} parent=5 // pred_check_branch
      %204 = sbr.rel (%p201) target = $region12
    $region11: #{model_forward.9} parent=5 // pred_region
      %s205 = ssub.s32 %s13, 1
      // Predicated region
      $region13: #{model_forward.9} parent=11 // pred_check
        %p206 = pneg %p60
      $region14: #{model_forward.9} parent=11 // pred_check_branch
        %208 = sbr.rel (%p206) target = $region16
      $region15: #{model_forward.9} parent=11 // pred_region
        _
      $region16: #{model_forward.9} parent=11 // pred_fallthru
        _
      // Predicated region
      $region17: #{model_forward.9} parent=11 // pred_check
        %p209 = pneg %p81
      $region18: #{model_forward.9} parent=11 // pred_check_branch
        %211 = sbr.rel (%p209) target = $region20
      $region19: #{model_forward.9} parent=11 // pred_region
        _
      $region20: #{model_forward.9} parent=11 // pred_fallthru
        _
      // Predicated region
      $region21: #{model_forward.9} parent=11 // pred_check
        %p212 = pneg %p102
      $region22: #{model_forward.9} parent=11 // pred_check_branch
        %214 = sbr.rel (%p212) target = $region24
      $region23: #{model_forward.9} parent=11 // pred_region
        _
      $region24: #{model_forward.9} parent=11 // pred_fallthru
        _
      // Predicated region
      $region25: #{model_forward.9} parent=11 // pred_check
        %p215 = pneg %p123
      $region26: #{model_forward.9} parent=11 // pred_check_branch
        %217 = sbr.rel (%p215) target = $region28
      $region27: #{model_forward.9} parent=11 // pred_region
        _
      $region28: #{model_forward.9} parent=11 // pred_fallthru
        _
      // Predicated region
      $region29: #{model_forward.9} parent=11 // pred_check
        %p218 = pneg %p144
      $region30: #{model_forward.9} parent=11 // pred_check_branch
        %220 = sbr.rel (%p218) target = $region32
      $region31: #{model_forward.9} parent=11 // pred_region
        _
      $region32: #{model_forward.9} parent=11 // pred_fallthru
        _
      // Predicated region
      $region33: #{model_forward.9} parent=11 // pred_check
        %p221 = pneg %p165
      $region34: #{model_forward.9} parent=11 // pred_check_branch
        %223 = sbr.rel (%p221) target = $region36
      $region35: #{model_forward.9} parent=11 // pred_region
        _
      $region36: #{model_forward.9} parent=11 // pred_fallthru
        _
    $region12: #{model_forward.9} parent=5 // pred_fallthru
      _
    %p224 = scmp.lt.s32.totalorder %s13, 2
    // Predicated region
    $region37: #{model_forward.9} parent=5 // pred_check
      %p225 = pneg %p224
    $region38: #{model_forward.9} parent=5 // pred_check_branch
      %227 = sbr.rel (%p225) target = $region40
    $region39: #{model_forward.9} parent=5 // pred_region
      // Predicated region
      $region41: #{model_forward.9} parent=39 // pred_check
        %p228 = pneg %p33
      $region42: #{model_forward.9} parent=39 // pred_check_branch
        %230 = sbr.rel (%p228) target = $region44
      $region43: #{model_forward.9} parent=39 // pred_region
        %p231 = scmp.lt.s32.totalorder %s13, 1
        %s232 = scalar_select %p231, %s13, 1
        %s233 = smul.addr %s232, 8
        %s234 = smul.addr %s233, 8
        %s235 = scalar_lea.vmem %s0, %s234
      $region44: #{model_forward.9} parent=39 // pred_fallthru
        _
    $region40: #{model_forward.9} parent=5 // pred_fallthru
      _
    %p236 = scmp.le.s32.totalorder 1, %s13
    %p237 = scmp.lt.s32.totalorder %s13, 3
    %p238 = pnand %p236, %p237
    %p239 = pneg %p238
    // Predicated region
    $region45: #{model_forward.9} parent=5 // pred_check
      _
    $region46: #{model_forward.9} parent=5 // pred_check_branch
      %241 = sbr.rel (%p238) target = $region48
    $region47: #{model_forward.9} parent=5 // pred_region
      %s242 = ssub.s32 %s13, 1
      %p243 = scmp.lt.s32.totalorder %s18, 1
      %s244 = scalar_select %p243, %s18, 1
      %s245 = smul.addr %s244, 8
      %s246 = smul.addr %s245, 8
      %s247 = scalar_lea.vmem %s0, %s246
      %p248 = pneg %p39
      %p249 = pneg %p36
      %p250 = pneg %p60
      %p251 = pneg %p57
      %p252 = pneg %p81
      %p253 = pneg %p78
      %p254 = pneg %p102
      %p255 = pneg %p99
      %p256 = pneg %p123
      %p257 = pneg %p120
      %p258 = pneg %p144
      %p259 = pneg %p141
      %p260 = pneg %p165
      %p261 = pneg %p162
      %p262 = pneg %p191
      %p263 = pneg %p188
      %p264 = scmp.lt.s32.totalorder %s18, 1
      %s265 = scalar_select %p264, %s18, 1
      %s266 = scalar_lea.vmem %s7, %s265
      %p267 = scmp.lt.s32.totalorder %s18, 1
      %s268 = scalar_select %p267, %s18, 1
      %s269 = smul.addr %s268, 8
      %s270 = smul.addr %s269, 8
      %s271 = scalar_lea.vmem %s0, %s270
      %p272 = scmp.lt.s32.totalorder %s18, 1
      %s273 = scalar_select %p272, %s18, 1
      %s274 = scalar_lea.vmem %s7, %s273
      %v275 = vld [vmem:[%s271] sm:$0xff]
      %v276 = vld [vmem:[%s271 + $0x8] sm:$0xff]
      %v277 = vld [vmem:[%s271 + $0x10] sm:$0xff]
      %v278 = vld [vmem:[%s271 + $0x18] sm:$0xff]
      %v279 = vld [vmem:[%s271 + $0x20] sm:$0xff]
      %v280 = vld [vmem:[%s271 + $0x28] sm:$0xff]
      %v281 = vld [vmem:[%s271 + $0x30] sm:$0xff]
      %v282 = vld [vmem:[%s271 + $0x38] sm:$0xff]
      %vm283 = vcmask 261120
      %v284 = vsel %vm283, %v275, -inf
      %v285 = vsel %vm283, %v276, -inf
      %v286 = vsel %vm283, %v277, -inf
      %v287 = vsel %vm283, %v278, -inf
      %v288 = vsel %vm283, %v279, -inf
      %v289 = vmax.f32 %v284, %v288
      %v290 = vsel %vm283, %v280, -inf
      %v291 = vmax.f32 %v285, %v290
      %v292 = vsel %vm283, %v281, -inf
      %v293 = vmax.f32 %v286, %v292
      %v294 = vsel %vm283, %v282, -inf
      %v295 = vmax.f32 %v287, %v294
      %v296 = vmax.f32 %v289, %v291
      %v297 = vmax.f32 %v293, %v295
      %v298 = vmax.f32 %v296, %v297
      %v299 = vrot.slane %v298, 4
      %v300 = vmax.f32 %v298, %v299
      %v301 = vrot.slane %v300, 2
      %v302 = vmax.f32 %v300, %v301
      %v303 = vrot.slane %v302, 1
      %v304 = vmax.f32 %v302, %v303
      %v305 = vld [vmem:[%s1] sm:$0x1]
      %v306 = vld [vmem:[%s2] sm:$0x1]
      %v307 = vsel %vm283, %v304, 0.0
      %308 = vadd.xlane.f32.xlu0 %v307
      %v309 = vpop.xlane.xlu0 %308
      %v310 = vrcp.pop 32.0
      %v311 = vmul.f32 32.0, %v310
      %v312 = vsub.f32 1.0, %v311
      %v313 = vmul.f32 %v310, %v312
      %v314 = vadd.f32 %v310, %v313
      %vm315 = vweird.f32 %v310
      %v316 = vsel %vm315, %v310, %v314
      %v317 = vmul.f32 %v309, %v316
      %v318 = vsub.f32 %v304, %v317
      %v319 = vmul.f32 %v318, %v318
      %v320 = vsel %vm283, %v319, 0.0
      %321 = vadd.xlane.f32.xlu0 %v320
      %v322 = vpop.xlane.xlu0 %321
      %v323 = vmul.f32 %v322, %v316
      %v324 = vadd.f32 %v323, 1e-05
      %v325 = vrsqrt.pop %v324
      %v326 = vmul.f32 %v325, %v324
      %v327 = vmul.f32 %v326, %v325
      %v328 = vmul.f32 0.5, %v327
      %v329 = vsub.f32 1.5, %v328
      %v330 = vmul.f32 %v325, %v329
      %vm331 = vweird.f32 %v324
      %vm332 = vweird.f32 %v325
      %vm333 = vmor %vm331, %vm332
      %v334 = vsel %vm333, %v325, %v330
      %v335 = vmul.f32 %v318, %v334
      %v336 = vmul.f32 %v335, %v305
      %v337 = vadd.f32 %v336, %v306
      %v338 = vld [vmem:[%s3] sm:$0xff]
      %v339 = vld [vmem:[%s3 + $0x8] sm:$0xff]
      %v340 = vld [vmem:[%s3 + $0x10] sm:$0xff]
      %v341 = vld [vmem:[%s3 + $0x18] sm:$0xff]
      %v342 = vld [vmem:[%s4] sm:$0x1]
      %v344 = vsel %vm283, %v337, 0
      %346 = vmatpush.msra.mxu0 0.0
      %347 = vmatpush.msra.mxu0 0.0
      %348 = vmatpush.msra.mxu0 0.0
      %349 = vmatpush.msra.mxu0 0.0
      %350 = vmatpush.msra.mxu0 0.0
      %351 = vmatpush.msra.mxu0 0.0
      %352 = vmatpush.msra.mxu0 0.0
      %353 = vmatpush.msra.mxu0 0.0
      %354 = vmatpush.msra.mxu0 0.0
      %355 = vmatpush.msra.mxu0 0.0
      %356 = vmatpush.msra.mxu0 0.0
      %357 = vmatpush.msra.mxu0 0.0
      %358 = vmatpush.msra.mxu0 %v341
      %359 = vmatpush.msra.mxu0 %v340
      %360 = vmatpush.msra.mxu0 %v339
      %361 = vmatpush.msra.mxu0 %v338
      %362 = vmatmul.f32.gmra.mxu0 %v344
      %v363 = vpop.f32.mrf.mxu0
      %v364 = vadd.f32 %v342, %v363
      %365 = vdwg.mxu0
      %v366 = vmul.f32 %v364, 0.5
      %v367 = vmul.f32 %v364, 0.70710677
      %vm368 = vcmp.ge.f32.partialorder %v367, 0.0
      %v369 = vsel %vm368, 1.0, -1.0
      %v370 = vand.u32 2147483647, %v367
      %v371 = vmul.f32 %v370, 0.3275911
      %v372 = vadd.f32 %v371, 1.0
      %v373 = vrcp.pop %v372
      %v374 = vmul.f32 %v372, %v373
      %v375 = vsub.f32 1.0, %v374
      %v376 = vmul.f32 %v373, %v375
      %v377 = vadd.f32 %v373, %v376
      %vm378 = vweird.f32 %v372
      %vm379 = vweird.f32 %v373
      %vm380 = vmor %vm378, %vm379
      %v381 = vsel %vm380, %v373, %v377
      %v382 = vand.u32 2147483647, %v372
      %vm383 = vcmp.eq.f32.partialorder %v382, 8.507059e+37
      %v384 = vand.u32 %v372, 2147483648
      %v385 = vor.u32 1.1754944e-38, %v384
      %v386 = vsel %vm383, %v385, %v381
      %v387 = vmul.f32 1.0, %v386
      %v388 = vmul.f32 %v387, 1.0614054
      %v389 = vadd.f32 %v388, -1.4531521
      %v390 = vmul.f32 %v389, %v387
      %v391 = vadd.f32 %v390, 1.4214138
      %v392 = vmul.f32 %v391, %v387
      %v393 = vadd.f32 %v392, -0.28449672
      %v394 = vmul.f32 %v393, %v387
      %v395 = vadd.f32 %v394, 0.2548296
      %v396 = vmul.f32 %v395, %v387
      %v397 = vsub.f32 0.0, %v370
      %v398 = vmul.f32 %v397, %v370
      %v399 = vmul.f32 %v398, 1.442695
      %v400 = vpow.pop %v399
      %v401 = vmul.f32 %v396, %v400
      %v402 = vsub.f32 1.0, %v401
      %v403 = vmul.f32 %v369, %v402
      %v404 = vadd.f32 %v403, 1.0
      %v405 = vmul.f32 %v366, %v404
      %v406 = vld [vmem:[%s5] sm:$0xff]
      %v407 = vld [vmem:[%s5 + $0x8] sm:$0xff]
      %v408 = vld [vmem:[%s5 + $0x10] sm:$0xff]
      %v409 = vld [vmem:[%s5 + $0x18] sm:$0xff]
      %v410 = vld [vmem:[%s5 + $0x20] sm:$0xff]
      %v411 = vld [vmem:[%s5 + $0x28] sm:$0xff]
      %v412 = vld [vmem:[%s5 + $0x30] sm:$0xff]
      %v413 = vld [vmem:[%s5 + $0x38] sm:$0xff]
      %v414 = vld [vmem:[%s6] sm:$0x1]
      %vm415 = vcmask 523264
      %v417 = vsel %vm415, %v405, 0
      %419 = vmatpush.msra.mxu0 0.0
      %420 = vmatpush.msra.mxu0 0.0
      %421 = vmatpush.msra.mxu0 0.0
      %422 = vmatpush.msra.mxu0 0.0
      %423 = vmatpush.msra.mxu0 0.0
      %424 = vmatpush.msra.mxu0 0.0
      %425 = vmatpush.msra.mxu0 0.0
      %426 = vmatpush.msra.mxu0 0.0
      %427 = vmatpush.msra.mxu0 %v413
      %428 = vmatpush.msra.mxu0 %v412
      %429 = vmatpush.msra.mxu0 %v411
      %430 = vmatpush.msra.mxu0 %v410
      %431 = vmatpush.msra.mxu0 %v409
      %432 = vmatpush.msra.mxu0 %v408
      %433 = vmatpush.msra.mxu0 %v407
      %434 = vmatpush.msra.mxu0 %v406
      %435 = vmatmul.f32.gmra.mxu0 %v417
      %v436 = vpop.f32.mrf.mxu0
      %v437 = vadd.f32 %v414, %v436
      %438 = vdwg.mxu0
      %vm439 = vcmask 90112
      %440 = vst.msk [vmem:[%s274] sm:$0x1] %vm439, %v437
      %p441 = scmp.lt.s32.totalorder %s18, 1
      %s442 = scalar_select %p441, %s18, 1
      %s443 = scalar_lea.vmem %s7, %s442
      // Predicated region
      $region49: #{model_forward.9} parent=47 // pred_check
        %p444 = pneg %p188
      $region50: #{model_forward.9} parent=47 // pred_check_branch
        %446 = sbr.rel (%p444) target = $region52
      $region51: #{model_forward.9} parent=47 // pred_region
        _
      $region52: #{model_forward.9} parent=47 // pred_fallthru
        _
    $region48: #{model_forward.9} parent=5 // pred_fallthru
      _
    %p447 = scmp.le.s32.totalorder 2, %s13
    // Predicated region
    $region53: #{model_forward.9} parent=5 // pred_check
      %p448 = pneg %p447
    $region54: #{model_forward.9} parent=5 // pred_check_branch
      %450 = sbr.rel (%p448) target = $region56
    $region55: #{model_forward.9} parent=5 // pred_region
      %s451 = ssub.s32 %s13, 2
      // Predicated region
      $region57: #{model_forward.9} parent=55 // pred_check
        %p452 = pneg %p194
      $region58: #{model_forward.9} parent=55 // pred_check_branch
        %454 = sbr.rel (%p452) target = $region60
      $region59: #{model_forward.9} parent=55 // pred_region
        %p455 = scmp.lt.s32.totalorder %s19, 1
        %s456 = scalar_select %p455, %s19, 1
        %s457 = scalar_lea.vmem %s7, %s456
      $region60: #{model_forward.9} parent=55 // pred_fallthru
        _
    $region56: #{model_forward.9} parent=5 // pred_fallthru
      _
  $region6: #{model_forward.9} parent=0 // loop_footer
    %s17 = sadd.s32 1, %s13
  $region7: #{model_forward.9} parent=0 // loop_footer_branch
    %12 = sbr.rel target = $region3
  $region8: #{model_forward.9} parent=0 // loop_exit
    _

// kernel: model_forward.7
$region0: #{model_forward.7}
  #allocation0 [shape = 'u32[]', space=smem, size = 0x4, offset = 0x4, fixed_abs, tag = 'smem constant byte address 0x4 - core index']
  #allocation1 [shape = 'u32[72,128]{1,0:T(1,128)}', space=vmem, size = 0x9000, scoped, tag = 'internal scratch']
  %s0 = inlined_call_operand.vmem [shape: f32[2,64,32], index: 0, kind: input, shape index: {}]
  %s1 = inlined_call_operand.vmem [shape: f32[1,32], index: 1, kind: input, shape index: {}]
  %s2 = inlined_call_operand.vmem [shape: f32[1,32], index: 2, kind: input, shape index: {}]
  %s3 = inlined_call_operand.vmem [shape: f32[6,32,16], index: 3, kind: input, shape index: {}]
  %s4 = inlined_call_operand.vmem [shape: f32[2,16,32], index: 4, kind: input, shape index: {}]
  %s5 = inlined_call_operand.vmem [shape: f32[1,32], index: 5, kind: input, shape index: {}]
  %s6 = inlined_call_operand.vmem [shape: f32[1,32], index: 6, kind: input, shape index: {}]
  %s7 = inlined_call_operand.vmem [shape: f32[1,32], index: 7, kind: input, shape index: {}]
  %s8 = inlined_call_operand.vmem [shape: f32[32,64], index: 8, kind: input, shape index: {}]
  %s9 = inlined_call_operand.vmem [shape: f32[1,64], index: 9, kind: input, shape index: {}]
  %s10 = inlined_call_operand.vmem [shape: f32[64,32], index: 10, kind: input, shape index: {}]
  %s11 = inlined_call_operand.vmem [shape: f32[1,32], index: 11, kind: input, shape index: {}]
  %s12 = inlined_call_operand.vmem [shape: f32[2,64,32], index: 12, kind: output, shape index: {}]
  %s13 = sld [smem:[#allocation0]]
  $region81: #{model_forward.7} parent=0
    _
  %s15 = ssub.s32 1, %s13
  %s16 = scalar_select 0, %s15, %s13
  loop: start=0, step=1, limit=4
  $region2: #{model_forward.7} parent=0 // loop_pre_header
    _
  $region3: #{model_forward.7} parent=0 // loop_header
    %s18 = sphi 0, %s22
    %p19 = scmp.ge.s32.totalorder %s18, 4
    %s28 = sphi 0, %s30
    %s31 = sphi 0, %s28
    %s32 = sphi 0, %s31
    %s48 = sphi 0, %s32
    %s52 = sphi 0, %s52
    %s54 = sphi 0, %s52
    %s55 = sphi 0, %s54
    %s69 = sphi 0, %s55
    %s73 = sphi 0, %s73
    %s75 = sphi 0, %s73
    %s76 = sphi 0, %s75
    %s90 = sphi 0, %s76
    %s94 = sphi 0, %s94
    %s96 = sphi 0, %s94
    %s97 = sphi 0, %s96
    %s111 = sphi 0, %s97
    %s115 = sphi 0, %s115
    %s117 = sphi 0, %s115
    %s118 = sphi 0, %s117
    %s132 = sphi 0, %s118
    %s136 = sphi 0, %s136
    %s138 = sphi 0, %s136
    %s139 = sphi 0, %s138
    %s153 = sphi 0, %s139
    %s157 = sphi 0, %s157
    %s159 = sphi 0, %s157
    %s160 = sphi 0, %s159
    %s174 = sphi 0, %s160
    %s178 = sphi 0, %s178
    %s180 = sphi 0, %s178
    %s181 = sphi 0, %s180
    %s195 = sphi 0, %s181
    %s199 = sphi 0, %s199
    %s201 = sphi 0, %s199
    %s202 = sphi 0, %s201
    %s216 = sphi 0, %s202
    %s220 = sphi 0, %s220
    %s222 = sphi 0, %s220
    %s223 = sphi 0, %s222
    %s237 = sphi 0, %s223
    %s241 = sphi 0, %s241
    %s243 = sphi 0, %s241
    %s244 = sphi 0, %s243
    %s258 = sphi 0, %s244
    %s262 = sphi 0, %s262
    %s264 = sphi 0, %s262
    %s265 = sphi 0, %s264
    %s279 = sphi 0, %s265
    %s285 = sphi 0, %s287
    %s288 = sphi 0, %s285
    %s289 = sphi 0, %s288
    %s305 = sphi 0, %s289
  $region4: #{model_forward.7} parent=0 // loop_header_branch
    %21 = sbr.rel (%p19) target = $region8
  $region5: #{model_forward.7} parent=0 // loop_body
    %s23 = ssub.s32 %s18, 1
    %s24 = ssub.s32 %s18, 2
    %s25 = sadd.s32 %s18, 1
    %s26 = ssub.s32 %s18, %s25
    %p27 = scmp.eq.s32.totalorder %s26, 0
    %s29 = sadd.s32 %s28, 1
    %s30 = scalar_select %p27, %s28, %s29
    %p33 = pneg %p27
    %p34 = scmp.eq.s32.totalorder %s18, 1
    %p35 = por %p33, %p34
    %p36 = scmp.ne.s32.totalorder %s28, %s31
    %p37 = scmp.eq.s32.totalorder %s18, 0
    %p38 = por %p36, %p37
    %p39 = scmp.ne.s32.totalorder %s28, %s31
    %p40 = scmp.eq.s32.totalorder %s23, 1
    %p41 = por %p39, %p40
    %p42 = scmp.ne.s32.totalorder %s31, %s32
    %p43 = scmp.eq.s32.totalorder %s23, 0
    %p44 = por %p42, %p43
    %p45 = scmp.ne.s32.totalorder %s31, %s32
    %p46 = scmp.eq.s32.totalorder %s24, 1
    %p47 = por %p45, %p46
    %p49 = scmp.ne.s32.totalorder %s32, %s48
    %p50 = scmp.eq.s32.totalorder %s24, 0
    %p51 = por %p49, %p50
    %s53 = sadd.s32 %s52, 1
    %p56 = scmp.eq.s32.totalorder %s18, 1
    %p57 = scmp.ne.s32.totalorder %s52, %s54
    %p58 = scmp.eq.s32.totalorder %s18, 0
    %p59 = por %p57, %p58
    %p60 = scmp.ne.s32.totalorder %s52, %s54
    %p61 = scmp.eq.s32.totalorder %s23, 1
    %p62 = por %p60, %p61
    %p63 = scmp.ne.s32.totalorder %s54, %s55
    %p64 = scmp.eq.s32.totalorder %s23, 0
    %p65 = por %p63, %p64
    %p66 = scmp.ne.s32.totalorder %s54, %s55
    %p67 = scmp.eq.s32.totalorder %s24, 1
    %p68 = por %p66, %p67
    %p70 = scmp.ne.s32.totalorder %s55, %s69
    %p71 = scmp.eq.s32.totalorder %s24, 0
    %p72 = por %p70, %p71
    %s74 = sadd.s32 %s73, 1
    %p77 = scmp.eq.s32.totalorder %s18, 1
    %p78 = scmp.ne.s32.totalorder %s73, %s75
    %p79 = scmp.eq.s32.totalorder %s18, 0
    %p80 = por %p78, %p79
    %p81 = scmp.ne.s32.totalorder %s73, %s75
    %p82 = scmp.eq.s32.totalorder %s23, 1
    %p83 = por %p81, %p82
    %p84 = scmp.ne.s32.totalorder %s75, %s76
    %p85 = scmp.eq.s32.totalorder %s23, 0
    %p86 = por %p84, %p85
    %p87 = scmp.ne.s32.totalorder %s75, %s76
    %p88 = scmp.eq.s32.totalorder %s24, 1
    %p89 = por %p87, %p88
    %p91 = scmp.ne.s32.totalorder %s76, %s90
    %p92 = scmp.eq.s32.totalorder %s24, 0
    %p93 = por %p91, %p92
    %s95 = sadd.s32 %s94, 1
    %p98 = scmp.eq.s32.totalorder %s18, 1
    %p99 = scmp.ne.s32.totalorder %s94, %s96
    %p100 = scmp.eq.s32.totalorder %s18, 0
    %p101 = por %p99, %p100
    %p102 = scmp.ne.s32.totalorder %s94, %s96
    %p103 = scmp.eq.s32.totalorder %s23, 1
    %p104 = por %p102, %p103
    %p105 = scmp.ne.s32.totalorder %s96, %s97
    %p106 = scmp.eq.s32.totalorder %s23, 0
    %p107 = por %p105, %p106
    %p108 = scmp.ne.s32.totalorder %s96, %s97
    %p109 = scmp.eq.s32.totalorder %s24, 1
    %p110 = por %p108, %p109
    %p112 = scmp.ne.s32.totalorder %s97, %s111
    %p113 = scmp.eq.s32.totalorder %s24, 0
    %p114 = por %p112, %p113
    %s116 = sadd.s32 %s115, 1
    %p119 = scmp.eq.s32.totalorder %s18, 1
    %p120 = scmp.ne.s32.totalorder %s115, %s117
    %p121 = scmp.eq.s32.totalorder %s18, 0
    %p122 = por %p120, %p121
    %p123 = scmp.ne.s32.totalorder %s115, %s117
    %p124 = scmp.eq.s32.totalorder %s23, 1
    %p125 = por %p123, %p124
    %p126 = scmp.ne.s32.totalorder %s117, %s118
    %p127 = scmp.eq.s32.totalorder %s23, 0
    %p128 = por %p126, %p127
    %p129 = scmp.ne.s32.totalorder %s117, %s118
    %p130 = scmp.eq.s32.totalorder %s24, 1
    %p131 = por %p129, %p130
    %p133 = scmp.ne.s32.totalorder %s118, %s132
    %p134 = scmp.eq.s32.totalorder %s24, 0
    %p135 = por %p133, %p134
    %s137 = sadd.s32 %s136, 1
    %p140 = scmp.eq.s32.totalorder %s18, 1
    %p141 = scmp.ne.s32.totalorder %s136, %s138
    %p142 = scmp.eq.s32.totalorder %s18, 0
    %p143 = por %p141, %p142
    %p144 = scmp.ne.s32.totalorder %s136, %s138
    %p145 = scmp.eq.s32.totalorder %s23, 1
    %p146 = por %p144, %p145
    %p147 = scmp.ne.s32.totalorder %s138, %s139
    %p148 = scmp.eq.s32.totalorder %s23, 0
    %p149 = por %p147, %p148
    %p150 = scmp.ne.s32.totalorder %s138, %s139
    %p151 = scmp.eq.s32.totalorder %s24, 1
    %p152 = por %p150, %p151
    %p154 = scmp.ne.s32.totalorder %s139, %s153
    %p155 = scmp.eq.s32.totalorder %s24, 0
    %p156 = por %p154, %p155
    %s158 = sadd.s32 %s157, 1
    %p161 = scmp.eq.s32.totalorder %s18, 1
    %p162 = scmp.ne.s32.totalorder %s157, %s159
    %p163 = scmp.eq.s32.totalorder %s18, 0
    %p164 = por %p162, %p163
    %p165 = scmp.ne.s32.totalorder %s157, %s159
    %p166 = scmp.eq.s32.totalorder %s23, 1
    %p167 = por %p165, %p166
    %p168 = scmp.ne.s32.totalorder %s159, %s160
    %p169 = scmp.eq.s32.totalorder %s23, 0
    %p170 = por %p168, %p169
    %p171 = scmp.ne.s32.totalorder %s159, %s160
    %p172 = scmp.eq.s32.totalorder %s24, 1
    %p173 = por %p171, %p172
    %p175 = scmp.ne.s32.totalorder %s160, %s174
    %p176 = scmp.eq.s32.totalorder %s24, 0
    %p177 = por %p175, %p176
    %s179 = sadd.s32 %s178, 1
    %p182 = scmp.eq.s32.totalorder %s18, 1
    %p183 = scmp.ne.s32.totalorder %s178, %s180
    %p184 = scmp.eq.s32.totalorder %s18, 0
    %p185 = por %p183, %p184
    %p186 = scmp.ne.s32.totalorder %s178, %s180
    %p187 = scmp.eq.s32.totalorder %s23, 1
    %p188 = por %p186, %p187
    %p189 = scmp.ne.s32.totalorder %s180, %s181
    %p190 = scmp.eq.s32.totalorder %s23, 0
    %p191 = por %p189, %p190
    %p192 = scmp.ne.s32.totalorder %s180, %s181
    %p193 = scmp.eq.s32.totalorder %s24, 1
    %p194 = por %p192, %p193
    %p196 = scmp.ne.s32.totalorder %s181, %s195
    %p197 = scmp.eq.s32.totalorder %s24, 0
    %p198 = por %p196, %p197
    %s200 = sadd.s32 %s199, 1
    %p203 = scmp.eq.s32.totalorder %s18, 1
    %p204 = scmp.ne.s32.totalorder %s199, %s201
    %p205 = scmp.eq.s32.totalorder %s18, 0
    %p206 = por %p204, %p205
    %p207 = scmp.ne.s32.totalorder %s199, %s201
    %p208 = scmp.eq.s32.totalorder %s23, 1
    %p209 = por %p207, %p208
    %p210 = scmp.ne.s32.totalorder %s201, %s202
    %p211 = scmp.eq.s32.totalorder %s23, 0
    %p212 = por %p210, %p211
    %p213 = scmp.ne.s32.totalorder %s201, %s202
    %p214 = scmp.eq.s32.totalorder %s24, 1
    %p215 = por %p213, %p214
    %p217 = scmp.ne.s32.totalorder %s202, %s216
    %p218 = scmp.eq.s32.totalorder %s24, 0
    %p219 = por %p217, %p218
    %s221 = sadd.s32 %s220, 1
    %p224 = scmp.eq.s32.totalorder %s18, 1
    %p225 = scmp.ne.s32.totalorder %s220, %s222
    %p226 = scmp.eq.s32.totalorder %s18, 0
    %p227 = por %p225, %p226
    %p228 = scmp.ne.s32.totalorder %s220, %s222
    %p229 = scmp.eq.s32.totalorder %s23, 1
    %p230 = por %p228, %p229
    %p231 = scmp.ne.s32.totalorder %s222, %s223
    %p232 = scmp.eq.s32.totalorder %s23, 0
    %p233 = por %p231, %p232
    %p234 = scmp.ne.s32.totalorder %s222, %s223
    %p235 = scmp.eq.s32.totalorder %s24, 1
    %p236 = por %p234, %p235
    %p238 = scmp.ne.s32.totalorder %s223, %s237
    %p239 = scmp.eq.s32.totalorder %s24, 0
    %p240 = por %p238, %p239
    %s242 = sadd.s32 %s241, 1
    %p245 = scmp.eq.s32.totalorder %s18, 1
    %p246 = scmp.ne.s32.totalorder %s241, %s243
    %p247 = scmp.eq.s32.totalorder %s18, 0
    %p248 = por %p246, %p247
    %p249 = scmp.ne.s32.totalorder %s241, %s243
    %p250 = scmp.eq.s32.totalorder %s23, 1
    %p251 = por %p249, %p250
    %p252 = scmp.ne.s32.totalorder %s243, %s244
    %p253 = scmp.eq.s32.totalorder %s23, 0
    %p254 = por %p252, %p253
    %p255 = scmp.ne.s32.totalorder %s243, %s244
    %p256 = scmp.eq.s32.totalorder %s24, 1
    %p257 = por %p255, %p256
    %p259 = scmp.ne.s32.totalorder %s244, %s258
    %p260 = scmp.eq.s32.totalorder %s24, 0
    %p261 = por %p259, %p260
    %s263 = sadd.s32 %s262, 1
    %p266 = scmp.eq.s32.totalorder %s18, 1
    %p267 = scmp.ne.s32.totalorder %s262, %s264
    %p268 = scmp.eq.s32.totalorder %s18, 0
    %p269 = por %p267, %p268
    %p270 = scmp.ne.s32.totalorder %s262, %s264
    %p271 = scmp.eq.s32.totalorder %s23, 1
    %p272 = por %p270, %p271
    %p273 = scmp.ne.s32.totalorder %s264, %s265
    %p274 = scmp.eq.s32.totalorder %s23, 0
    %p275 = por %p273, %p274
    %p276 = scmp.ne.s32.totalorder %s264, %s265
    %p277 = scmp.eq.s32.totalorder %s24, 1
    %p278 = por %p276, %p277
    %p280 = scmp.ne.s32.totalorder %s265, %s279
    %p281 = scmp.eq.s32.totalorder %s24, 0
    %p282 = por %p280, %p281
    %s283 = ssub.s32 %s18, %s25
    %p284 = scmp.eq.s32.totalorder %s283, 0
    %s286 = sadd.s32 %s285, 1
    %s287 = scalar_select %p284, %s285, %s286
    %p290 = pneg %p284
    %p291 = scmp.eq.s32.totalorder %s18, 1
    %p292 = por %p290, %p291
    %p293 = scmp.ne.s32.totalorder %s285, %s288
    %p294 = scmp.eq.s32.totalorder %s18, 0
    %p295 = por %p293, %p294
    %p296 = scmp.ne.s32.totalorder %s285, %s288
    %p297 = scmp.eq.s32.totalorder %s23, 1
    %p298 = por %p296, %p297
    %p299 = scmp.ne.s32.totalorder %s288, %s289
    %p300 = scmp.eq.s32.totalorder %s23, 0
    %p301 = por %p299, %p300
    %p302 = scmp.ne.s32.totalorder %s288, %s289
    %p303 = scmp.eq.s32.totalorder %s24, 1
    %p304 = por %p302, %p303
    %p306 = scmp.ne.s32.totalorder %s289, %s305
    %p307 = scmp.eq.s32.totalorder %s24, 0
    %p308 = por %p306, %p307
    %p309 = scmp.le.s32.totalorder 1, %s18
    %p310 = scmp.lt.s32.totalorder %s18, 3
    %p311 = pnand %p309, %p310
    %p312 = pneg %p311
    // Predicated region
    $region9: #{model_forward.7} parent=5 // pred_check
      _
    $region10: #{model_forward.7} parent=5 // pred_check_branch
      %314 = sbr.rel (%p311) target = $region12
    $region11: #{model_forward.7} parent=5 // pred_region
      %s315 = ssub.s32 %s18, 1
      // Predicated region
      $region13: #{model_forward.7} parent=11 // pred_check
        %p316 = pneg %p65
      $region14: #{model_forward.7} parent=11 // pred_check_branch
        %318 = sbr.rel (%p316) target = $region16
      $region15: #{model_forward.7} parent=11 // pred_region
        _
      $region16: #{model_forward.7} parent=11 // pred_fallthru
        _
      // Predicated region
      $region17: #{model_forward.7} parent=11 // pred_check
        %p319 = pneg %p86
      $region18: #{model_forward.7} parent=11 // pred_check_branch
        %321 = sbr.rel (%p319) target = $region20
      $region19: #{model_forward.7} parent=11 // pred_region
        _
      $region20: #{model_forward.7} parent=11 // pred_fallthru
        _
      // Predicated region
      $region21: #{model_forward.7} parent=11 // pred_check
        %p322 = pneg %p107
      $region22: #{model_forward.7} parent=11 // pred_check_branch
        %324 = sbr.rel (%p322) target = $region24
      $region23: #{model_forward.7} parent=11 // pred_region
        _
      $region24: #{model_forward.7} parent=11 // pred_fallthru
        _
      // Predicated region
      $region25: #{model_forward.7} parent=11 // pred_check
        %p325 = pneg %p128
      $region26: #{model_forward.7} parent=11 // pred_check_branch
        %327 = sbr.rel (%p325) target = $region28
      $region27: #{model_forward.7} parent=11 // pred_region
        _
      $region28: #{model_forward.7} parent=11 // pred_fallthru
        _
      // Predicated region
      $region29: #{model_forward.7} parent=11 // pred_check
        %p328 = pneg %p149
      $region30: #{model_forward.7} parent=11 // pred_check_branch
        %330 = sbr.rel (%p328) target = $region32
      $region31: #{model_forward.7} parent=11 // pred_region
        _
      $region32: #{model_forward.7} parent=11 // pred_fallthru
        _
      // Predicated region
      $region33: #{model_forward.7} parent=11 // pred_check
        %p331 = pneg %p170
      $region34: #{model_forward.7} parent=11 // pred_check_branch
        %333 = sbr.rel (%p331) target = $region36
      $region35: #{model_forward.7} parent=11 // pred_region
        _
      $region36: #{model_forward.7} parent=11 // pred_fallthru
        _
      // Predicated region
      $region37: #{model_forward.7} parent=11 // pred_check
        %p334 = pneg %p191
      $region38: #{model_forward.7} parent=11 // pred_check_branch
        %336 = sbr.rel (%p334) target = $region40
      $region39: #{model_forward.7} parent=11 // pred_region
        _
      $region40: #{model_forward.7} parent=11 // pred_fallthru
        _
      // Predicated region
      $region41: #{model_forward.7} parent=11 // pred_check
        %p337 = pneg %p212
      $region42: #{model_forward.7} parent=11 // pred_check_branch
        %339 = sbr.rel (%p337) target = $region44
      $region43: #{model_forward.7} parent=11 // pred_region
        _
      $region44: #{model_forward.7} parent=11 // pred_fallthru
        _
      // Predicated region
      $region45: #{model_forward.7} parent=11 // pred_check
        %p340 = pneg %p233
      $region46: #{model_forward.7} parent=11 // pred_check_branch
        %342 = sbr.rel (%p340) target = $region48
      $region47: #{model_forward.7} parent=11 // pred_region
        _
      $region48: #{model_forward.7} parent=11 // pred_fallthru
        _
      // Predicated region
      $region49: #{model_forward.7} parent=11 // pred_check
        %p343 = pneg %p254
      $region50: #{model_forward.7} parent=11 // pred_check_branch
        %345 = sbr.rel (%p343) target = $region52
      $region51: #{model_forward.7} parent=11 // pred_region
        _
      $region52: #{model_forward.7} parent=11 // pred_fallthru
        _
      // Predicated region
      $region53: #{model_forward.7} parent=11 // pred_check
        %p346 = pneg %p275
      $region54: #{model_forward.7} parent=11 // pred_check_branch
        %348 = sbr.rel (%p346) target = $region56
      $region55: #{model_forward.7} parent=11 // pred_region
        _
      $region56: #{model_forward.7} parent=11 // pred_fallthru
        _
    $region12: #{model_forward.7} parent=5 // pred_fallthru
      _
    %p349 = scmp.lt.s32.totalorder %s18, 2
    // Predicated region
    $region57: #{model_forward.7} parent=5 // pred_check
      %p350 = pneg %p349
    $region58: #{model_forward.7} parent=5 // pred_check_branch
      %352 = sbr.rel (%p350) target = $region60
    $region59: #{model_forward.7} parent=5 // pred_region
      // Predicated region
      $region61: #{model_forward.7} parent=59 // pred_check
        %p353 = pneg %p38
      $region62: #{model_forward.7} parent=59 // pred_check_branch
        %355 = sbr.rel (%p353) target = $region64
      $region63: #{model_forward.7} parent=59 // pred_region
        %p356 = scmp.lt.s32.totalorder %s18, 1
        %s357 = scalar_select %p356, %s18, 1
        %s358 = smul.addr %s357, 8
        %s359 = smul.addr %s358, 8
        %s360 = scalar_lea.vmem %s0, %s359
      $region64: #{model_forward.7} parent=59 // pred_fallthru
        _
    $region60: #{model_forward.7} parent=5 // pred_fallthru
      _
    %p361 = scmp.le.s32.totalorder 1, %s18
    %p362 = scmp.lt.s32.totalorder %s18, 3
    %p363 = pnand %p361, %p362
    %p364 = pneg %p363
    // Predicated region
    $region65: #{model_forward.7} parent=5 // pred_check
      _
    $region66: #{model_forward.7} parent=5 // pred_check_branch
      %366 = sbr.rel (%p363) target = $region68
    $region67: #{model_forward.7} parent=5 // pred_region
      %s367 = ssub.s32 %s18, 1
      %p368 = scmp.lt.s32.totalorder %s23, 1
      %s369 = scalar_select %p368, %s23, 1
      %s370 = smul.addr %s369, 8
      %s371 = smul.addr %s370, 8
      %s372 = scalar_lea.vmem %s0, %s371
      %p373 = pneg %p44
      %p374 = pneg %p41
      %p375 = pneg %p65
      %p376 = pneg %p62
      %p377 = pneg %p86
      %p378 = pneg %p83
      %p379 = pneg %p107
      %p380 = pneg %p104
      %p381 = pneg %p128
      %p382 = pneg %p125
      %p383 = pneg %p149
      %p384 = pneg %p146
      %p385 = pneg %p170
      %p386 = pneg %p167
      %p387 = pneg %p191
      %p388 = pneg %p188
      %p389 = pneg %p212
      %p390 = pneg %p209
      %p391 = pneg %p233
      %p392 = pneg %p230
      %p393 = pneg %p254
      %p394 = pneg %p251
      %p395 = pneg %p275
      %p396 = pneg %p272
      %p397 = pneg %p301
      %p398 = pneg %p298
      %p399 = scmp.lt.s32.totalorder %s23, 1
      %s400 = scalar_select %p399, %s23, 1
      %s401 = smul.addr %s400, 8
      %s402 = smul.addr %s401, 8
      %s403 = scalar_lea.vmem %s12, %s402
      %p404 = scmp.lt.s32.totalorder %s23, 1
      %s405 = scalar_select %p404, %s23, 1
      %s406 = smul.addr %s405, 8
      %s407 = smul.addr %s406, 8
      %s408 = scalar_lea.vmem %s0, %s407
      %p409 = scmp.lt.s32.totalorder %s23, 1
      %s410 = scalar_select %p409, %s23, 1
      %s411 = smul.addr %s410, 8
      %s412 = smul.addr %s411, 8
      %s413 = scalar_lea.vmem %s12, %s412
      %v414 = vld [vmem:[%s408] sm:$0xff]
      %v415 = vld [vmem:[%s408 + $0x8] sm:$0xff]
      %v416 = vld [vmem:[%s408 + $0x10] sm:$0xff]
      %v417 = vld [vmem:[%s408 + $0x18] sm:$0xff]
      %v418 = vld [vmem:[%s408 + $0x20] sm:$0xff]
      %v419 = vld [vmem:[%s408 + $0x28] sm:$0xff]
      %v420 = vld [vmem:[%s408 + $0x30] sm:$0xff]
      %v421 = vld [vmem:[%s408 + $0x38] sm:$0xff]
      %v422 = vld [vmem:[%s1] sm:$0x1]
      %v423 = vld [vmem:[%s2] sm:$0x1]
      %vm424 = vcmask 261120
      %v425 = vsel %vm424, %v414, 0.0
      %426 = vadd.xlane.f32.xlu0 %v425
      %v427 = vpop.xlane.xlu0 %426
      %v428 = vsel %vm424, %v415, 0.0
      %429 = vadd.xlane.f32.xlu0 %v428
      %v430 = vpop.xlane.xlu0 %429
      %v431 = vsel %vm424, %v416, 0.0
      %432 = vadd.xlane.f32.xlu0 %v431
      %v433 = vpop.xlane.xlu0 %432
      %v434 = vsel %vm424, %v417, 0.0
      %435 = vadd.xlane.f32.xlu0 %v434
      %v436 = vpop.xlane.xlu0 %435
      %v437 = vsel %vm424, %v418, 0.0
      %438 = vadd.xlane.f32.xlu0 %v437
      %v439 = vpop.xlane.xlu0 %438
      %v440 = vsel %vm424, %v419, 0.0
      %441 = vadd.xlane.f32.xlu0 %v440
      %v442 = vpop.xlane.xlu0 %441
      %v443 = vsel %vm424, %v420, 0.0
      %444 = vadd.xlane.f32.xlu0 %v443
      %v445 = vpop.xlane.xlu0 %444
      %v446 = vsel %vm424, %v421, 0.0
      %447 = vadd.xlane.f32.xlu0 %v446
      %v448 = vpop.xlane.xlu0 %447
      %v449 = vrcp.pop 32.0
      %v450 = vmul.f32 32.0, %v449
      %v451 = vsub.f32 1.0, %v450
      %v452 = vmul.f32 %v449, %v451
      %v453 = vadd.f32 %v449, %v452
      %vm454 = vweird.f32 %v449
      %v455 = vsel %vm454, %v449, %v453
      %v456 = vmul.f32 %v427, %v455
      %v457 = vmul.f32 %v430, %v455
      %v458 = vmul.f32 %v433, %v455
      %v459 = vmul.f32 %v436, %v455
      %v460 = vmul.f32 %v439, %v455
      %v461 = vmul.f32 %v442, %v455
      %v462 = vmul.f32 %v445, %v455
      %v463 = vmul.f32 %v448, %v455
      %v464 = vsub.f32 %v414, %v456
      %v465 = vsub.f32 %v415, %v457
      %v466 = vsub.f32 %v416, %v458
      %v467 = vsub.f32 %v417, %v459
      %v468 = vsub.f32 %v418, %v460
      %v469 = vsub.f32 %v419, %v461
      %v470 = vsub.f32 %v420, %v462
      %v471 = vsub.f32 %v421, %v463
      %v472 = vmul.f32 %v464, %v464
      %v473 = vmul.f32 %v465, %v465
      %v474 = vmul.f32 %v466, %v466
      %v475 = vmul.f32 %v467, %v467
      %v476 = vmul.f32 %v468, %v468
      %v477 = vmul.f32 %v469, %v469
      %v478 = vmul.f32 %v470, %v470
      %v479 = vmul.f32 %v471, %v471
      %v480 = vsel %vm424, %v472, 0.0
      %481 = vadd.xlane.f32.xlu0 %v480
      %v482 = vpop.xlane.xlu0 %481
      %v483 = vsel %vm424, %v473, 0.0
      %484 = vadd.xlane.f32.xlu0 %v483
      %v485 = vpop.xlane.xlu0 %484
      %v486 = vsel %vm424, %v474, 0.0
      %487 = vadd.xlane.f32.xlu0 %v486
      %v488 = vpop.xlane.xlu0 %487
      %v489 = vsel %vm424, %v475, 0.0
      %490 = vadd.xlane.f32.xlu0 %v489
      %v491 = vpop.xlane.xlu0 %490
      %v492 = vsel %vm424, %v476, 0.0
      %493 = vadd.xlane.f32.xlu0 %v492
      %v494 = vpop.xlane.xlu0 %493
      %v495 = vsel %vm424, %v477, 0.0
      %496 = vadd.xlane.f32.xlu0 %v495
      %v497 = vpop.xlane.xlu0 %496
      %v498 = vsel %vm424, %v478, 0.0
      %499 = vadd.xlane.f32.xlu0 %v498
      %v500 = vpop.xlane.xlu0 %499
      %v501 = vsel %vm424, %v479, 0.0
      %502 = vadd.xlane.f32.xlu0 %v501
      %v503 = vpop.xlane.xlu0 %502
      %v504 = vmul.f32 %v482, %v455
      %v505 = vmul.f32 %v485, %v455
      %v506 = vmul.f32 %v488, %v455
      %v507 = vmul.f32 %v491, %v455
      %v508 = vmul.f32 %v494, %v455
      %v509 = vmul.f32 %v497, %v455
      %v510 = vmul.f32 %v500, %v455
      %v511 = vmul.f32 %v503, %v455
      %v512 = vadd.f32 %v504, 1e-05
      %v513 = vadd.f32 %v505, 1e-05
      %v514 = vadd.f32 %v506, 1e-05
      %v515 = vadd.f32 %v507, 1e-05
      %v516 = vadd.f32 %v508, 1e-05
      %v517 = vadd.f32 %v509, 1e-05
      %v518 = vadd.f32 %v510, 1e-05
      %v519 = vadd.f32 %v511, 1e-05
      %v520 = vrsqrt.pop %v512
      %v521 = vmul.f32 %v520, %v512
      %v522 = vmul.f32 %v521, %v520
      %v523 = vmul.f32 0.5, %v522
      %v524 = vsub.f32 1.5, %v523
      %v525 = vmul.f32 %v520, %v524
      %vm526 = vweird.f32 %v512
      %vm527 = vweird.f32 %v520
      %vm528 = vmor %vm526, %vm527
      %v529 = vsel %vm528, %v520, %v525
      %v530 = vrsqrt.pop %v513
      %v531 = vmul.f32 %v530, %v513
      %v532 = vmul.f32 %v531, %v530
      %v533 = vmul.f32 0.5, %v532
      %v534 = vsub.f32 1.5, %v533
      %v535 = vmul.f32 %v530, %v534
      %vm536 = vweird.f32 %v513
      %vm537 = vweird.f32 %v530
      %vm538 = vmor %vm536, %vm537
      %v539 = vsel %vm538, %v530, %v535
      %v540 = vrsqrt.pop %v514
      %v541 = vmul.f32 %v540, %v514
      %v542 = vmul.f32 %v541, %v540
      %v543 = vmul.f32 0.5, %v542
      %v544 = vsub.f32 1.5, %v543
      %v545 = vmul.f32 %v540, %v544
      %vm546 = vweird.f32 %v514
      %vm547 = vweird.f32 %v540
      %vm548 = vmor %vm546, %vm547
      %v549 = vsel %vm548, %v540, %v545
      %v550 = vrsqrt.pop %v515
      %v551 = vmul.f32 %v550, %v515
      %v552 = vmul.f32 %v551, %v550
      %v553 = vmul.f32 0.5, %v552
      %v554 = vsub.f32 1.5, %v553
      %v555 = vmul.f32 %v550, %v554
      %vm556 = vweird.f32 %v515
      %vm557 = vweird.f32 %v550
      %vm558 = vmor %vm556, %vm557
      %v559 = vsel %vm558, %v550, %v555
      %v560 = vrsqrt.pop %v516
      %v561 = vmul.f32 %v560, %v516
      %v562 = vmul.f32 %v561, %v560
      %v563 = vmul.f32 0.5, %v562
      %v564 = vsub.f32 1.5, %v563
      %v565 = vmul.f32 %v560, %v564
      %vm566 = vweird.f32 %v516
      %vm567 = vweird.f32 %v560
      %vm568 = vmor %vm566, %vm567
      %v569 = vsel %vm568, %v560, %v565
      %v570 = vrsqrt.pop %v517
      %v571 = vmul.f32 %v570, %v517
      %v572 = vmul.f32 %v571, %v570
      %v573 = vmul.f32 0.5, %v572
      %v574 = vsub.f32 1.5, %v573
      %v575 = vmul.f32 %v570, %v574
      %vm576 = vweird.f32 %v517
      %vm577 = vweird.f32 %v570
      %vm578 = vmor %vm576, %vm577
      %v579 = vsel %vm578, %v570, %v575
      %v580 = vrsqrt.pop %v518
      %v581 = vmul.f32 %v580, %v518
      %v582 = vmul.f32 %v581, %v580
      %v583 = vmul.f32 0.5, %v582
      %v584 = vsub.f32 1.5, %v583
      %v585 = vmul.f32 %v580, %v584
      %vm586 = vweird.f32 %v518
      %vm587 = vweird.f32 %v580
      %vm588 = vmor %vm586, %vm587
      %v589 = vsel %vm588, %v580, %v585
      %v590 = vrsqrt.pop %v519
      %v591 = vmul.f32 %v590, %v519
      %v592 = vmul.f32 %v591, %v590
      %v593 = vmul.f32 0.5, %v592
      %v594 = vsub.f32 1.5, %v593
      %v595 = vmul.f32 %v590, %v594
      %vm596 = vweird.f32 %v519
      %vm597 = vweird.f32 %v590
      %vm598 = vmor %vm596, %vm597
      %v599 = vsel %vm598, %v590, %v595
      %v600 = vmul.f32 %v464, %v529
      %v601 = vmul.f32 %v465, %v539
      %v602 = vmul.f32 %v466, %v549
      %v603 = vmul.f32 %v467, %v559
      %v604 = vmul.f32 %v468, %v569
      %v605 = vmul.f32 %v469, %v579
      %v606 = vmul.f32 %v470, %v589
      %v607 = vmul.f32 %v471, %v599
      %v609 = vperm.slane %v422, 0
      %v611 = vmul.f32 %v600, %v609
      %v612 = vmul.f32 %v601, %v609
      %v613 = vmul.f32 %v602, %v609
      %v614 = vmul.f32 %v603, %v609
      %v615 = vmul.f32 %v604, %v609
      %v616 = vmul.f32 %v605, %v609
      %v617 = vmul.f32 %v606, %v609
      %v618 = vmul.f32 %v607, %v609
      %v620 = vperm.slane %v423, 0
      %v622 = vadd.f32 %v611, %v620
      %v623 = vadd.f32 %v612, %v620
      %v624 = vadd.f32 %v613, %v620
      %v625 = vadd.f32 %v614, %v620
      %v626 = vadd.f32 %v615, %v620
      %v627 = vadd.f32 %v616, %v620
      %v628 = vadd.f32 %v617, %v620
      %v629 = vadd.f32 %v618, %v620
      %v630 = vld [vmem:[%s3] sm:$0xff]
      %v631 = vld [vmem:[%s3 + $0x8] sm:$0xff]
      %v632 = vld [vmem:[%s3 + $0x10] sm:$0xff]
      %v633 = vld [vmem:[%s3 + $0x18] sm:$0xff]
      %v635 = vsel %vm424, %v622, 0
      %v638 = vsel %vm424, %v623, 0
      %v641 = vsel %vm424, %v624, 0
      %v644 = vsel %vm424, %v625, 0
      %v647 = vsel %vm424, %v626, 0
      %v650 = vsel %vm424, %v627, 0
      %v653 = vsel %vm424, %v628, 0
      %v656 = vsel %vm424, %v629, 0
      %658 = vmatpush.msra.mxu0 0.0
      %659 = vmatpush.msra.mxu0 0.0
      %660 = vmatpush.msra.mxu0 0.0
      %661 = vmatpush.msra.mxu0 0.0
      %662 = vmatpush.msra.mxu0 0.0
      %663 = vmatpush.msra.mxu0 0.0
      %664 = vmatpush.msra.mxu0 0.0
      %665 = vmatpush.msra.mxu0 0.0
      %666 = vmatpush.msra.mxu0 0.0
      %667 = vmatpush.msra.mxu0 0.0
      %668 = vmatpush.msra.mxu0 0.0
      %669 = vmatpush.msra.mxu0 0.0
      %670 = vmatpush.msra.mxu0 %v633
      %671 = vmatpush.msra.mxu0 %v632
      %672 = vmatpush.msra.mxu0 %v631
      %673 = vmatpush.msra.mxu0 %v630
      %674 = vmatmul.f32.gmra.mxu0 %v635
      %v675 = vpop.f32.mrf.mxu0
      %v676 = vadd.f32 0.0, %v675
      %677 = vmatmul.f32.gmra.mxu0 %v638
      %v678 = vpop.f32.mrf.mxu0
      %v679 = vadd.f32 0.0, %v678
      %680 = vmatmul.f32.gmra.mxu0 %v641
      %v681 = vpop.f32.mrf.mxu0
      %v682 = vadd.f32 0.0, %v681
      %683 = vmatmul.f32.gmra.mxu0 %v644
      %v684 = vpop.f32.mrf.mxu0
      %v685 = vadd.f32 0.0, %v684
      %686 = vmatmul.f32.gmra.mxu0 %v647
      %v687 = vpop.f32.mrf.mxu0
      %v688 = vadd.f32 0.0, %v687
      %689 = vmatmul.f32.gmra.mxu0 %v650
      %v690 = vpop.f32.mrf.mxu0
      %v691 = vadd.f32 0.0, %v690
      %692 = vmatmul.f32.gmra.mxu0 %v653
      %v693 = vpop.f32.mrf.mxu0
      %v694 = vadd.f32 0.0, %v693
      %695 = vmatmul.f32.gmra.mxu0 %v656
      %v696 = vpop.f32.mrf.mxu0
      %v697 = vadd.f32 0.0, %v696
      %698 = vdwg.mxu0
      %s699 = scalar_lea.vmem %s3, 64
      %v700 = vld [vmem:[%s699] sm:$0xff]
      %v701 = vld [vmem:[%s699 + $0x8] sm:$0xff]
      %v702 = vld [vmem:[%s699 + $0x10] sm:$0xff]
      %v703 = vld [vmem:[%s699 + $0x18] sm:$0xff]
      %704 = vmatpush.msra.mxu0 0.0
      %705 = vmatpush.msra.mxu0 0.0
      %706 = vmatpush.msra.mxu0 0.0
      %707 = vmatpush.msra.mxu0 0.0
      %708 = vmatpush.msra.mxu0 0.0
      %709 = vmatpush.msra.mxu0 0.0
      %710 = vmatpush.msra.mxu0 0.0
      %711 = vmatpush.msra.mxu0 0.0
      %712 = vmatpush.msra.mxu0 0.0
      %713 = vmatpush.msra.mxu0 0.0
      %714 = vmatpush.msra.mxu0 0.0
      %715 = vmatpush.msra.mxu0 0.0
      %716 = vmatpush.msra.mxu0 %v703
      %717 = vmatpush.msra.mxu0 %v702
      %718 = vmatpush.msra.mxu0 %v701
      %719 = vmatpush.msra.mxu0 %v700
      %720 = vmatmul.f32.gmra.mxu0 %v635
      %v721 = vpop.f32.mrf.mxu0
      %v722 = vadd.f32 0.0, %v721
      %723 = vmatmul.f32.gmra.mxu0 %v638
      %v724 = vpop.f32.mrf.mxu0
      %v725 = vadd.f32 0.0, %v724
      %726 = vmatmul.f32.gmra.mxu0 %v641
      %v727 = vpop.f32.mrf.mxu0
      %v728 = vadd.f32 0.0, %v727
      %729 = vmatmul.f32.gmra.mxu0 %v644
      %v730 = vpop.f32.mrf.mxu0
      %v731 = vadd.f32 0.0, %v730
      %732 = vmatmul.f32.gmra.mxu0 %v647
      %v733 = vpop.f32.mrf.mxu0
      %v734 = vadd.f32 0.0, %v733
      %735 = vmatmul.f32.gmra.mxu0 %v650
      %v736 = vpop.f32.mrf.mxu0
      %v737 = vadd.f32 0.0, %v736
      %738 = vmatmul.f32.gmra.mxu0 %v653
      %v739 = vpop.f32.mrf.mxu0
      %v740 = vadd.f32 0.0, %v739
      %741 = vmatmul.f32.gmra.mxu0 %v656
      %v742 = vpop.f32.mrf.mxu0
      %v743 = vadd.f32 0.0, %v742
      %744 = vdwg.mxu0
      %s745 = scalar_lea.vmem %s3, 128
      %v746 = vld [vmem:[%s745] sm:$0xff]
      %v747 = vld [vmem:[%s745 + $0x8] sm:$0xff]
      %v748 = vld [vmem:[%s745 + $0x10] sm:$0xff]
      %v749 = vld [vmem:[%s745 + $0x18] sm:$0xff]
      %750 = vmatpush.msra.mxu0 0.0
      %751 = vmatpush.msra.mxu0 0.0
      %752 = vmatpush.msra.mxu0 0.0
      %753 = vmatpush.msra.mxu0 0.0
      %754 = vmatpush.msra.mxu0 0.0
      %755 = vmatpush.msra.mxu0 0.0
      %756 = vmatpush.msra.mxu0 0.0
      %757 = vmatpush.msra.mxu0 0.0
      %758 = vmatpush.msra.mxu0 0.0
      %759 = vmatpush.msra.mxu0 0.0
      %760 = vmatpush.msra.mxu0 0.0
      %761 = vmatpush.msra.mxu0 0.0
      %762 = vmatpush.msra.mxu0 %v749
      %763 = vmatpush.msra.mxu0 %v748
      %764 = vmatpush.msra.mxu0 %v747
      %765 = vmatpush.msra.mxu0 %v746
      %766 = vmatmul.f32.gmra.mxu0 %v635
      %v767 = vpop.f32.mrf.mxu0
      %v768 = vadd.f32 0.0, %v767
      %769 = vmatmul.f32.gmra.mxu0 %v638
      %v770 = vpop.f32.mrf.mxu0
      %v771 = vadd.f32 0.0, %v770
      %772 = vmatmul.f32.gmra.mxu0 %v641
      %v773 = vpop.f32.mrf.mxu0
      %v774 = vadd.f32 0.0, %v773
      %775 = vmatmul.f32.gmra.mxu0 %v644
      %v776 = vpop.f32.mrf.mxu0
      %v777 = vadd.f32 0.0, %v776
      %778 = vmatmul.f32.gmra.mxu0 %v647
      %v779 = vpop.f32.mrf.mxu0
      %v780 = vadd.f32 0.0, %v779
      %781 = vmatmul.f32.gmra.mxu0 %v650
      %v782 = vpop.f32.mrf.mxu0
      %v783 = vadd.f32 0.0, %v782
      %784 = vmatmul.f32.gmra.mxu0 %v653
      %v785 = vpop.f32.mrf.mxu0
      %v786 = vadd.f32 0.0, %v785
      %787 = vmatmul.f32.gmra.mxu0 %v656
      %v788 = vpop.f32.mrf.mxu0
      %v789 = vadd.f32 0.0, %v788
      %790 = vdwg.mxu0
      %vm791 = vcmask 130048
      %v793 = vsel %vm791, %v676, 0
      %v796 = vsel %vm791, %v679, 0
      %v799 = vsel %vm791, %v682, 0
      %v802 = vsel %vm791, %v685, 0
      %v805 = vsel %vm791, %v688, 0
      %v808 = vsel %vm791, %v691, 0
      %v811 = vsel %vm791, %v694, 0
      %v814 = vsel %vm791, %v697, 0
      %v817 = vsel %vm791, %v722, 0
      %v820 = vsel %vm791, %v725, 0
      %v823 = vsel %vm791, %v728, 0
      %v826 = vsel %vm791, %v731, 0
      %v829 = vsel %vm791, %v734, 0
      %v832 = vsel %vm791, %v737, 0
      %v835 = vsel %vm791, %v740, 0
      %v838 = vsel %vm791, %v743, 0
      %840 = vmatpush.xpose.msra.mxu0 0.0
      %841 = vmatpush.xpose.msra.mxu0 0.0
      %842 = vmatpush.xpose.msra.mxu0 0.0
      %843 = vmatpush.xpose.msra.mxu0 0.0
      %844 = vmatpush.xpose.msra.mxu0 0.0
      %845 = vmatpush.xpose.msra.mxu0 0.0
      %846 = vmatpush.xpose.msra.mxu0 0.0
      %847 = vmatpush.xpose.msra.mxu0 0.0
      %848 = vmatpush.xpose.msra.mxu0 %v838
      %849 = vmatpush.xpose.msra.mxu0 %v835
      %850 = vmatpush.xpose.msra.mxu0 %v832
      %851 = vmatpush.xpose.msra.mxu0 %v829
      %852 = vmatpush.xpose.msra.mxu0 %v826
      %853 = vmatpush.xpose.msra.mxu0 %v823
      %854 = vmatpush.xpose.msra.mxu0 %v820
      %855 = vmatpush.xpose.msra.mxu0 %v817
      %856 = vmatmul.f32.gmra.mxu0 %v793
      %v857 = vpop.f32.mrf.mxu0
      %v858 = vadd.f32 0.0, %v857
      %859 = vmatmul.f32.gmra.mxu0 %v796
      %v860 = vpop.f32.mrf.mxu0
      %v861 = vadd.f32 0.0, %v860
      %862 = vmatmul.f32.gmra.mxu0 %v799
      %v863 = vpop.f32.mrf.mxu0
      %v864 = vadd.f32 0.0, %v863
      %865 = vmatmul.f32.gmra.mxu0 %v802
      %v866 = vpop.f32.mrf.mxu0
      %v867 = vadd.f32 0.0, %v866
      %868 = vmatmul.f32.gmra.mxu0 %v805
      %v869 = vpop.f32.mrf.mxu0
      %v870 = vadd.f32 0.0, %v869
      %871 = vmatmul.f32.gmra.mxu0 %v808
      %v872 = vpop.f32.mrf.mxu0
      %v873 = vadd.f32 0.0, %v872
      %874 = vmatmul.f32.gmra.mxu0 %v811
      %v875 = vpop.f32.mrf.mxu0
      %v876 = vadd.f32 0.0, %v875
      %877 = vmatmul.f32.gmra.mxu0 %v814
      %v878 = vpop.f32.mrf.mxu0
      %v879 = vadd.f32 0.0, %v878
      %880 = vdwg.mxu0
      %v881 = vmul.f32 %v858, 0.25
      %v882 = vmul.f32 %v861, 0.25
      %v883 = vmul.f32 %v864, 0.25
      %v884 = vmul.f32 %v867, 0.25
      %v885 = vmul.f32 %v870, 0.25
      %v886 = vmul.f32 %v873, 0.25
      %v887 = vmul.f32 %v876, 0.25
      %v888 = vmul.f32 %v879, 0.25
      %vm889 = vcmask 523264
      %v890 = vsel %vm889, %v881, -inf
      %891 = vmax.xlane.f32.xlu0 %v890
      %v892 = vpop.xlane.xlu0 %891
      %v893 = vsel %vm889, %v882, -inf
      %894 = vmax.xlane.f32.xlu0 %v893
      %v895 = vpop.xlane.xlu0 %894
      %v896 = vsel %vm889, %v883, -inf
      %897 = vmax.xlane.f32.xlu0 %v896
      %v898 = vpop.xlane.xlu0 %897
      %v899 = vsel %vm889, %v884, -inf
      %900 = vmax.xlane.f32.xlu0 %v899
      %v901 = vpop.xlane.xlu0 %900
      %v902 = vsel %vm889, %v885, -inf
      %903 = vmax.xlane.f32.xlu0 %v902
      %v904 = vpop.xlane.xlu0 %903
      %v905 = vsel %vm889, %v886, -inf
      %906 = vmax.xlane.f32.xlu0 %v905
      %v907 = vpop.xlane.xlu0 %906
      %v908 = vsel %vm889, %v887, -inf
      %909 = vmax.xlane.f32.xlu0 %v908
      %v910 = vpop.xlane.xlu0 %909
      %v911 = vsel %vm889, %v888, -inf
      %912 = vmax.xlane.f32.xlu0 %v911
      %v913 = vpop.xlane.xlu0 %912
      %v914 = vsub.f32 %v881, %v892
      %v915 = vsub.f32 %v882, %v895
      %v916 = vsub.f32 %v883, %v898
      %v917 = vsub.f32 %v884, %v901
      %v918 = vsub.f32 %v885, %v904
      %v919 = vsub.f32 %v886, %v907
      %v920 = vsub.f32 %v887, %v910
      %v921 = vsub.f32 %v888, %v913
      %v922 = vmul.f32 %v914, 1.442695
      %v923 = vpow.pop %v922
      %v924 = vmul.f32 %v915, 1.442695
      %v925 = vpow.pop %v924
      %v926 = vmul.f32 %v916, 1.442695
      %v927 = vpow.pop %v926
      %v928 = vmul.f32 %v917, 1.442695
      %v929 = vpow.pop %v928
      %v930 = vmul.f32 %v918, 1.442695
      %v931 = vpow.pop %v930
      %v932 = vmul.f32 %v919, 1.442695
      %v933 = vpow.pop %v932
      %v934 = vmul.f32 %v920, 1.442695
      %v935 = vpow.pop %v934
      %v936 = vmul.f32 %v921, 1.442695
      %v937 = vpow.pop %v936
      %v938 = vsel %vm889, %v923, 0.0
      %939 = vadd.xlane.f32.xlu0 %v938
      %v940 = vpop.xlane.xlu0 %939
      %v941 = vsel %vm889, %v925, 0.0
      %942 = vadd.xlane.f32.xlu0 %v941
      %v943 = vpop.xlane.xlu0 %942
      %v944 = vsel %vm889, %v927, 0.0
      %945 = vadd.xlane.f32.xlu0 %v944
      %v946 = vpop.xlane.xlu0 %945
      %v947 = vsel %vm889, %v929, 0.0
      %948 = vadd.xlane.f32.xlu0 %v947
      %v949 = vpop.xlane.xlu0 %948
      %v950 = vsel %vm889, %v931, 0.0
      %951 = vadd.xlane.f32.xlu0 %v950
      %v952 = vpop.xlane.xlu0 %951
      %v953 = vsel %vm889, %v933, 0.0
      %954 = vadd.xlane.f32.xlu0 %v953
      %v955 = vpop.xlane.xlu0 %954
      %v956 = vsel %vm889, %v935, 0.0
      %957 = vadd.xlane.f32.xlu0 %v956
      %v958 = vpop.xlane.xlu0 %957
      %v959 = vsel %vm889, %v937, 0.0
      %960 = vadd.xlane.f32.xlu0 %v959
      %v961 = vpop.xlane.xlu0 %960
      %v962 = vrcp.pop %v940
      %v963 = vrcp.pop %v943
      %v964 = vrcp.pop %v946
      %v965 = vrcp.pop %v949
      %v966 = vrcp.pop %v952
      %v967 = vrcp.pop %v955
      %v968 = vrcp.pop %v958
      %v969 = vrcp.pop %v961
      %v970 = vmul.f32 %v923, %v962
      %v971 = vmul.f32 %v925, %v963
      %v972 = vmul.f32 %v927, %v964
      %v973 = vmul.f32 %v929, %v965
      %v974 = vmul.f32 %v931, %v966
      %v975 = vmul.f32 %v933, %v967
      %v976 = vmul.f32 %v935, %v968
      %v977 = vmul.f32 %v937, %v969
      %v979 = vsel %vm889, %v970, 0
      %v982 = vsel %vm889, %v971, 0
      %v985 = vsel %vm889, %v972, 0
      %v988 = vsel %vm889, %v973, 0
      %v991 = vsel %vm889, %v974, 0
      %v994 = vsel %vm889, %v975, 0
      %v997 = vsel %vm889, %v976, 0
      %v1000 = vsel %vm889, %v977, 0
      %1002 = vmatpush.msra.mxu0 0.0
      %1003 = vmatpush.msra.mxu0 0.0
      %1004 = vmatpush.msra.mxu0 0.0
      %1005 = vmatpush.msra.mxu0 0.0
      %1006 = vmatpush.msra.mxu0 0.0
      %1007 = vmatpush.msra.mxu0 0.0
      %1008 = vmatpush.msra.mxu0 0.0
      %1009 = vmatpush.msra.mxu0 0.0
      %1010 = vmatpush.msra.mxu0 %v789
      %1011 = vmatpush.msra.mxu0 %v786
      %1012 = vmatpush.msra.mxu0 %v783
      %1013 = vmatpush.msra.mxu0 %v780
      %1014 = vmatpush.msra.mxu0 %v777
      %1015 = vmatpush.msra.mxu0 %v774
      %1016 = vmatpush.msra.mxu0 %v771
      %1017 = vmatpush.msra.mxu0 %v768
      %1018 = vmatmul.f32.gmra.mxu0 %v979
      %v1019 = vpop.f32.mrf.mxu0
      %v1020 = vadd.f32 0.0, %v1019
      %1021 = vmatmul.f32.gmra.mxu0 %v982
      %v1022 = vpop.f32.mrf.mxu0
      %v1023 = vadd.f32 0.0, %v1022
      %1024 = vmatmul.f32.gmra.mxu0 %v985
      %v1025 = vpop.f32.mrf.mxu0
      %v1026 = vadd.f32 0.0, %v1025
      %1027 = vmatmul.f32.gmra.mxu0 %v988
      %v1028 = vpop.f32.mrf.mxu0
      %v1029 = vadd.f32 0.0, %v1028
      %1030 = vmatmul.f32.gmra.mxu0 %v991
      %v1031 = vpop.f32.mrf.mxu0
      %v1032 = vadd.f32 0.0, %v1031
      %1033 = vmatmul.f32.gmra.mxu0 %v994
      %v1034 = vpop.f32.mrf.mxu0
      %v1035 = vadd.f32 0.0, %v1034
      %1036 = vmatmul.f32.gmra.mxu0 %v997
      %v1037 = vpop.f32.mrf.mxu0
      %v1038 = vadd.f32 0.0, %v1037
      %1039 = vmatmul.f32.gmra.mxu0 %v1000
      %v1040 = vpop.f32.mrf.mxu0
      %v1041 = vadd.f32 0.0, %v1040
      %1042 = vdwg.mxu0
      %v1043 = vld [vmem:[%s4] sm:$0xff]
      %v1044 = vld [vmem:[%s4 + $0x8] sm:$0xff]
      %s1045 = scalar_lea.vmem %s3, 32
      %v1046 = vld [vmem:[%s1045] sm:$0xff]
      %v1047 = vld [vmem:[%s1045 + $0x8] sm:$0xff]
      %v1048 = vld [vmem:[%s1045 + $0x10] sm:$0xff]
      %v1049 = vld [vmem:[%s1045 + $0x18] sm:$0xff]
      %1050 = vmatpush.msra.mxu0 0.0
      %1051 = vmatpush.msra.mxu0 0.0
      %1052 = vmatpush.msra.mxu0 0.0
      %1053 = vmatpush.msra.mxu0 0.0
      %1054 = vmatpush.msra.mxu0 0.0
      %1055 = vmatpush.msra.mxu0 0.0
      %1056 = vmatpush.msra.mxu0 0.0
      %1057 = vmatpush.msra.mxu0 0.0
      %1058 = vmatpush.msra.mxu0 0.0
      %1059 = vmatpush.msra.mxu0 0.0
      %1060 = vmatpush.msra.mxu0 0.0
      %1061 = vmatpush.msra.mxu0 0.0
      %1062 = vmatpush.msra.mxu0 %v1049
      %1063 = vmatpush.msra.mxu0 %v1048
      %1064 = vmatpush.msra.mxu0 %v1047
      %1065 = vmatpush.msra.mxu0 %v1046
      %1066 = vmatmul.f32.gmra.mxu0 %v635
      %v1067 = vpop.f32.mrf.mxu0
      %v1068 = vadd.f32 0.0, %v1067
      %1069 = vmatmul.f32.gmra.mxu0 %v638
      %v1070 = vpop.f32.mrf.mxu0
      %v1071 = vadd.f32 0.0, %v1070
      %1072 = vmatmul.f32.gmra.mxu0 %v641
      %v1073 = vpop.f32.mrf.mxu0
      %v1074 = vadd.f32 0.0, %v1073
      %1075 = vmatmul.f32.gmra.mxu0 %v644
      %v1076 = vpop.f32.mrf.mxu0
      %v1077 = vadd.f32 0.0, %v1076
      %1078 = vmatmul.f32.gmra.mxu0 %v647
      %v1079 = vpop.f32.mrf.mxu0
      %v1080 = vadd.f32 0.0, %v1079
      %1081 = vmatmul.f32.gmra.mxu0 %v650
      %v1082 = vpop.f32.mrf.mxu0
      %v1083 = vadd.f32 0.0, %v1082
      %1084 = vmatmul.f32.gmra.mxu0 %v653
      %v1085 = vpop.f32.mrf.mxu0
      %v1086 = vadd.f32 0.0, %v1085
      %1087 = vmatmul.f32.gmra.mxu0 %v656
      %v1088 = vpop.f32.mrf.mxu0
      %v1089 = vadd.f32 0.0, %v1088
      %1090 = vdwg.mxu0
      %s1091 = scalar_lea.vmem %s3, 96
      %v1092 = vld [vmem:[%s1091] sm:$0xff]
      %v1093 = vld [vmem:[%s1091 + $0x8] sm:$0xff]
      %v1094 = vld [vmem:[%s1091 + $0x10] sm:$0xff]
      %v1095 = vld [vmem:[%s1091 + $0x18] sm:$0xff]
      %1096 = vmatpush.msra.mxu0 0.0
      %1097 = vmatpush.msra.mxu0 0.0
      %1098 = vmatpush.msra.mxu0 0.0
      %1099 = vmatpush.msra.mxu0 0.0
      %1100 = vmatpush.msra.mxu0 0.0
      %1101 = vmatpush.msra.mxu0 0.0
      %1102 = vmatpush.msra.mxu0 0.0
      %1103 = vmatpush.msra.mxu0 0.0
      %1104 = vmatpush.msra.mxu0 0.0
      %1105 = vmatpush.msra.mxu0 0.0
      %1106 = vmatpush.msra.mxu0 0.0
      %1107 = vmatpush.msra.mxu0 0.0
      %1108 = vmatpush.msra.mxu0 %v1095
      %1109 = vmatpush.msra.mxu0 %v1094
      %1110 = vmatpush.msra.mxu0 %v1093
      %1111 = vmatpush.msra.mxu0 %v1092
      %1112 = vmatmul.f32.gmra.mxu0 %v635
      %v1113 = vpop.f32.mrf.mxu0
      %v1114 = vadd.f32 0.0, %v1113
      %1115 = vmatmul.f32.gmra.mxu0 %v638
      %v1116 = vpop.f32.mrf.mxu0
      %v1117 = vadd.f32 0.0, %v1116
      %1118 = vmatmul.f32.gmra.mxu0 %v641
      %v1119 = vpop.f32.mrf.mxu0
      %v1120 = vadd.f32 0.0, %v1119
      %1121 = vmatmul.f32.gmra.mxu0 %v644
      %v1122 = vpop.f32.mrf.mxu0
      %v1123 = vadd.f32 0.0, %v1122
      %1124 = vmatmul.f32.gmra.mxu0 %v647
      %v1125 = vpop.f32.mrf.mxu0
      %v1126 = vadd.f32 0.0, %v1125
      %1127 = vmatmul.f32.gmra.mxu0 %v650
      %v1128 = vpop.f32.mrf.mxu0
      %v1129 = vadd.f32 0.0, %v1128
      %1130 = vmatmul.f32.gmra.mxu0 %v653
      %v1131 = vpop.f32.mrf.mxu0
      %v1132 = vadd.f32 0.0, %v1131
      %1133 = vmatmul.f32.gmra.mxu0 %v656
      %v1134 = vpop.f32.mrf.mxu0
      %v1135 = vadd.f32 0.0, %v1134
      %1136 = vdwg.mxu0
      %s1137 = scalar_lea.vmem %s3, 160
      %v1138 = vld [vmem:[%s1137] sm:$0xff]
      %v1139 = vld [vmem:[%s1137 + $0x8] sm:$0xff]
      %v1140 = vld [vmem:[%s1137 + $0x10] sm:$0xff]
      %v1141 = vld [vmem:[%s1137 + $0x18] sm:$0xff]
      %1142 = vmatpush.msra.mxu0 0.0
      %1143 = vmatpush.msra.mxu0 0.0
      %1144 = vmatpush.msra.mxu0 0.0
      %1145 = vmatpush.msra.mxu0 0.0
      %1146 = vmatpush.msra.mxu0 0.0
      %1147 = vmatpush.msra.mxu0 0.0
      %1148 = vmatpush.msra.mxu0 0.0
      %1149 = vmatpush.msra.mxu0 0.0
      %1150 = vmatpush.msra.mxu0 0.0
      %1151 = vmatpush.msra.mxu0 0.0
      %1152 = vmatpush.msra.mxu0 0.0
      %1153 = vmatpush.msra.mxu0 0.0
      %1154 = vmatpush.msra.mxu0 %v1141
      %1155 = vmatpush.msra.mxu0 %v1140
      %1156 = vmatpush.msra.mxu0 %v1139
      %1157 = vmatpush.msra.mxu0 %v1138
      %1158 = vmatmul.f32.gmra.mxu0 %v635
      %v1159 = vpop.f32.mrf.mxu0
      %v1160 = vadd.f32 0.0, %v1159
      %1161 = vmatmul.f32.gmra.mxu0 %v638
      %v1162 = vpop.f32.mrf.mxu0
      %v1163 = vadd.f32 0.0, %v1162
      %1164 = vmatmul.f32.gmra.mxu0 %v641
      %v1165 = vpop.f32.mrf.mxu0
      %v1166 = vadd.f32 0.0, %v1165
      %1167 = vmatmul.f32.gmra.mxu0 %v644
      %v1168 = vpop.f32.mrf.mxu0
      %v1169 = vadd.f32 0.0, %v1168
      %1170 = vmatmul.f32.gmra.mxu0 %v647
      %v1171 = vpop.f32.mrf.mxu0
      %v1172 = vadd.f32 0.0, %v1171
      %1173 = vmatmul.f32.gmra.mxu0 %v650
      %v1174 = vpop.f32.mrf.mxu0
      %v1175 = vadd.f32 0.0, %v1174
      %1176 = vmatmul.f32.gmra.mxu0 %v653
      %v1177 = vpop.f32.mrf.mxu0
      %v1178 = vadd.f32 0.0, %v1177
      %1179 = vmatmul.f32.gmra.mxu0 %v656
      %v1180 = vpop.f32.mrf.mxu0
      %v1181 = vadd.f32 0.0, %v1180
      %1182 = vdwg.mxu0
      %v1184 = vsel %vm791, %v1068, 0
      %v1187 = vsel %vm791, %v1071, 0
      %v1190 = vsel %vm791, %v1074, 0
      %v1193 = vsel %vm791, %v1077, 0
      %v1196 = vsel %vm791, %v1080, 0
      %v1199 = vsel %vm791, %v1083, 0
      %v1202 = vsel %vm791, %v1086, 0
      %v1205 = vsel %vm791, %v1089, 0
      %v1208 = vsel %vm791, %v1114, 0
      %v1211 = vsel %vm791, %v1117, 0
      %v1214 = vsel %vm791, %v1120, 0
      %v1217 = vsel %vm791, %v1123, 0
      %v1220 = vsel %vm791, %v1126, 0
      %v1223 = vsel %vm791, %v1129, 0
      %v1226 = vsel %vm791, %v1132, 0
      %v1229 = vsel %vm791, %v1135, 0
      %1231 = vmatpush.xpose.msra.mxu0 0.0
      %1232 = vmatpush.xpose.msra.mxu0 0.0
      %1233 = vmatpush.xpose.msra.mxu0 0.0
      %1234 = vmatpush.xpose.msra.mxu0 0.0
      %1235 = vmatpush.xpose.msra.mxu0 0.0
      %1236 = vmatpush.xpose.msra.mxu0 0.0
      %1237 = vmatpush.xpose.msra.mxu0 0.0
      %1238 = vmatpush.xpose.msra.mxu0 0.0
      %1239 = vmatpush.xpose.msra.mxu0 %v1229
      %1240 = vmatpush.xpose.msra.mxu0 %v1226
      %1241 = vmatpush.xpose.msra.mxu0 %v1223
      %1242 = vmatpush.xpose.msra.mxu0 %v1220
      %1243 = vmatpush.xpose.msra.mxu0 %v1217
      %1244 = vmatpush.xpose.msra.mxu0 %v1214
      %1245 = vmatpush.xpose.msra.mxu0 %v1211
      %1246 = vmatpush.xpose.msra.mxu0 %v1208
      %1247 = vmatmul.f32.gmra.mxu0 %v1184
      %v1248 = vpop.f32.mrf.mxu0
      %v1249 = vadd.f32 0.0, %v1248
      %1250 = vmatmul.f32.gmra.mxu0 %v1187
      %v1251 = vpop.f32.mrf.mxu0
      %v1252 = vadd.f32 0.0, %v1251
      %1253 = vmatmul.f32.gmra.mxu0 %v1190
      %v1254 = vpop.f32.mrf.mxu0
      %v1255 = vadd.f32 0.0, %v1254
      %1256 = vmatmul.f32.gmra.mxu0 %v1193
      %v1257 = vpop.f32.mrf.mxu0
      %v1258 = vadd.f32 0.0, %v1257
      %1259 = vmatmul.f32.gmra.mxu0 %v1196
      %v1260 = vpop.f32.mrf.mxu0
      %v1261 = vadd.f32 0.0, %v1260
      %1262 = vmatmul.f32.gmra.mxu0 %v1199
      %v1263 = vpop.f32.mrf.mxu0
      %v1264 = vadd.f32 0.0, %v1263
      %1265 = vmatmul.f32.gmra.mxu0 %v1202
      %v1266 = vpop.f32.mrf.mxu0
      %v1267 = vadd.f32 0.0, %v1266
      %1268 = vmatmul.f32.gmra.mxu0 %v1205
      %v1269 = vpop.f32.mrf.mxu0
      %v1270 = vadd.f32 0.0, %v1269
      %1271 = vdwg.mxu0
      %v1272 = vmul.f32 %v1249, 0.25
      %v1273 = vmul.f32 %v1252, 0.25
      %v1274 = vmul.f32 %v1255, 0.25
      %v1275 = vmul.f32 %v1258, 0.25
      %v1276 = vmul.f32 %v1261, 0.25
      %v1277 = vmul.f32 %v1264, 0.25
      %v1278 = vmul.f32 %v1267, 0.25
      %v1279 = vmul.f32 %v1270, 0.25
      %v1280 = vsel %vm889, %v1272, -inf
      %1281 = vmax.xlane.f32.xlu0 %v1280
      %v1282 = vpop.xlane.xlu0 %1281
      %v1283 = vsel %vm889, %v1273, -inf
      %1284 = vmax.xlane.f32.xlu0 %v1283
      %v1285 = vpop.xlane.xlu0 %1284
      %v1286 = vsel %vm889, %v1274, -inf
      %1287 = vmax.xlane.f32.xlu0 %v1286
      %v1288 = vpop.xlane.xlu0 %1287
      %v1289 = vsel %vm889, %v1275, -inf
      %1290 = vmax.xlane.f32.xlu0 %v1289
      %v1291 = vpop.xlane.xlu0 %1290
      %v1292 = vsel %vm889, %v1276, -inf
      %1293 = vmax.xlane.f32.xlu0 %v1292
      %v1294 = vpop.xlane.xlu0 %1293
      %v1295 = vsel %vm889, %v1277, -inf
      %1296 = vmax.xlane.f32.xlu0 %v1295
      %v1297 = vpop.xlane.xlu0 %1296
      %v1298 = vsel %vm889, %v1278, -inf
      %1299 = vmax.xlane.f32.xlu0 %v1298
      %v1300 = vpop.xlane.xlu0 %1299
      %v1301 = vsel %vm889, %v1279, -inf
      %1302 = vmax.xlane.f32.xlu0 %v1301
      %v1303 = vpop.xlane.xlu0 %1302
      %v1304 = vsub.f32 %v1272, %v1282
      %v1305 = vsub.f32 %v1273, %v1285
      %v1306 = vsub.f32 %v1274, %v1288
      %v1307 = vsub.f32 %v1275, %v1291
      %v1308 = vsub.f32 %v1276, %v1294
      %v1309 = vsub.f32 %v1277, %v1297
      %v1310 = vsub.f32 %v1278, %v1300
      %v1311 = vsub.f32 %v1279, %v1303
      %v1312 = vmul.f32 %v1304, 1.442695
      %v1313 = vpow.pop %v1312
      %v1314 = vmul.f32 %v1305, 1.442695
      %v1315 = vpow.pop %v1314
      %v1316 = vmul.f32 %v1306, 1.442695
      %v1317 = vpow.pop %v1316
      %v1318 = vmul.f32 %v1307, 1.442695
      %v1319 = vpow.pop %v1318
      %v1320 = vmul.f32 %v1308, 1.442695
      %v1321 = vpow.pop %v1320
      %v1322 = vmul.f32 %v1309, 1.442695
      %v1323 = vpow.pop %v1322
      %v1324 = vmul.f32 %v1310, 1.442695
      %v1325 = vpow.pop %v1324
      %v1326 = vmul.f32 %v1311, 1.442695
      %v1327 = vpow.pop %v1326
      %v1328 = vsel %vm889, %v1313, 0.0
      %1329 = vadd.xlane.f32.xlu0 %v1328
      %v1330 = vpop.xlane.xlu0 %1329
      %v1331 = vsel %vm889, %v1315, 0.0
      %1332 = vadd.xlane.f32.xlu0 %v1331
      %v1333 = vpop.xlane.xlu0 %1332
      %v1334 = vsel %vm889, %v1317, 0.0
      %1335 = vadd.xlane.f32.xlu0 %v1334
      %v1336 = vpop.xlane.xlu0 %1335
      %v1337 = vsel %vm889, %v1319, 0.0
      %1338 = vadd.xlane.f32.xlu0 %v1337
      %v1339 = vpop.xlane.xlu0 %1338
      %v1340 = vsel %vm889, %v1321, 0.0
      %1341 = vadd.xlane.f32.xlu0 %v1340
      %v1342 = vpop.xlane.xlu0 %1341
      %v1343 = vsel %vm889, %v1323, 0.0
      %1344 = vadd.xlane.f32.xlu0 %v1343
      %v1345 = vpop.xlane.xlu0 %1344
      %v1346 = vsel %vm889, %v1325, 0.0
      %1347 = vadd.xlane.f32.xlu0 %v1346
      %v1348 = vpop.xlane.xlu0 %1347
      %v1349 = vsel %vm889, %v1327, 0.0
      %1350 = vadd.xlane.f32.xlu0 %v1349
      %v1351 = vpop.xlane.xlu0 %1350
      %v1352 = vrcp.pop %v1330
      %v1353 = vrcp.pop %v1333
      %v1354 = vrcp.pop %v1336
      %v1355 = vrcp.pop %v1339
      %v1356 = vrcp.pop %v1342
      %v1357 = vrcp.pop %v1345
      %v1358 = vrcp.pop %v1348
      %v1359 = vrcp.pop %v1351
      %v1360 = vmul.f32 %v1313, %v1352
      %v1361 = vmul.f32 %v1315, %v1353
      %v1362 = vmul.f32 %v1317, %v1354
      %v1363 = vmul.f32 %v1319, %v1355
      %v1364 = vmul.f32 %v1321, %v1356
      %v1365 = vmul.f32 %v1323, %v1357
      %v1366 = vmul.f32 %v1325, %v1358
      %v1367 = vmul.f32 %v1327, %v1359
      %v1369 = vsel %vm889, %v1360, 0
      %v1372 = vsel %vm889, %v1361, 0
      %v1375 = vsel %vm889, %v1362, 0
      %v1378 = vsel %vm889, %v1363, 0
      %v1381 = vsel %vm889, %v1364, 0
      %v1384 = vsel %vm889, %v1365, 0
      %v1387 = vsel %vm889, %v1366, 0
      %v1390 = vsel %vm889, %v1367, 0
      %1392 = vmatpush.msra.mxu0 0.0
      %1393 = vmatpush.msra.mxu0 0.0
      %1394 = vmatpush.msra.mxu0 0.0
      %1395 = vmatpush.msra.mxu0 0.0
      %1396 = vmatpush.msra.mxu0 0.0
      %1397 = vmatpush.msra.mxu0 0.0
      %1398 = vmatpush.msra.mxu0 0.0
      %1399 = vmatpush.msra.mxu0 0.0
      %1400 = vmatpush.msra.mxu0 %v1181
      %1401 = vmatpush.msra.mxu0 %v1178
      %1402 = vmatpush.msra.mxu0 %v1175
      %1403 = vmatpush.msra.mxu0 %v1172
      %1404 = vmatpush.msra.mxu0 %v1169
      %1405 = vmatpush.msra.mxu0 %v1166
      %1406 = vmatpush.msra.mxu0 %v1163
      %1407 = vmatpush.msra.mxu0 %v1160
      %1408 = vmatmul.f32.gmra.mxu0 %v1369
      %v1409 = vpop.f32.mrf.mxu0
      %v1410 = vadd.f32 0.0, %v1409
      %1411 = vmatmul.f32.gmra.mxu0 %v1372
      %v1412 = vpop.f32.mrf.mxu0
      %v1413 = vadd.f32 0.0, %v1412
      %1414 = vmatmul.f32.gmra.mxu0 %v1375
      %v1415 = vpop.f32.mrf.mxu0
      %v1416 = vadd.f32 0.0, %v1415
      %1417 = vmatmul.f32.gmra.mxu0 %v1378
      %v1418 = vpop.f32.mrf.mxu0
      %v1419 = vadd.f32 0.0, %v1418
      %1420 = vmatmul.f32.gmra.mxu0 %v1381
      %v1421 = vpop.f32.mrf.mxu0
      %v1422 = vadd.f32 0.0, %v1421
      %1423 = vmatmul.f32.gmra.mxu0 %v1384
      %v1424 = vpop.f32.mrf.mxu0
      %v1425 = vadd.f32 0.0, %v1424
      %1426 = vmatmul.f32.gmra.mxu0 %v1387
      %v1427 = vpop.f32.mrf.mxu0
      %v1428 = vadd.f32 0.0, %v1427
      %1429 = vmatmul.f32.gmra.mxu0 %v1390
      %v1430 = vpop.f32.mrf.mxu0
      %v1431 = vadd.f32 0.0, %v1430
      %1432 = vdwg.mxu0
      %s1433 = scalar_lea.vmem %s4, 16
      %v1434 = vld [vmem:[%s1433] sm:$0xff]
      %v1435 = vld [vmem:[%s1433 + $0x8] sm:$0xff]
      %v1437 = vsel %vm791, %v1410, 0
      %v1440 = vsel %vm791, %v1413, 0
      %v1443 = vsel %vm791, %v1416, 0
      %v1446 = vsel %vm791, %v1419, 0
      %v1449 = vsel %vm791, %v1422, 0
      %v1452 = vsel %vm791, %v1425, 0
      %v1455 = vsel %vm791, %v1428, 0
      %v1458 = vsel %vm791, %v1431, 0
      %1460 = vmatpush.msra.mxu0 0.0
      %1461 = vmatpush.msra.mxu0 0.0
      %1462 = vmatpush.msra.mxu0 0.0
      %1463 = vmatpush.msra.mxu0 0.0
      %1464 = vmatpush.msra.mxu0 0.0
      %1465 = vmatpush.msra.mxu0 0.0
      %1466 = vmatpush.msra.mxu0 0.0
      %1467 = vmatpush.msra.mxu0 0.0
      %1468 = vmatpush.msra.mxu0 0.0
      %1469 = vmatpush.msra.mxu0 0.0
      %1470 = vmatpush.msra.mxu0 0.0
      %1471 = vmatpush.msra.mxu0 0.0
      %1472 = vmatpush.msra.mxu0 0.0
      %1473 = vmatpush.msra.mxu0 0.0
      %1474 = vmatpush.msra.mxu0 %v1435
      %1475 = vmatpush.msra.mxu0 %v1434
      %1476 = vmatmul.f32.gmra.mxu0 %v1437
      %v1477 = vpop.f32.mrf.mxu0
      %v1478 = vadd.f32 0.0, %v1477
      %1479 = vmatmul.f32.gmra.mxu0 %v1440
      %v1480 = vpop.f32.mrf.mxu0
      %v1481 = vadd.f32 0.0, %v1480
      %1482 = vmatmul.f32.gmra.mxu0 %v1443
      %v1483 = vpop.f32.mrf.mxu0
      %v1484 = vadd.f32 0.0, %v1483
      %1485 = vmatmul.f32.gmra.mxu0 %v1446
      %v1486 = vpop.f32.mrf.mxu0
      %v1487 = vadd.f32 0.0, %v1486
      %1488 = vmatmul.f32.gmra.mxu0 %v1449
      %v1489 = vpop.f32.mrf.mxu0
      %v1490 = vadd.f32 0.0, %v1489
      %1491 = vmatmul.f32.gmra.mxu0 %v1452
      %v1492 = vpop.f32.mrf.mxu0
      %v1493 = vadd.f32 0.0, %v1492
      %1494 = vmatmul.f32.gmra.mxu0 %v1455
      %v1495 = vpop.f32.mrf.mxu0
      %v1496 = vadd.f32 0.0, %v1495
      %1497 = vmatmul.f32.gmra.mxu0 %v1458
      %v1498 = vpop.f32.mrf.mxu0
      %v1499 = vadd.f32 0.0, %v1498
      %1500 = vdwg.mxu0
      %v1502 = vsel %vm791, %v1020, 0
      %v1505 = vsel %vm791, %v1023, 0
      %v1508 = vsel %vm791, %v1026, 0
      %v1511 = vsel %vm791, %v1029, 0
      %v1514 = vsel %vm791, %v1032, 0
      %v1517 = vsel %vm791, %v1035, 0
      %v1520 = vsel %vm791, %v1038, 0
      %v1523 = vsel %vm791, %v1041, 0
      %1525 = vmatpush.msra.mxu0 0.0
      %1526 = vmatpush.msra.mxu0 0.0
      %1527 = vmatpush.msra.mxu0 0.0
      %1528 = vmatpush.msra.mxu0 0.0
      %1529 = vmatpush.msra.mxu0 0.0
      %1530 = vmatpush.msra.mxu0 0.0
      %1531 = vmatpush.msra.mxu0 0.0
      %1532 = vmatpush.msra.mxu0 0.0
      %1533 = vmatpush.msra.mxu0 0.0
      %1534 = vmatpush.msra.mxu0 0.0
      %1535 = vmatpush.msra.mxu0 0.0
      %1536 = vmatpush.msra.mxu0 0.0
      %1537 = vmatpush.msra.mxu0 0.0
      %1538 = vmatpush.msra.mxu0 0.0
      %1539 = vmatpush.msra.mxu0 %v1044
      %1540 = vmatpush.msra.mxu0 %v1043
      %1541 = vmatmul.f32.gmra.mxu0 %v1502
      %v1542 = vpop.f32.mrf.mxu0
      %v1543 = vadd.f32 %v1478, %v1542
      %1544 = vmatmul.f32.gmra.mxu0 %v1505
      %v1545 = vpop.f32.mrf.mxu0
      %v1546 = vadd.f32 %v1481, %v1545
      %1547 = vmatmul.f32.gmra.mxu0 %v1508
      %v1548 = vpop.f32.mrf.mxu0
      %v1549 = vadd.f32 %v1484, %v1548
      %1550 = vmatmul.f32.gmra.mxu0 %v1511
      %v1551 = vpop.f32.mrf.mxu0
      %v1552 = vadd.f32 %v1487, %v1551
      %1553 = vmatmul.f32.gmra.mxu0 %v1514
      %v1554 = vpop.f32.mrf.mxu0
      %v1555 = vadd.f32 %v1490, %v1554
      %1556 = vmatmul.f32.gmra.mxu0 %v1517
      %v1557 = vpop.f32.mrf.mxu0
      %v1558 = vadd.f32 %v1493, %v1557
      %1559 = vmatmul.f32.gmra.mxu0 %v1520
      %v1560 = vpop.f32.mrf.mxu0
      %v1561 = vadd.f32 %v1496, %v1560
      %1562 = vmatmul.f32.gmra.mxu0 %v1523
      %v1563 = vpop.f32.mrf.mxu0
      %v1564 = vadd.f32 %v1499, %v1563
      %1565 = vdwg.mxu0
      %v1566 = vadd.f32 %v414, %v1543
      %v1567 = vadd.f32 %v415, %v1546
      %v1568 = vadd.f32 %v416, %v1549
      %v1569 = vadd.f32 %v417, %v1552
      %v1570 = vadd.f32 %v418, %v1555
      %v1571 = vadd.f32 %v419, %v1558
      %v1572 = vadd.f32 %v420, %v1561
      %v1573 = vadd.f32 %v421, %v1564
      %v1574 = vld [vmem:[%s5] sm:$0x1]
      %v1576 = vperm.slane %v1574, 0
      %v1578 = vadd.f32 %v1566, %v1576
      %v1579 = vadd.f32 %v1567, %v1576
      %v1580 = vadd.f32 %v1568, %v1576
      %v1581 = vadd.f32 %v1569, %v1576
      %v1582 = vadd.f32 %v1570, %v1576
      %v1583 = vadd.f32 %v1571, %v1576
      %v1584 = vadd.f32 %v1572, %v1576
      %v1585 = vadd.f32 %v1573, %v1576
      %v1586 = vld [vmem:[%s6] sm:$0x1]
      %v1587 = vld [vmem:[%s7] sm:$0x1]
      %v1588 = vsel %vm424, %v1578, 0.0
      %1589 = vadd.xlane.f32.xlu0 %v1588
      %v1590 = vpop.xlane.xlu0 %1589
      %v1591 = vsel %vm424, %v1579, 0.0
      %1592 = vadd.xlane.f32.xlu0 %v1591
      %v1593 = vpop.xlane.xlu0 %1592
      %v1594 = vsel %vm424, %v1580, 0.0
      %1595 = vadd.xlane.f32.xlu0 %v1594
      %v1596 = vpop.xlane.xlu0 %1595
      %v1597 = vsel %vm424, %v1581, 0.0
      %1598 = vadd.xlane.f32.xlu0 %v1597
      %v1599 = vpop.xlane.xlu0 %1598
      %v1600 = vsel %vm424, %v1582, 0.0
      %1601 = vadd.xlane.f32.xlu0 %v1600
      %v1602 = vpop.xlane.xlu0 %1601
      %v1603 = vsel %vm424, %v1583, 0.0
      %1604 = vadd.xlane.f32.xlu0 %v1603
      %v1605 = vpop.xlane.xlu0 %1604
      %v1606 = vsel %vm424, %v1584, 0.0
      %1607 = vadd.xlane.f32.xlu0 %v1606
      %v1608 = vpop.xlane.xlu0 %1607
      %v1609 = vsel %vm424, %v1585, 0.0
      %1610 = vadd.xlane.f32.xlu0 %v1609
      %v1611 = vpop.xlane.xlu0 %1610
      %v1612 = vmul.f32 %v1590, %v455
      %v1613 = vmul.f32 %v1593, %v455
      %v1614 = vmul.f32 %v1596, %v455
      %v1615 = vmul.f32 %v1599, %v455
      %v1616 = vmul.f32 %v1602, %v455
      %v1617 = vmul.f32 %v1605, %v455
      %v1618 = vmul.f32 %v1608, %v455
      %v1619 = vmul.f32 %v1611, %v455
      %v1620 = vsub.f32 %v1578, %v1612
      %v1621 = vsub.f32 %v1579, %v1613
      %v1622 = vsub.f32 %v1580, %v1614
      %v1623 = vsub.f32 %v1581, %v1615
      %v1624 = vsub.f32 %v1582, %v1616
      %v1625 = vsub.f32 %v1583, %v1617
      %v1626 = vsub.f32 %v1584, %v1618
      %v1627 = vsub.f32 %v1585, %v1619
      %v1628 = vmul.f32 %v1620, %v1620
      %v1629 = vmul.f32 %v1621, %v1621
      %v1630 = vmul.f32 %v1622, %v1622
      %v1631 = vmul.f32 %v1623, %v1623
      %v1632 = vmul.f32 %v1624, %v1624
      %v1633 = vmul.f32 %v1625, %v1625
      %v1634 = vmul.f32 %v1626, %v1626
      %v1635 = vmul.f32 %v1627, %v1627
      %v1636 = vsel %vm424, %v1628, 0.0
      %1637 = vadd.xlane.f32.xlu0 %v1636
      %v1638 = vpop.xlane.xlu0 %1637
      %v1639 = vsel %vm424, %v1629, 0.0
      %1640 = vadd.xlane.f32.xlu0 %v1639
      %v1641 = vpop.xlane.xlu0 %1640
      %v1642 = vsel %vm424, %v1630, 0.0
      %1643 = vadd.xlane.f32.xlu0 %v1642
      %v1644 = vpop.xlane.xlu0 %1643
      %v1645 = vsel %vm424, %v1631, 0.0
      %1646 = vadd.xlane.f32.xlu0 %v1645
      %v1647 = vpop.xlane.xlu0 %1646
      %v1648 = vsel %vm424, %v1632, 0.0
      %1649 = vadd.xlane.f32.xlu0 %v1648
      %v1650 = vpop.xlane.xlu0 %1649
      %v1651 = vsel %vm424, %v1633, 0.0
      %1652 = vadd.xlane.f32.xlu0 %v1651
      %v1653 = vpop.xlane.xlu0 %1652
      %v1654 = vsel %vm424, %v1634, 0.0
      %1655 = vadd.xlane.f32.xlu0 %v1654
      %v1656 = vpop.xlane.xlu0 %1655
      %v1657 = vsel %vm424, %v1635, 0.0
      %1658 = vadd.xlane.f32.xlu0 %v1657
      %v1659 = vpop.xlane.xlu0 %1658
      %v1660 = vmul.f32 %v1638, %v455
      %v1661 = vmul.f32 %v1641, %v455
      %v1662 = vmul.f32 %v1644, %v455
      %v1663 = vmul.f32 %v1647, %v455
      %v1664 = vmul.f32 %v1650, %v455
      %v1665 = vmul.f32 %v1653, %v455
      %v1666 = vmul.f32 %v1656, %v455
      %v1667 = vmul.f32 %v1659, %v455
      %v1668 = vadd.f32 %v1660, 1e-05
      %v1669 = vadd.f32 %v1661, 1e-05
      %v1670 = vadd.f32 %v1662, 1e-05
      %v1671 = vadd.f32 %v1663, 1e-05
      %v1672 = vadd.f32 %v1664, 1e-05
      %v1673 = vadd.f32 %v1665, 1e-05
      %v1674 = vadd.f32 %v1666, 1e-05
      %v1675 = vadd.f32 %v1667, 1e-05
      %v1676 = vrsqrt.pop %v1668
      %v1677 = vmul.f32 %v1676, %v1668
      %v1678 = vmul.f32 %v1677, %v1676
      %v1679 = vmul.f32 0.5, %v1678
      %v1680 = vsub.f32 1.5, %v1679
      %v1681 = vmul.f32 %v1676, %v1680
      %vm1682 = vweird.f32 %v1668
      %vm1683 = vweird.f32 %v1676
      %vm1684 = vmor %vm1682, %vm1683
      %v1685 = vsel %vm1684, %v1676, %v1681
      %v1686 = vrsqrt.pop %v1669
      %v1687 = vmul.f32 %v1686, %v1669
      %v1688 = vmul.f32 %v1687, %v1686
      %v1689 = vmul.f32 0.5, %v1688
      %v1690 = vsub.f32 1.5, %v1689
      %v1691 = vmul.f32 %v1686, %v1690
      %vm1692 = vweird.f32 %v1669
      %vm1693 = vweird.f32 %v1686
      %vm1694 = vmor %vm1692, %vm1693
      %v1695 = vsel %vm1694, %v1686, %v1691
      %v1696 = vrsqrt.pop %v1670
      %v1697 = vmul.f32 %v1696, %v1670
      %v1698 = vmul.f32 %v1697, %v1696
      %v1699 = vmul.f32 0.5, %v1698
      %v1700 = vsub.f32 1.5, %v1699
      %v1701 = vmul.f32 %v1696, %v1700
      %vm1702 = vweird.f32 %v1670
      %vm1703 = vweird.f32 %v1696
      %vm1704 = vmor %vm1702, %vm1703
      %v1705 = vsel %vm1704, %v1696, %v1701
      %v1706 = vrsqrt.pop %v1671
      %v1707 = vmul.f32 %v1706, %v1671
      %v1708 = vmul.f32 %v1707, %v1706
      %v1709 = vmul.f32 0.5, %v1708
      %v1710 = vsub.f32 1.5, %v1709
      %v1711 = vmul.f32 %v1706, %v1710
      %vm1712 = vweird.f32 %v1671
      %vm1713 = vweird.f32 %v1706
      %vm1714 = vmor %vm1712, %vm1713
      %v1715 = vsel %vm1714, %v1706, %v1711
      %v1716 = vrsqrt.pop %v1672
      %v1717 = vmul.f32 %v1716, %v1672
      %v1718 = vmul.f32 %v1717, %v1716
      %v1719 = vmul.f32 0.5, %v1718
      %v1720 = vsub.f32 1.5, %v1719
      %v1721 = vmul.f32 %v1716, %v1720
      %vm1722 = vweird.f32 %v1672
      %vm1723 = vweird.f32 %v1716
      %vm1724 = vmor %vm1722, %vm1723
      %v1725 = vsel %vm1724, %v1716, %v1721
      %v1726 = vrsqrt.pop %v1673
      %v1727 = vmul.f32 %v1726, %v1673
      %v1728 = vmul.f32 %v1727, %v1726
      %v1729 = vmul.f32 0.5, %v1728
      %v1730 = vsub.f32 1.5, %v1729
      %v1731 = vmul.f32 %v1726, %v1730
      %vm1732 = vweird.f32 %v1673
      %vm1733 = vweird.f32 %v1726
      %vm1734 = vmor %vm1732, %vm1733
      %v1735 = vsel %vm1734, %v1726, %v1731
      %v1736 = vrsqrt.pop %v1674
      %v1737 = vmul.f32 %v1736, %v1674
      %v1738 = vmul.f32 %v1737, %v1736
      %v1739 = vmul.f32 0.5, %v1738
      %v1740 = vsub.f32 1.5, %v1739
      %v1741 = vmul.f32 %v1736, %v1740
      %vm1742 = vweird.f32 %v1674
      %vm1743 = vweird.f32 %v1736
      %vm1744 = vmor %vm1742, %vm1743
      %v1745 = vsel %vm1744, %v1736, %v1741
      %v1746 = vrsqrt.pop %v1675
      %v1747 = vmul.f32 %v1746, %v1675
      %v1748 = vmul.f32 %v1747, %v1746
      %v1749 = vmul.f32 0.5, %v1748
      %v1750 = vsub.f32 1.5, %v1749
      %v1751 = vmul.f32 %v1746, %v1750
      %vm1752 = vweird.f32 %v1675
      %vm1753 = vweird.f32 %v1746
      %vm1754 = vmor %vm1752, %vm1753
      %v1755 = vsel %vm1754, %v1746, %v1751
      %v1756 = vmul.f32 %v1620, %v1685
      %v1757 = vmul.f32 %v1621, %v1695
      %v1758 = vmul.f32 %v1622, %v1705
      %v1759 = vmul.f32 %v1623, %v1715
      %v1760 = vmul.f32 %v1624, %v1725
      %v1761 = vmul.f32 %v1625, %v1735
      %v1762 = vmul.f32 %v1626, %v1745
      %v1763 = vmul.f32 %v1627, %v1755
      %v1765 = vperm.slane %v1586, 0
      %v1767 = vmul.f32 %v1756, %v1765
      %v1768 = vmul.f32 %v1757, %v1765
      %v1769 = vmul.f32 %v1758, %v1765
      %v1770 = vmul.f32 %v1759, %v1765
      %v1771 = vmul.f32 %v1760, %v1765
      %v1772 = vmul.f32 %v1761, %v1765
      %v1773 = vmul.f32 %v1762, %v1765
      %v1774 = vmul.f32 %v1763, %v1765
      %v1776 = vperm.slane %v1587, 0
      %v1778 = vadd.f32 %v1767, %v1776
      %v1779 = vadd.f32 %v1768, %v1776
      %v1780 = vadd.f32 %v1769, %v1776
      %v1781 = vadd.f32 %v1770, %v1776
      %v1782 = vadd.f32 %v1771, %v1776
      %v1783 = vadd.f32 %v1772, %v1776
      %v1784 = vadd.f32 %v1773, %v1776
      %v1785 = vadd.f32 %v1774, %v1776
      %v1786 = vld [vmem:[%s8] sm:$0xff]
      %v1787 = vld [vmem:[%s8 + $0x8] sm:$0xff]
      %v1788 = vld [vmem:[%s8 + $0x10] sm:$0xff]
      %v1789 = vld [vmem:[%s8 + $0x18] sm:$0xff]
      %v1790 = vld [vmem:[%s9] sm:$0x1]
      %v1792 = vperm.slane %v1790, 0
      %v1795 = vsel %vm424, %v1778, 0
      %v1798 = vsel %vm424, %v1779, 0
      %v1801 = vsel %vm424, %v1780, 0
      %v1804 = vsel %vm424, %v1781, 0
      %v1807 = vsel %vm424, %v1782, 0
      %v1810 = vsel %vm424, %v1783, 0
      %v1813 = vsel %vm424, %v1784, 0
      %v1816 = vsel %vm424, %v1785, 0
      %1818 = vmatpush.msra.mxu0 0.0
      %1819 = vmatpush.msra.mxu0 0.0
      %1820 = vmatpush.msra.mxu0 0.0
      %1821 = vmatpush.msra.mxu0 0.0
      %1822 = vmatpush.msra.mxu0 0.0
      %1823 = vmatpush.msra.mxu0 0.0
      %1824 = vmatpush.msra.mxu0 0.0
      %1825 = vmatpush.msra.mxu0 0.0
      %1826 = vmatpush.msra.mxu0 0.0
      %1827 = vmatpush.msra.mxu0 0.0
      %1828 = vmatpush.msra.mxu0 0.0
      %1829 = vmatpush.msra.mxu0 0.0
      %1830 = vmatpush.msra.mxu0 %v1789
      %1831 = vmatpush.msra.mxu0 %v1788
      %1832 = vmatpush.msra.mxu0 %v1787
      %1833 = vmatpush.msra.mxu0 %v1786
      %1834 = vmatmul.f32.gmra.mxu0 %v1795
      %v1835 = vpop.f32.mrf.mxu0
      %v1836 = vadd.f32 %v1792, %v1835
      %1837 = vmatmul.f32.gmra.mxu0 %v1798
      %v1838 = vpop.f32.mrf.mxu0
      %v1839 = vadd.f32 %v1792, %v1838
      %1840 = vmatmul.f32.gmra.mxu0 %v1801
      %v1841 = vpop.f32.mrf.mxu0
      %v1842 = vadd.f32 %v1792, %v1841
      %1843 = vmatmul.f32.gmra.mxu0 %v1804
      %v1844 = vpop.f32.mrf.mxu0
      %v1845 = vadd.f32 %v1792, %v1844
      %1846 = vmatmul.f32.gmra.mxu0 %v1807
      %v1847 = vpop.f32.mrf.mxu0
      %v1848 = vadd.f32 %v1792, %v1847
      %1849 = vmatmul.f32.gmra.mxu0 %v1810
      %v1850 = vpop.f32.mrf.mxu0
      %v1851 = vadd.f32 %v1792, %v1850
      %1852 = vmatmul.f32.gmra.mxu0 %v1813
      %v1853 = vpop.f32.mrf.mxu0
      %v1854 = vadd.f32 %v1792, %v1853
      %1855 = vmatmul.f32.gmra.mxu0 %v1816
      %v1856 = vpop.f32.mrf.mxu0
      %v1857 = vadd.f32 %v1792, %v1856
      %1858 = vdwg.mxu0
      %v1859 = vmul.f32 %v1836, 0.5
      %v1860 = vmul.f32 %v1839, 0.5
      %v1861 = vmul.f32 %v1842, 0.5
      %v1862 = vmul.f32 %v1845, 0.5
      %v1863 = vmul.f32 %v1848, 0.5
      %v1864 = vmul.f32 %v1851, 0.5
      %v1865 = vmul.f32 %v1854, 0.5
      %v1866 = vmul.f32 %v1857, 0.5
      %v1867 = vmul.f32 %v1836, 0.70710677
      %v1868 = vmul.f32 %v1839, 0.70710677
      %v1869 = vmul.f32 %v1842, 0.70710677
      %v1870 = vmul.f32 %v1845, 0.70710677
      %v1871 = vmul.f32 %v1848, 0.70710677
      %v1872 = vmul.f32 %v1851, 0.70710677
      %v1873 = vmul.f32 %v1854, 0.70710677
      %v1874 = vmul.f32 %v1857, 0.70710677
      %vm1875 = vcmp.ge.f32.partialorder %v1867, 0.0
      %vm1876 = vcmp.ge.f32.partialorder %v1868, 0.0
      %vm1877 = vcmp.ge.f32.partialorder %v1869, 0.0
      %vm1878 = vcmp.ge.f32.partialorder %v1870, 0.0
      %vm1879 = vcmp.ge.f32.partialorder %v1871, 0.0
      %vm1880 = vcmp.ge.f32.partialorder %v1872, 0.0
      %vm1881 = vcmp.ge.f32.partialorder %v1873, 0.0
      %vm1882 = vcmp.ge.f32.partialorder %v1874, 0.0
      %v1883 = vsel %vm1875, 1.0, -1.0
      %v1884 = vsel %vm1876, 1.0, -1.0
      %v1885 = vsel %vm1877, 1.0, -1.0
      %v1886 = vsel %vm1878, 1.0, -1.0
      %v1887 = vsel %vm1879, 1.0, -1.0
      %v1888 = vsel %vm1880, 1.0, -1.0
      %v1889 = vsel %vm1881, 1.0, -1.0
      %v1890 = vsel %vm1882, 1.0, -1.0
      %v1891 = vand.u32 2147483647, %v1867
      %v1892 = vand.u32 2147483647, %v1868
      %v1893 = vand.u32 2147483647, %v1869
      %v1894 = vand.u32 2147483647, %v1870
      %v1895 = vand.u32 2147483647, %v1871
      %v1896 = vand.u32 2147483647, %v1872
      %v1897 = vand.u32 2147483647, %v1873
      %v1898 = vand.u32 2147483647, %v1874
      %v1899 = vmul.f32 %v1891, 0.3275911
      %v1900 = vmul.f32 %v1892, 0.3275911
      %v1901 = vmul.f32 %v1893, 0.3275911
      %v1902 = vmul.f32 %v1894, 0.3275911
      %v1903 = vmul.f32 %v1895, 0.3275911
      %v1904 = vmul.f32 %v1896, 0.3275911
      %v1905 = vmul.f32 %v1897, 0.3275911
      %v1906 = vmul.f32 %v1898, 0.3275911
      %v1907 = vadd.f32 %v1899, 1.0
      %v1908 = vadd.f32 %v1900, 1.0
      %v1909 = vadd.f32 %v1901, 1.0
      %v1910 = vadd.f32 %v1902, 1.0
      %v1911 = vadd.f32 %v1903, 1.0
      %v1912 = vadd.f32 %v1904, 1.0
      %v1913 = vadd.f32 %v1905, 1.0
      %v1914 = vadd.f32 %v1906, 1.0
      %v1915 = vrcp.pop %v1907
      %v1916 = vmul.f32 %v1907, %v1915
      %v1917 = vsub.f32 1.0, %v1916
      %v1918 = vmul.f32 %v1915, %v1917
      %v1919 = vadd.f32 %v1915, %v1918
      %vm1920 = vweird.f32 %v1907
      %vm1921 = vweird.f32 %v1915
      %vm1922 = vmor %vm1920, %vm1921
      %v1923 = vsel %vm1922, %v1915, %v1919
      %v1924 = vand.u32 2147483647, %v1907
      %vm1925 = vcmp.eq.f32.partialorder %v1924, 8.507059e+37
      %v1926 = vand.u32 %v1907, 2147483648
      %v1927 = vor.u32 1.1754944e-38, %v1926
      %v1928 = vsel %vm1925, %v1927, %v1923
      %v1929 = vmul.f32 1.0, %v1928
      %v1930 = vrcp.pop %v1908
      %v1931 = vmul.f32 %v1908, %v1930
      %v1932 = vsub.f32 1.0, %v1931
      %v1933 = vmul.f32 %v1930, %v1932
      %v1934 = vadd.f32 %v1930, %v1933
      %vm1935 = vweird.f32 %v1908
      %vm1936 = vweird.f32 %v1930
      %vm1937 = vmor %vm1935, %vm1936
      %v1938 = vsel %vm1937, %v1930, %v1934
      %v1939 = vand.u32 2147483647, %v1908
      %vm1940 = vcmp.eq.f32.partialorder %v1939, 8.507059e+37
      %v1941 = vand.u32 %v1908, 2147483648
      %v1942 = vor.u32 1.1754944e-38, %v1941
      %v1943 = vsel %vm1940, %v1942, %v1938
      %v1944 = vmul.f32 1.0, %v1943
      %v1945 = vrcp.pop %v1909
      %v1946 = vmul.f32 %v1909, %v1945
      %v1947 = vsub.f32 1.0, %v1946
      %v1948 = vmul.f32 %v1945, %v1947
      %v1949 = vadd.f32 %v1945, %v1948
      %vm1950 = vweird.f32 %v1909
      %vm1951 = vweird.f32 %v1945
      %vm1952 = vmor %vm1950, %vm1951
      %v1953 = vsel %vm1952, %v1945, %v1949
      %v1954 = vand.u32 2147483647, %v1909
      %vm1955 = vcmp.eq.f32.partialorder %v1954, 8.507059e+37
      %v1956 = vand.u32 %v1909, 2147483648
      %v1957 = vor.u32 1.1754944e-38, %v1956
      %v1958 = vsel %vm1955, %v1957, %v1953
      %v1959 = vmul.f32 1.0, %v1958
      %v1960 = vrcp.pop %v1910
      %v1961 = vmul.f32 %v1910, %v1960
      %v1962 = vsub.f32 1.0, %v1961
      %v1963 = vmul.f32 %v1960, %v1962
      %v1964 = vadd.f32 %v1960, %v1963
      %vm1965 = vweird.f32 %v1910
      %vm1966 = vweird.f32 %v1960
      %vm1967 = vmor %vm1965, %vm1966
      %v1968 = vsel %vm1967, %v1960, %v1964
      %v1969 = vand.u32 2147483647, %v1910
      %vm1970 = vcmp.eq.f32.partialorder %v1969, 8.507059e+37
      %v1971 = vand.u32 %v1910, 2147483648
      %v1972 = vor.u32 1.1754944e-38, %v1971
      %v1973 = vsel %vm1970, %v1972, %v1968
      %v1974 = vmul.f32 1.0, %v1973
      %v1975 = vrcp.pop %v1911
      %v1976 = vmul.f32 %v1911, %v1975
      %v1977 = vsub.f32 1.0, %v1976
      %v1978 = vmul.f32 %v1975, %v1977
      %v1979 = vadd.f32 %v1975, %v1978
      %vm1980 = vweird.f32 %v1911
      %vm1981 = vweird.f32 %v1975
      %vm1982 = vmor %vm1980, %vm1981
      %v1983 = vsel %vm1982, %v1975, %v1979
      %v1984 = vand.u32 2147483647, %v1911
      %vm1985 = vcmp.eq.f32.partialorder %v1984, 8.507059e+37
      %v1986 = vand.u32 %v1911, 2147483648
      %v1987 = vor.u32 1.1754944e-38, %v1986
      %v1988 = vsel %vm1985, %v1987, %v1983
      %v1989 = vmul.f32 1.0, %v1988
      %v1990 = vrcp.pop %v1912
      %v1991 = vmul.f32 %v1912, %v1990
      %v1992 = vsub.f32 1.0, %v1991
      %v1993 = vmul.f32 %v1990, %v1992
      %v1994 = vadd.f32 %v1990, %v1993
      %vm1995 = vweird.f32 %v1912
      %vm1996 = vweird.f32 %v1990
      %vm1997 = vmor %vm1995, %vm1996
      %v1998 = vsel %vm1997, %v1990, %v1994
      %v1999 = vand.u32 2147483647, %v1912
      %vm2000 = vcmp.eq.f32.partialorder %v1999, 8.507059e+37
      %v2001 = vand.u32 %v1912, 2147483648
      %v2002 = vor.u32 1.1754944e-38, %v2001
      %v2003 = vsel %vm2000, %v2002, %v1998
      %v2004 = vmul.f32 1.0, %v2003
      %v2005 = vrcp.pop %v1913
      %v2006 = vmul.f32 %v1913, %v2005
      %v2007 = vsub.f32 1.0, %v2006
      %v2008 = vmul.f32 %v2005, %v2007
      %v2009 = vadd.f32 %v2005, %v2008
      %vm2010 = vweird.f32 %v1913
      %vm2011 = vweird.f32 %v2005
      %vm2012 = vmor %vm2010, %vm2011
      %v2013 = vsel %vm2012, %v2005, %v2009
      %v2014 = vand.u32 2147483647, %v1913
      %vm2015 = vcmp.eq.f32.partialorder %v2014, 8.507059e+37
      %v2016 = vand.u32 %v1913, 2147483648
      %v2017 = vor.u32 1.1754944e-38, %v2016
      %v2018 = vsel %vm2015, %v2017, %v2013
      %v2019 = vmul.f32 1.0, %v2018
      %v2020 = vrcp.pop %v1914
      %v2021 = vmul.f32 %v1914, %v2020
      %v2022 = vsub.f32 1.0, %v2021
      %v2023 = vmul.f32 %v2020, %v2022
      %v2024 = vadd.f32 %v2020, %v2023
      %vm2025 = vweird.f32 %v1914
      %vm2026 = vweird.f32 %v2020
      %vm2027 = vmor %vm2025, %vm2026
      %v2028 = vsel %vm2027, %v2020, %v2024
      %v2029 = vand.u32 2147483647, %v1914
      %vm2030 = vcmp.eq.f32.partialorder %v2029, 8.507059e+37
      %v2031 = vand.u32 %v1914, 2147483648
      %v2032 = vor.u32 1.1754944e-38, %v2031
      %v2033 = vsel %vm2030, %v2032, %v2028
      %v2034 = vmul.f32 1.0, %v2033
      %v2035 = vmul.f32 %v1929, 1.0614054
      %v2036 = vmul.f32 %v1944, 1.0614054
      %v2037 = vmul.f32 %v1959, 1.0614054
      %v2038 = vmul.f32 %v1974, 1.0614054
      %v2039 = vmul.f32 %v1989, 1.0614054
      %v2040 = vmul.f32 %v2004, 1.0614054
      %v2041 = vmul.f32 %v2019, 1.0614054
      %v2042 = vmul.f32 %v2034, 1.0614054
      %v2043 = vadd.f32 %v2035, -1.4531521
      %v2044 = vadd.f32 %v2036, -1.4531521
      %v2045 = vadd.f32 %v2037, -1.4531521
      %v2046 = vadd.f32 %v2038, -1.4531521
      %v2047 = vadd.f32 %v2039, -1.4531521
      %v2048 = vadd.f32 %v2040, -1.4531521
      %v2049 = vadd.f32 %v2041, -1.4531521
      %v2050 = vadd.f32 %v2042, -1.4531521
      %v2051 = vmul.f32 %v2043, %v1929
      %v2052 = vmul.f32 %v2044, %v1944
      %v2053 = vmul.f32 %v2045, %v1959
      %v2054 = vmul.f32 %v2046, %v1974
      %v2055 = vmul.f32 %v2047, %v1989
      %v2056 = vmul.f32 %v2048, %v2004
      %v2057 = vmul.f32 %v2049, %v2019
      %v2058 = vmul.f32 %v2050, %v2034
      %v2059 = vadd.f32 %v2051, 1.4214138
      %v2060 = vadd.f32 %v2052, 1.4214138
      %v2061 = vadd.f32 %v2053, 1.4214138
      %v2062 = vadd.f32 %v2054, 1.4214138
      %v2063 = vadd.f32 %v2055, 1.4214138
      %v2064 = vadd.f32 %v2056, 1.4214138
      %v2065 = vadd.f32 %v2057, 1.4214138
      %v2066 = vadd.f32 %v2058, 1.4214138
      %v2067 = vmul.f32 %v2059, %v1929
      %v2068 = vmul.f32 %v2060, %v1944
      %v2069 = vmul.f32 %v2061, %v1959
      %v2070 = vmul.f32 %v2062, %v1974
      %v2071 = vmul.f32 %v2063, %v1989
      %v2072 = vmul.f32 %v2064, %v2004
      %v2073 = vmul.f32 %v2065, %v2019
      %v2074 = vmul.f32 %v2066, %v2034
      %v2075 = vadd.f32 %v2067, -0.28449672
      %v2076 = vadd.f32 %v2068, -0.28449672
      %v2077 = vadd.f32 %v2069, -0.28449672
      %v2078 = vadd.f32 %v2070, -0.28449672
      %v2079 = vadd.f32 %v2071, -0.28449672
      %v2080 = vadd.f32 %v2072, -0.28449672
      %v2081 = vadd.f32 %v2073, -0.28449672
      %v2082 = vadd.f32 %v2074, -0.28449672
      %v2083 = vmul.f32 %v2075, %v1929
      %v2084 = vmul.f32 %v2076, %v1944
      %v2085 = vmul.f32 %v2077, %v1959
      %v2086 = vmul.f32 %v2078, %v1974
      %v2087 = vmul.f32 %v2079, %v1989
      %v2088 = vmul.f32 %v2080, %v2004
      %v2089 = vmul.f32 %v2081, %v2019
      %v2090 = vmul.f32 %v2082, %v2034
      %v2091 = vadd.f32 %v2083, 0.2548296
      %v2092 = vadd.f32 %v2084, 0.2548296
      %v2093 = vadd.f32 %v2085, 0.2548296
      %v2094 = vadd.f32 %v2086, 0.2548296
      %v2095 = vadd.f32 %v2087, 0.2548296
      %v2096 = vadd.f32 %v2088, 0.2548296
      %v2097 = vadd.f32 %v2089, 0.2548296
      %v2098 = vadd.f32 %v2090, 0.2548296
      %v2099 = vmul.f32 %v2091, %v1929
      %v2100 = vmul.f32 %v2092, %v1944
      %v2101 = vmul.f32 %v2093, %v1959
      %v2102 = vmul.f32 %v2094, %v1974
      %v2103 = vmul.f32 %v2095, %v1989
      %v2104 = vmul.f32 %v2096, %v2004
      %v2105 = vmul.f32 %v2097, %v2019
      %v2106 = vmul.f32 %v2098, %v2034
      %v2107 = vsub.f32 0.0, %v1891
      %v2108 = vsub.f32 0.0, %v1892
      %v2109 = vsub.f32 0.0, %v1893
      %v2110 = vsub.f32 0.0, %v1894
      %v2111 = vsub.f32 0.0, %v1895
      %v2112 = vsub.f32 0.0, %v1896
      %v2113 = vsub.f32 0.0, %v1897
      %v2114 = vsub.f32 0.0, %v1898
      %v2115 = vmul.f32 %v2107, %v1891
      %v2116 = vmul.f32 %v2108, %v1892
      %v2117 = vmul.f32 %v2109, %v1893
      %v2118 = vmul.f32 %v2110, %v1894
      %v2119 = vmul.f32 %v2111, %v1895
      %v2120 = vmul.f32 %v2112, %v1896
      %v2121 = vmul.f32 %v2113, %v1897
      %v2122 = vmul.f32 %v2114, %v1898
      %v2123 = vmul.f32 %v2115, 1.442695
      %v2124 = vpow.pop %v2123
      %v2125 = vmul.f32 %v2116, 1.442695
      %v2126 = vpow.pop %v2125
      %v2127 = vmul.f32 %v2117, 1.442695
      %v2128 = vpow.pop %v2127
      %v2129 = vmul.f32 %v2118, 1.442695
      %v2130 = vpow.pop %v2129
      %v2131 = vmul.f32 %v2119, 1.442695
      %v2132 = vpow.pop %v2131
      %v2133 = vmul.f32 %v2120, 1.442695
      %v2134 = vpow.pop %v2133
      %v2135 = vmul.f32 %v2121, 1.442695
      %v2136 = vpow.pop %v2135
      %v2137 = vmul.f32 %v2122, 1.442695
      %v2138 = vpow.pop %v2137
      %v2139 = vmul.f32 %v2099, %v2124
      %v2140 = vmul.f32 %v2100, %v2126
      %v2141 = vmul.f32 %v2101, %v2128
      %v2142 = vmul.f32 %v2102, %v2130
      %v2143 = vmul.f32 %v2103, %v2132
      %v2144 = vmul.f32 %v2104, %v2134
      %v2145 = vmul.f32 %v2105, %v2136
      %v2146 = vmul.f32 %v2106, %v2138
      %v2147 = vsub.f32 1.0, %v2139
      %v2148 = vsub.f32 1.0, %v2140
      %v2149 = vsub.f32 1.0, %v2141
      %v2150 = vsub.f32 1.0, %v2142
      %v2151 = vsub.f32 1.0, %v2143
      %v2152 = vsub.f32 1.0, %v2144
      %v2153 = vsub.f32 1.0, %v2145
      %v2154 = vsub.f32 1.0, %v2146
      %v2155 = vmul.f32 %v1883, %v2147
      %v2156 = vmul.f32 %v1884, %v2148
      %v2157 = vmul.f32 %v1885, %v2149
      %v2158 = vmul.f32 %v1886, %v2150
      %v2159 = vmul.f32 %v1887, %v2151
      %v2160 = vmul.f32 %v1888, %v2152
      %v2161 = vmul.f32 %v1889, %v2153
      %v2162 = vmul.f32 %v1890, %v2154
      %v2163 = vadd.f32 %v2155, 1.0
      %v2164 = vadd.f32 %v2156, 1.0
      %v2165 = vadd.f32 %v2157, 1.0
      %v2166 = vadd.f32 %v2158, 1.0
      %v2167 = vadd.f32 %v2159, 1.0
      %v2168 = vadd.f32 %v2160, 1.0
      %v2169 = vadd.f32 %v2161, 1.0
      %v2170 = vadd.f32 %v2162, 1.0
      %v2171 = vmul.f32 %v1859, %v2163
      %v2172 = vmul.f32 %v1860, %v2164
      %v2173 = vmul.f32 %v1861, %v2165
      %v2174 = vmul.f32 %v1862, %v2166
      %v2175 = vmul.f32 %v1863, %v2167
      %v2176 = vmul.f32 %v1864, %v2168
      %v2177 = vmul.f32 %v1865, %v2169
      %v2178 = vmul.f32 %v1866, %v2170
      %v2179 = vld [vmem:[%s10] sm:$0xff]
      %v2180 = vld [vmem:[%s10 + $0x8] sm:$0xff]
      %v2181 = vld [vmem:[%s10 + $0x10] sm:$0xff]
      %v2182 = vld [vmem:[%s10 + $0x18] sm:$0xff]
      %v2183 = vld [vmem:[%s10 + $0x20] sm:$0xff]
      %v2184 = vld [vmem:[%s10 + $0x28] sm:$0xff]
      %v2185 = vld [vmem:[%s10 + $0x30] sm:$0xff]
      %v2186 = vld [vmem:[%s10 + $0x38] sm:$0xff]
      %v2188 = vsel %vm889, %v2171, 0
      %v2191 = vsel %vm889, %v2172, 0
      %v2194 = vsel %vm889, %v2173, 0
      %v2197 = vsel %vm889, %v2174, 0
      %v2200 = vsel %vm889, %v2175, 0
      %v2203 = vsel %vm889, %v2176, 0
      %v2206 = vsel %vm889, %v2177, 0
      %v2209 = vsel %vm889, %v2178, 0
      %2211 = vmatpush.msra.mxu0 0.0
      %2212 = vmatpush.msra.mxu0 0.0
      %2213 = vmatpush.msra.mxu0 0.0
      %2214 = vmatpush.msra.mxu0 0.0
      %2215 = vmatpush.msra.mxu0 0.0
      %2216 = vmatpush.msra.mxu0 0.0
      %2217 = vmatpush.msra.mxu0 0.0
      %2218 = vmatpush.msra.mxu0 0.0
      %2219 = vmatpush.msra.mxu0 %v2186
      %2220 = vmatpush.msra.mxu0 %v2185
      %2221 = vmatpush.msra.mxu0 %v2184
      %2222 = vmatpush.msra.mxu0 %v2183
      %2223 = vmatpush.msra.mxu0 %v2182
      %2224 = vmatpush.msra.mxu0 %v2181
      %2225 = vmatpush.msra.mxu0 %v2180
      %2226 = vmatpush.msra.mxu0 %v2179
      %2227 = vmatmul.f32.gmra.mxu0 %v2188
      %v2228 = vpop.f32.mrf.mxu0
      %v2229 = vadd.f32 0.0, %v2228
      %2230 = vmatmul.f32.gmra.mxu0 %v2191
      %v2231 = vpop.f32.mrf.mxu0
      %v2232 = vadd.f32 0.0, %v2231
      %2233 = vmatmul.f32.gmra.mxu0 %v2194
      %v2234 = vpop.f32.mrf.mxu0
      %v2235 = vadd.f32 0.0, %v2234
      %2236 = vmatmul.f32.gmra.mxu0 %v2197
      %v2237 = vpop.f32.mrf.mxu0
      %v2238 = vadd.f32 0.0, %v2237
      %2239 = vmatmul.f32.gmra.mxu0 %v2200
      %v2240 = vpop.f32.mrf.mxu0
      %v2241 = vadd.f32 0.0, %v2240
      %2242 = vmatmul.f32.gmra.mxu0 %v2203
      %v2243 = vpop.f32.mrf.mxu0
      %v2244 = vadd.f32 0.0, %v2243
      %2245 = vmatmul.f32.gmra.mxu0 %v2206
      %v2246 = vpop.f32.mrf.mxu0
      %v2247 = vadd.f32 0.0, %v2246
      %2248 = vmatmul.f32.gmra.mxu0 %v2209
      %v2249 = vpop.f32.mrf.mxu0
      %v2250 = vadd.f32 0.0, %v2249
      %2251 = vdwg.mxu0
      %v2252 = vadd.f32 %v1578, %v2229
      %v2253 = vadd.f32 %v1579, %v2232
      %v2254 = vadd.f32 %v1580, %v2235
      %v2255 = vadd.f32 %v1581, %v2238
      %v2256 = vadd.f32 %v1582, %v2241
      %v2257 = vadd.f32 %v1583, %v2244
      %v2258 = vadd.f32 %v1584, %v2247
      %v2259 = vadd.f32 %v1585, %v2250
      %v2260 = vld [vmem:[%s11] sm:$0x1]
      %v2262 = vperm.slane %v2260, 0
      %v2264 = vadd.f32 %v2252, %v2262
      %v2265 = vadd.f32 %v2253, %v2262
      %v2266 = vadd.f32 %v2254, %v2262
      %v2267 = vadd.f32 %v2255, %v2262
      %v2268 = vadd.f32 %v2256, %v2262
      %v2269 = vadd.f32 %v2257, %v2262
      %v2270 = vadd.f32 %v2258, %v2262
      %v2271 = vadd.f32 %v2259, %v2262
      %2272 = vst.msk [vmem:[%s413] sm:$0xff] %vm424, %v2264
      %2273 = vst.msk [vmem:[%s413 + $0x8] sm:$0xff] %vm424, %v2265
      %2274 = vst.msk [vmem:[%s413 + $0x10] sm:$0xff] %vm424, %v2266
      %2275 = vst.msk [vmem:[%s413 + $0x18] sm:$0xff] %vm424, %v2267
      %2276 = vst.msk [vmem:[%s413 + $0x20] sm:$0xff] %vm424, %v2268
      %2277 = vst.msk [vmem:[%s413 + $0x28] sm:$0xff] %vm424, %v2269
      %2278 = vst.msk [vmem:[%s413 + $0x30] sm:$0xff] %vm424, %v2270
      %2279 = vst.msk [vmem:[%s413 + $0x38] sm:$0xff] %vm424, %v2271
      %p2280 = scmp.lt.s32.totalorder %s23, 1
      %s2281 = scalar_select %p2280, %s23, 1
      %s2282 = smul.addr %s2281, 8
      %s2283 = smul.addr %s2282, 8
      %s2284 = scalar_lea.vmem %s12, %s2283
      // Predicated region
      $region69: #{model_forward.7} parent=67 // pred_check
        %p2285 = pneg %p298
      $region70: #{model_forward.7} parent=67 // pred_check_branch
        %2287 = sbr.rel (%p2285) target = $region72
      $region71: #{model_forward.7} parent=67 // pred_region
        _
      $region72: #{model_forward.7} parent=67 // pred_fallthru
        _
    $region68: #{model_forward.7} parent=5 // pred_fallthru
      _
    %p2288 = scmp.le.s32.totalorder 2, %s18
    // Predicated region
    $region73: #{model_forward.7} parent=5 // pred_check
      %p2289 = pneg %p2288
    $region74: #{model_forward.7} parent=5 // pred_check_branch
      %2291 = sbr.rel (%p2289) target = $region76
    $region75: #{model_forward.7} parent=5 // pred_region
      %s2292 = ssub.s32 %s18, 2
      // Predicated region
      $region77: #{model_forward.7} parent=75 // pred_check
        %p2293 = pneg %p304
      $region78: #{model_forward.7} parent=75 // pred_check_branch
        %2295 = sbr.rel (%p2293) target = $region80
      $region79: #{model_forward.7} parent=75 // pred_region
        %p2296 = scmp.lt.s32.totalorder %s24, 1
        %s2297 = scalar_select %p2296, %s24, 1
        %s2298 = smul.addr %s2297, 8
        %s2299 = smul.addr %s2298, 8
        %s2300 = scalar_lea.vmem %s12, %s2299
      $region80: #{model_forward.7} parent=75 // pred_fallthru
        _
    $region76: #{model_forward.7} parent=5 // pred_fallthru
      _
  $region6: #{model_forward.7} parent=0 // loop_footer
    %s22 = sadd.s32 1, %s18
  $region7: #{model_forward.7} parent=0 // loop_footer_branch
    %17 = sbr.rel target = $region3
  $region8: #{model_forward.7} parent=0 // loop_exit
    _

</llo_original>
